<compile_context>
chip_gen: v7x
topology: tpu7x:2x2x1
jax: 0.10.0
libtpu: 0.0.40
codegen_flags: <defaults>
</compile_context>

<pallas_src>
import functools

import jax
import jax.numpy as jnp
import numpy as np
from jax.experimental import pallas as pl
from jax.experimental.pallas import tpu as pltpu

BRANCHES = 3
GAMMA = 1.0  # CompetitiveFusion gamma


def _temporal_branch(flat_bf16, w_bf16, scale, bias, tp, c):
    """One Temporal_Block on a flattened (T*TP, C) spatial tile.

    Conv3d(C, C, kernel=(3,1,1), padding=(1,0,0), bias=False) is spatially
    pointwise, so per tile it is a single fused matmul (T*TP, C) @ (C, 3C)
    whose three C-wide column groups are the taps applied to x[t-1], x[t],
    x[t+1].  The temporal shift (one frame == TP rows of the flattened tile)
    is a zero-pad + static-slice concatenation along the sublane axis
    (zero padding in t).  Followed by folded BN3d + ReLU.
    """
    rows = flat_bf16.shape[0]
    acc = jnp.dot(flat_bf16, w_bf16, preferred_element_type=jnp.float32)  # (R, 3C)
    a_prev = acc[:, 0:c]            # tap applied to x[t-1]
    a_mid = acc[:, c:2 * c]         # tap applied to x[t]
    a_next = acc[:, 2 * c:]         # tap applied to x[t+1]
    y = a_mid
    if rows > tp:                   # T > 1: add the shifted neighbour taps
        zpad = jnp.zeros((tp, c), jnp.float32)
        # y[r] += a_prev[r - TP]  (rows r < TP get zero padding)
        y = y + jnp.concatenate([zpad, a_prev[:rows - tp, :]], axis=0)
        # y[r] += a_next[r + TP]  (rows r >= (T-1)*TP get zero padding)
        y = y + jnp.concatenate([a_next[tp:, :], zpad], axis=0)
    y = y * scale + bias            # folded BatchNorm3d (eval mode)
    return jnp.maximum(y, 0.0)      # ReLU


def _pool_attn_kernel(x_ref, convw_ref, bnsc_ref, bnbi_ref,
                      fcw_ref, fcb_ref, bn1sc_ref, bn1bi_ref,
                      fcsw_ref, fcsb_ref, attn_ref, acc_ref, *, total_p):
    """Pass 1: accumulate the global average pool and emit attention (1,3,C)."""
    T, TP, C = x_ref.shape[1], x_ref.shape[2], x_ref.shape[3]
    rows = T * TP
    p = pl.program_id(1)

    @pl.when(p == 0)
    def _():
        acc_ref[...] = jnp.zeros_like(acc_ref)

    def branch(flat_bf16, b):
        return _temporal_branch(flat_bf16, convw_ref[b],
                                bnsc_ref[b][None, :], bnbi_ref[b][None, :],
                                TP, C)

    flat0 = x_ref[0].reshape(rows, C)                 # bf16 input tile
    f1 = branch(flat0, 0)
    f2 = branch(f1.astype(jnp.bfloat16), 1)
    f3 = branch(f2.astype(jnp.bfloat16), 2)

    # Partial global-average-pool accumulation (sum; normalized at the end).
    acc_ref[...] += jnp.sum(f1 + f2 + f3, axis=0, keepdims=True)      # (1, C)

    @pl.when(p == pl.num_programs(1) - 1)
    def _():
        # fea_U = sum(branches)/3 ; AdaptiveAvgPool3d(1) over (T, H, W).
        fea_s = acc_ref[...] * (1.0 / (BRANCHES * T * total_p))       # (1, C)
        # Squeeze FC -> BN1d (eval, folded) -> ReLU.
        fea_h = jnp.dot(fea_s, fcw_ref[...],
                        preferred_element_type=jnp.float32) + fcb_ref[...]
        fea_h = jnp.maximum(fea_h * bn1sc_ref[...] + bn1bi_ref[...], 0.0)
        # All 3 excitation FCs fused into a single (1, D) @ (D, 3C) dot.
        logits = jnp.dot(fea_h, fcsw_ref[...],
                         preferred_element_type=jnp.float32) + fcsb_ref[...]
        logits = logits * GAMMA
        l0 = logits[:, 0:C]
        l1 = logits[:, C:2 * C]
        l2 = logits[:, 2 * C:]
        # Softmax over the branch axis (per channel).
        m = jnp.maximum(jnp.maximum(l0, l1), l2)
        e0 = jnp.exp(l0 - m)
        e1 = jnp.exp(l1 - m)
        e2 = jnp.exp(l2 - m)
        inv = 1.0 / (e0 + e1 + e2)
        attn_ref[0] = jnp.concatenate([e0 * inv, e1 * inv, e2 * inv], axis=0)


def _reweight_kernel(attn_ref, x_ref, convw_ref, bnsc_ref, bnbi_ref, out_ref):
    """Pass 2: recompute branch features per tile and apply attention weights."""
    T, TP, C = x_ref.shape[1], x_ref.shape[2], x_ref.shape[3]
    rows = T * TP

    def branch(flat_bf16, b):
        return _temporal_branch(flat_bf16, convw_ref[b],
                                bnsc_ref[b][None, :], bnbi_ref[b][None, :],
                                TP, C)

    flat0 = x_ref[0].reshape(rows, C)
    f1 = branch(flat0, 0)
    f2 = branch(f1.astype(jnp.bfloat16), 1)
    f3 = branch(f2.astype(jnp.bfloat16), 2)

    attn = attn_ref[0]                                # (3, C) softmax weights
    fea_v = f1 * attn[0:1, :] + f2 * attn[1:2, :] + f3 * attn[2:3, :]
    out_ref[0] = fea_v.reshape(T, TP, C).astype(out_ref.dtype)


def _pick_p_tile(p_total, target=256):
    """Largest spatial tile <= target that divides P and is sublane aligned."""
    for cand in range(min(p_total, target), 15, -1):
        if p_total % cand == 0 and cand % 16 == 0:
            return cand
    return p_total          # full extent is always a legal block dim


def multiscale_temporal_module(x_nchw, params, segments=8, p_tile=None):
    """Forward of MultiScale_Temporal_Module.  x_nchw: (N*segments, C, H, W)."""
    NT, C, H, W = x_nchw.shape
    assert NT % segments == 0
    N, T, P = NT // segments, segments, H * W
    D = params["fcw"].shape[1]
    out_dtype = x_nchw.dtype

    if p_tile is None:
        p_tile = _pick_p_tile(P)
    assert P % p_tile == 0 and (p_tile % 16 == 0 or p_tile == P)
    num_pt = P // p_tile

    # (N*T, C, H, W) -> (N, T, P, C); channels land on the TPU lane axis.
    # TODO(synk): for production graphs fold this transpose into the producer
    # (allow_input_fusion) to avoid the extra HBM round trip.
    x = x_nchw.reshape(N, T, C, H, W).transpose(0, 1, 3, 4, 2).reshape(N, T, P, C)
    x = x.astype(jnp.bfloat16)                       # bf16 MXU inputs

    # Pack the 3 temporal taps into one (C, 3C) matmul operand per branch,
    # and the 3 excitation FCs into one (D, 3C) operand.
    convw_f = params["convw"].transpose(0, 2, 1, 3).reshape(BRANCHES, C, 3 * C)
    convw_f = convw_f.astype(jnp.bfloat16)
    fcsw_f = params["fcsw"].transpose(1, 0, 2).reshape(D, BRANCHES * C)
    fcsb_f = params["fcsb"].reshape(1, BRANCHES * C)

    # ---------------- Pass 1: global pool + competitive attention -----------
    attn = pl.pallas_call(
        functools.partial(_pool_attn_kernel, total_p=P),
        out_shape=jax.ShapeDtypeStruct((N, BRANCHES, C), jnp.float32),
        grid_spec=pltpu.PrefetchScalarGridSpec(
            num_scalar_prefetch=0,
            grid=(N, num_pt),
            in_specs=[
                pl.BlockSpec((1, T, p_tile, C), lambda n, p: (n, 0, p, 0)),     # x
                pl.BlockSpec((BRANCHES, C, 3 * C), lambda n, p: (0, 0, 0)),     # conv w
                pl.BlockSpec((BRANCHES, C), lambda n, p: (0, 0)),               # bn scale
                pl.BlockSpec((BRANCHES, C), lambda n, p: (0, 0)),               # bn bias
                pl.BlockSpec((C, D), lambda n, p: (0, 0)),                      # fc w
                pl.BlockSpec((1, D), lambda n, p: (0, 0)),                      # fc b
                pl.BlockSpec((1, D), lambda n, p: (0, 0)),                      # bn1 scale
                pl.BlockSpec((1, D), lambda n, p: (0, 0)),                      # bn1 bias
                pl.BlockSpec((D, BRANCHES * C), lambda n, p: (0, 0)),           # fcs w
                pl.BlockSpec((1, BRANCHES * C), lambda n, p: (0, 0)),           # fcs b
            ],
            out_specs=pl.BlockSpec((1, BRANCHES, C), lambda n, p: (n, 0, 0)),
            scratch_shapes=[pltpu.VMEM((1, C), jnp.float32)],
        ),
        compiler_params=pltpu.CompilerParams(
            dimension_semantics=("parallel", "arbitrary"),
            vmem_limit_bytes=64 * 1024 * 1024),
    )(x, convw_f, params["bn_scale"], params["bn_bias"],
      params["fcw"], params["fcb"], params["bn1_scale"], params["bn1_bias"],
      fcsw_f, fcsb_f)

    # ---------------- Pass 2: re-weight branch features ---------------------
    out = pl.pallas_call(
        _reweight_kernel,
        out_shape=jax.ShapeDtypeStruct((N, T, P, C), out_dtype),
        grid_spec=pltpu.PrefetchScalarGridSpec(
            num_scalar_prefetch=0,
            grid=(N, num_pt),
            in_specs=[
                pl.BlockSpec((1, BRANCHES, C), lambda n, p: (n, 0, 0)),         # attn
                pl.BlockSpec((1, T, p_tile, C), lambda n, p: (n, 0, p, 0)),     # x
                pl.BlockSpec((BRANCHES, C, 3 * C), lambda n, p: (0, 0, 0)),     # conv w
                pl.BlockSpec((BRANCHES, C), lambda n, p: (0, 0)),               # bn scale
                pl.BlockSpec((BRANCHES, C), lambda n, p: (0, 0)),               # bn bias
            ],
            out_specs=pl.BlockSpec((1, T, p_tile, C), lambda n, p: (n, 0, p, 0)),
        ),
        compiler_params=pltpu.CompilerParams(
            dimension_semantics=("parallel", "parallel"),
            vmem_limit_bytes=64 * 1024 * 1024),
    )(attn, x, convw_f, params["bn_scale"], params["bn_bias"])

    # (N, T, P, C) -> (N*T, C, H, W)  (matches the PyTorch output layout).
    out = out.reshape(N, T, H, W, C).transpose(0, 1, 4, 2, 3).reshape(NT, C, H, W)
    return out


def _reference_forward(x_nchw, params, segments=8):
    """Pure-JAX reference (same math, bf16 matmul precision, no Pallas)."""
    NT, C, H, W = x_nchw.shape
    N, T, P = NT // segments, segments, H * W
    x = x_nchw.reshape(N, T, C, H, W).transpose(0, 1, 3, 4, 2).reshape(N, T, P, C)
    x = x.astype(jnp.float32)

    def block(inp, b):
        a = jnp.einsum("ntpc,kcd->kntpd",
                       inp.astype(jnp.bfloat16),
                       params["convw"][b].astype(jnp.bfloat16),
                       preferred_element_type=jnp.float32)
        y = a[1]
        y = y.at[:, 1:].add(a[0][:, :-1])
        y = y.at[:, :-1].add(a[2][:, 1:])
        y = y * params["bn_scale"][b] + params["bn_bias"][b]
        return jnp.maximum(y, 0.0)

    f1 = block(x, 0)
    f2 = block(f1, 1)
    f3 = block(f2, 2)
    fea_u = (f1 + f2 + f3) / float(BRANCHES)
    fea_s = fea_u.mean(axis=(1, 2))                                  # (N, C)
    fea_h = fea_s @ params["fcw"] + params["fcb"]                    # (N, D)
    fea_h = jnp.maximum(fea_h * params["bn1_scale"] + params["bn1_bias"], 0.0)
    logits = jnp.stack(
        [fea_h @ params["fcsw"][b] + params["fcsb"][b] for b in range(BRANCHES)],
        axis=1)                                                      # (N, 3, C)
    attn = jax.nn.softmax(logits * GAMMA, axis=1)
    fea_v = (f1 * attn[:, 0, None, None, :]
             + f2 * attn[:, 1, None, None, :]
             + f3 * attn[:, 2, None, None, :])
    out = fea_v.reshape(N, T, H, W, C).transpose(0, 1, 4, 2, 3).reshape(NT, C, H, W)
    return out


def make_params(key, channels):
    """Deterministic synthetic parameters (shapes match the PyTorch module)."""
    C = channels
    D = max(int(C / 16), 32)           # d = max(inplance/rate, L), rate=16, L=32
    eps = 1e-5
    ks = jax.random.split(key, 12)

    convw = 0.1 * jax.random.normal(ks[0], (BRANCHES, 3, C, C), jnp.float32)

    bn_gamma = 1.0 + 0.1 * jax.random.normal(ks[1], (BRANCHES, C), jnp.float32)
    bn_beta = 0.1 * jax.random.normal(ks[2], (BRANCHES, C), jnp.float32)
    bn_mean = 0.1 * jax.random.normal(ks[3], (BRANCHES, C), jnp.float32)
    bn_var = jax.random.uniform(ks[4], (BRANCHES, C), jnp.float32, 0.5, 1.5)
    bn_scale = bn_gamma / jnp.sqrt(bn_var + eps)
    bn_bias = bn_beta - bn_mean * bn_scale

    fcw = 0.1 * jax.random.normal(ks[5], (C, D), jnp.float32)   # Linear(C->D).weight.T
    fcb = 0.1 * jax.random.normal(ks[6], (1, D), jnp.float32)

    bn1_gamma = 1.0 + 0.1 * jax.random.normal(ks[7], (1, D), jnp.float32)
    bn1_beta = 0.1 * jax.random.normal(ks[8], (1, D), jnp.float32)
    bn1_mean = jnp.zeros((1, D), jnp.float32)
    bn1_var = jnp.ones((1, D), jnp.float32)
    bn1_scale = bn1_gamma / jnp.sqrt(bn1_var + eps)
    bn1_bias = bn1_beta - bn1_mean * bn1_scale

    fcsw = 0.1 * jax.random.normal(ks[9], (BRANCHES, D, C), jnp.float32)
    fcsb = 0.1 * jax.random.normal(ks[10], (BRANCHES, C), jnp.float32)

    return dict(convw=convw, bn_scale=bn_scale, bn_bias=bn_bias,
                fcw=fcw, fcb=fcb, bn1_scale=bn1_scale, bn1_bias=bn1_bias,
                fcsw=fcsw, fcsb=fcsb)


if __name__ == "__main__":
    key = jax.random.PRNGKey(0)
    k_x, k_p = jax.random.split(key)

    N, segments, C, H, W = 2, 8, 8, 8, 8          # input: (N*segments, C, H, W)
    x = jax.random.normal(k_x, (N * segments, C, H, W), jnp.float32)
    params = make_params(k_p, C)

    # p_tile=32 -> 2 spatial tiles per sample, exercising the cross-tile
    # pooling accumulation and the parallel re-weight grid.
    fwd = jax.jit(functools.partial(multiscale_temporal_module,
                                    segments=segments, p_tile=32))
    out = jax.block_until_ready(fwd(x, params))

    ref = jax.block_until_ready(_reference_forward(x, params, segments=segments))
    assert out.shape == (N * segments, C, H, W)
    np.testing.assert_allclose(np.asarray(out), np.asarray(ref),
                               rtol=1e-2, atol=1e-2)

    print("KERNEL_OK")
</pallas_src>

<mosaic_0001>
module attributes {stable_mosaic.version = 11 : i64} {
  func.func @_reweight_kernel(%arg0: i32, %arg1: i32, %arg2: memref<1x3x8xf32, #tpu.memory_space<vmem>>, %arg3: memref<1x8x32x8xbf16, #tpu.memory_space<vmem>>, %arg4: memref<3x8x24xbf16, #tpu.memory_space<vmem>>, %arg5: memref<3x8xf32, #tpu.memory_space<vmem>>, %arg6: memref<3x8xf32, #tpu.memory_space<vmem>>, %arg7: memref<1x8x32x8xf32, #tpu.memory_space<vmem>>) attributes {dimension_semantics = [#tpu.dimension_semantics<parallel>, #tpu.dimension_semantics<parallel>], iteration_bounds = array<i64: 2, 2>, scalar_prefetch = 0 : i64, scratch_operands = 0 : i64, tpu.core_type = #tpu.core_type<tc>, window_params = [{transform_indices = @transform_0, window_bounds = array<i64: 1, 3, 8>}, {transform_indices = @transform_1, window_bounds = array<i64: 1, 8, 32, 8>}, {pipeline_mode = #tpu.pipeline_mode<synchronous>, transform_indices = @transform_2, window_bounds = array<i64: 3, 8, 24>}, {pipeline_mode = #tpu.pipeline_mode<synchronous>, transform_indices = @transform_3, window_bounds = array<i64: 3, 8>}, {pipeline_mode = #tpu.pipeline_mode<synchronous>, transform_indices = @transform_4, window_bounds = array<i64: 3, 8>}, {transform_indices = @transform_5, window_bounds = array<i64: 1, 8, 32, 8>}]} {
    %c0 = arith.constant 0 : index
    %c0_0 = arith.constant 0 : index
    %c0_1 = arith.constant 0 : index
    %c0_2 = arith.constant 0 : index
    %0 = vector.load %arg3[%c0, %c0_0, %c0_1, %c0_2] : memref<1x8x32x8xbf16, #tpu.memory_space<vmem>>, vector<1x8x32x8xbf16>
    %1 = vector.shape_cast %0 : vector<1x8x32x8xbf16> to vector<8x32x8xbf16>
    %2 = vector.shape_cast %1 : vector<8x32x8xbf16> to vector<256x8xbf16>
    %c0_3 = arith.constant 0 : index
    %c0_4 = arith.constant 0 : index
    %c0_5 = arith.constant 0 : index
    %3 = vector.load %arg4[%c0_3, %c0_4, %c0_5] : memref<3x8x24xbf16, #tpu.memory_space<vmem>>, vector<1x8x24xbf16>
    %4 = vector.shape_cast %3 : vector<1x8x24xbf16> to vector<8x24xbf16>
    %c0_6 = arith.constant 0 : index
    %c0_7 = arith.constant 0 : index
    %5 = vector.load %arg5[%c0_6, %c0_7] : memref<3x8xf32, #tpu.memory_space<vmem>>, vector<1x8xf32>
    %6 = vector.shape_cast %5 : vector<1x8xf32> to vector<8xf32>
    %7 = vector.shape_cast %6 : vector<8xf32> to vector<1x8xf32>
    %c0_8 = arith.constant 0 : index
    %c0_9 = arith.constant 0 : index
    %8 = vector.load %arg6[%c0_8, %c0_9] : memref<3x8xf32, #tpu.memory_space<vmem>>, vector<1x8xf32>
    %9 = vector.shape_cast %8 : vector<1x8xf32> to vector<8xf32>
    %10 = vector.shape_cast %9 : vector<8xf32> to vector<1x8xf32>
    %cst = arith.constant dense<0.000000e+00> : vector<256x24xf32>
    %11 = tpu.matmul %2, %4, %cst {dimension_numbers = #tpu.dot_dimension_numbers<[1], [0], [0], [1], [0, 0, 1, 1], [], []>} : vector<256x8xbf16>, vector<8x24xbf16>, vector<256x24xf32> -> vector<256x24xf32>
    %12 = vector.extract_strided_slice %11 {offsets = [0, 0], sizes = [256, 8], strides = [1, 1]} : vector<256x24xf32> to vector<256x8xf32>
    %13 = vector.extract_strided_slice %11 {offsets = [0, 8], sizes = [256, 8], strides = [1, 1]} : vector<256x24xf32> to vector<256x8xf32>
    %14 = vector.extract_strided_slice %11 {offsets = [0, 16], sizes = [256, 8], strides = [1, 1]} : vector<256x24xf32> to vector<256x8xf32>
    %cst_10 = arith.constant 0.000000e+00 : f32
    %15 = vector.broadcast %cst_10 : f32 to vector<32x8xf32>
    %16 = vector.extract_strided_slice %12 {offsets = [0, 0], sizes = [224, 8], strides = [1, 1]} : vector<256x8xf32> to vector<224x8xf32>
    %17 = tpu.concatenate %15, %16 in 0 : vector<32x8xf32>, vector<224x8xf32> -> vector<256x8xf32>
    %18 = arith.addf %13, %17 : vector<256x8xf32>
    %19 = vector.extract_strided_slice %14 {offsets = [32, 0], sizes = [224, 8], strides = [1, 1]} : vector<256x8xf32> to vector<224x8xf32>
    %20 = tpu.concatenate %19, %15 in 0 : vector<224x8xf32>, vector<32x8xf32> -> vector<256x8xf32>
    %21 = arith.addf %18, %20 : vector<256x8xf32>
    %22 = vector.broadcast %7 : vector<1x8xf32> to vector<256x8xf32>
    %23 = arith.mulf %21, %22 : vector<256x8xf32>
    %24 = vector.broadcast %10 : vector<1x8xf32> to vector<256x8xf32>
    %25 = arith.addf %23, %24 : vector<256x8xf32>
    %cst_11 = arith.constant 0.000000e+00 : f32
    %26 = vector.broadcast %cst_11 : f32 to vector<256x8xf32>
    %27 = arith.maximumf %25, %26 : vector<256x8xf32>
    %28 = arith.truncf %27 : vector<256x8xf32> to vector<256x8xbf16>
    %c1 = arith.constant 1 : index
    %c0_12 = arith.constant 0 : index
    %c0_13 = arith.constant 0 : index
    %29 = vector.load %arg4[%c1, %c0_12, %c0_13] : memref<3x8x24xbf16, #tpu.memory_space<vmem>>, vector<1x8x24xbf16>
    %30 = vector.shape_cast %29 : vector<1x8x24xbf16> to vector<8x24xbf16>
    %c1_14 = arith.constant 1 : index
    %c0_15 = arith.constant 0 : index
    %31 = vector.load %arg5[%c1_14, %c0_15] : memref<3x8xf32, #tpu.memory_space<vmem>>, vector<1x8xf32>
    %32 = vector.shape_cast %31 : vector<1x8xf32> to vector<8xf32>
    %33 = vector.shape_cast %32 : vector<8xf32> to vector<1x8xf32>
    %c1_16 = arith.constant 1 : index
    %c0_17 = arith.constant 0 : index
    %34 = vector.load %arg6[%c1_16, %c0_17] : memref<3x8xf32, #tpu.memory_space<vmem>>, vector<1x8xf32>
    %35 = vector.shape_cast %34 : vector<1x8xf32> to vector<8xf32>
    %36 = vector.shape_cast %35 : vector<8xf32> to vector<1x8xf32>
    %cst_18 = arith.constant dense<0.000000e+00> : vector<256x24xf32>
    %37 = tpu.matmul %28, %30, %cst_18 {dimension_numbers = #tpu.dot_dimension_numbers<[1], [0], [0], [1], [0, 0, 1, 1], [], []>} : vector<256x8xbf16>, vector<8x24xbf16>, vector<256x24xf32> -> vector<256x24xf32>
    %38 = vector.extract_strided_slice %37 {offsets = [0, 0], sizes = [256, 8], strides = [1, 1]} : vector<256x24xf32> to vector<256x8xf32>
    %39 = vector.extract_strided_slice %37 {offsets = [0, 8], sizes = [256, 8], strides = [1, 1]} : vector<256x24xf32> to vector<256x8xf32>
    %40 = vector.extract_strided_slice %37 {offsets = [0, 16], sizes = [256, 8], strides = [1, 1]} : vector<256x24xf32> to vector<256x8xf32>
    %cst_19 = arith.constant 0.000000e+00 : f32
    %41 = vector.broadcast %cst_19 : f32 to vector<32x8xf32>
    %42 = vector.extract_strided_slice %38 {offsets = [0, 0], sizes = [224, 8], strides = [1, 1]} : vector<256x8xf32> to vector<224x8xf32>
    %43 = tpu.concatenate %41, %42 in 0 : vector<32x8xf32>, vector<224x8xf32> -> vector<256x8xf32>
    %44 = arith.addf %39, %43 : vector<256x8xf32>
    %45 = vector.extract_strided_slice %40 {offsets = [32, 0], sizes = [224, 8], strides = [1, 1]} : vector<256x8xf32> to vector<224x8xf32>
    %46 = tpu.concatenate %45, %41 in 0 : vector<224x8xf32>, vector<32x8xf32> -> vector<256x8xf32>
    %47 = arith.addf %44, %46 : vector<256x8xf32>
    %48 = vector.broadcast %33 : vector<1x8xf32> to vector<256x8xf32>
    %49 = arith.mulf %47, %48 : vector<256x8xf32>
    %50 = vector.broadcast %36 : vector<1x8xf32> to vector<256x8xf32>
    %51 = arith.addf %49, %50 : vector<256x8xf32>
    %cst_20 = arith.constant 0.000000e+00 : f32
    %52 = vector.broadcast %cst_20 : f32 to vector<256x8xf32>
    %53 = arith.maximumf %51, %52 : vector<256x8xf32>
    %54 = arith.truncf %53 : vector<256x8xf32> to vector<256x8xbf16>
    %c2 = arith.constant 2 : index
    %c0_21 = arith.constant 0 : index
    %c0_22 = arith.constant 0 : index
    %55 = vector.load %arg4[%c2, %c0_21, %c0_22] : memref<3x8x24xbf16, #tpu.memory_space<vmem>>, vector<1x8x24xbf16>
    %56 = vector.shape_cast %55 : vector<1x8x24xbf16> to vector<8x24xbf16>
    %c2_23 = arith.constant 2 : index
    %c0_24 = arith.constant 0 : index
    %57 = vector.load %arg5[%c2_23, %c0_24] : memref<3x8xf32, #tpu.memory_space<vmem>>, vector<1x8xf32>
    %58 = vector.shape_cast %57 : vector<1x8xf32> to vector<8xf32>
    %59 = vector.shape_cast %58 : vector<8xf32> to vector<1x8xf32>
    %c2_25 = arith.constant 2 : index
    %c0_26 = arith.constant 0 : index
    %60 = vector.load %arg6[%c2_25, %c0_26] : memref<3x8xf32, #tpu.memory_space<vmem>>, vector<1x8xf32>
    %61 = vector.shape_cast %60 : vector<1x8xf32> to vector<8xf32>
    %62 = vector.shape_cast %61 : vector<8xf32> to vector<1x8xf32>
    %cst_27 = arith.constant dense<0.000000e+00> : vector<256x24xf32>
    %63 = tpu.matmul %54, %56, %cst_27 {dimension_numbers = #tpu.dot_dimension_numbers<[1], [0], [0], [1], [0, 0, 1, 1], [], []>} : vector<256x8xbf16>, vector<8x24xbf16>, vector<256x24xf32> -> vector<256x24xf32>
    %64 = vector.extract_strided_slice %63 {offsets = [0, 0], sizes = [256, 8], strides = [1, 1]} : vector<256x24xf32> to vector<256x8xf32>
    %65 = vector.extract_strided_slice %63 {offsets = [0, 8], sizes = [256, 8], strides = [1, 1]} : vector<256x24xf32> to vector<256x8xf32>
    %66 = vector.extract_strided_slice %63 {offsets = [0, 16], sizes = [256, 8], strides = [1, 1]} : vector<256x24xf32> to vector<256x8xf32>
    %cst_28 = arith.constant 0.000000e+00 : f32
    %67 = vector.broadcast %cst_28 : f32 to vector<32x8xf32>
    %68 = vector.extract_strided_slice %64 {offsets = [0, 0], sizes = [224, 8], strides = [1, 1]} : vector<256x8xf32> to vector<224x8xf32>
    %69 = tpu.concatenate %67, %68 in 0 : vector<32x8xf32>, vector<224x8xf32> -> vector<256x8xf32>
    %70 = arith.addf %65, %69 : vector<256x8xf32>
    %71 = vector.extract_strided_slice %66 {offsets = [32, 0], sizes = [224, 8], strides = [1, 1]} : vector<256x8xf32> to vector<224x8xf32>
    %72 = tpu.concatenate %71, %67 in 0 : vector<224x8xf32>, vector<32x8xf32> -> vector<256x8xf32>
    %73 = arith.addf %70, %72 : vector<256x8xf32>
    %74 = vector.broadcast %59 : vector<1x8xf32> to vector<256x8xf32>
    %75 = arith.mulf %73, %74 : vector<256x8xf32>
    %76 = vector.broadcast %62 : vector<1x8xf32> to vector<256x8xf32>
    %77 = arith.addf %75, %76 : vector<256x8xf32>
    %cst_29 = arith.constant 0.000000e+00 : f32
    %78 = vector.broadcast %cst_29 : f32 to vector<256x8xf32>
    %79 = arith.maximumf %77, %78 : vector<256x8xf32>
    %c0_30 = arith.constant 0 : index
    %c0_31 = arith.constant 0 : index
    %c0_32 = arith.constant 0 : index
    %80 = vector.load %arg2[%c0_30, %c0_31, %c0_32] : memref<1x3x8xf32, #tpu.memory_space<vmem>>, vector<1x3x8xf32>
    %81 = vector.shape_cast %80 : vector<1x3x8xf32> to vector<3x8xf32>
    %82 = vector.extract_strided_slice %81 {offsets = [0, 0], sizes = [1, 8], strides = [1, 1]} : vector<3x8xf32> to vector<1x8xf32>
    %83 = vector.broadcast %82 : vector<1x8xf32> to vector<256x8xf32>
    %84 = arith.mulf %27, %83 : vector<256x8xf32>
    %85 = vector.extract_strided_slice %81 {offsets = [1, 0], sizes = [1, 8], strides = [1, 1]} : vector<3x8xf32> to vector<1x8xf32>
    %86 = vector.broadcast %85 : vector<1x8xf32> to vector<256x8xf32>
    %87 = arith.mulf %53, %86 : vector<256x8xf32>
    %88 = arith.addf %84, %87 : vector<256x8xf32>
    %89 = vector.extract_strided_slice %81 {offsets = [2, 0], sizes = [1, 8], strides = [1, 1]} : vector<3x8xf32> to vector<1x8xf32>
    %90 = vector.broadcast %89 : vector<1x8xf32> to vector<256x8xf32>
    %91 = arith.mulf %79, %90 : vector<256x8xf32>
    %92 = arith.addf %88, %91 : vector<256x8xf32>
    %93 = vector.shape_cast %92 : vector<256x8xf32> to vector<8x32x8xf32>
    %c0_33 = arith.constant 0 : index
    %c0_34 = arith.constant 0 : index
    %c0_35 = arith.constant 0 : index
    %c0_36 = arith.constant 0 : index
    %94 = vector.load %arg7[%c0_33, %c0_34, %c0_35, %c0_36] : memref<1x8x32x8xf32, #tpu.memory_space<vmem>>, vector<1x8x32x8xf32>
    %95 = vector.shape_cast %94 : vector<1x8x32x8xf32> to vector<8x32x8xf32>
    %96 = vector.shape_cast %93 : vector<8x32x8xf32> to vector<1x8x32x8xf32>
    tpu.vector_store %arg7[%c0_33, %c0_34, %c0_35, %c0_36], %96 {strides = array<i32>} : memref<1x8x32x8xf32, #tpu.memory_space<vmem>>, vector<1x8x32x8xf32>,
    return
  }
  func.func @transform_0(%arg0: i32, %arg1: i32) -> (i32, i32, i32) {
    %c0_i32 = arith.constant 0 : i32
    %c0_i32_0 = arith.constant 0 : i32
    %c0_i32_1 = arith.constant 0 : i32
    return %arg0, %c0_i32, %c0_i32_0 : i32, i32, i32
  }
  func.func @transform_1(%arg0: i32, %arg1: i32) -> (i32, i32, i32, i32) {
    %c0_i32 = arith.constant 0 : i32
    %c0_i32_0 = arith.constant 0 : i32
    %c0_i32_1 = arith.constant 0 : i32
    return %arg0, %c0_i32, %arg1, %c0_i32_0 : i32, i32, i32, i32
  }
  func.func @transform_2(%arg0: i32, %arg1: i32) -> (i32, i32, i32) {
    %c0_i32 = arith.constant 0 : i32
    %c0_i32_0 = arith.constant 0 : i32
    %c0_i32_1 = arith.constant 0 : i32
    %c0_i32_2 = arith.constant 0 : i32
    return %c0_i32, %c0_i32_0, %c0_i32_1 : i32, i32, i32
  }
  func.func @transform_3(%arg0: i32, %arg1: i32) -> (i32, i32) {
    %c0_i32 = arith.constant 0 : i32
    %c0_i32_0 = arith.constant 0 : i32
    %c0_i32_1 = arith.constant 0 : i32
    return %c0_i32, %c0_i32_0 : i32, i32
  }
  func.func @transform_4(%arg0: i32, %arg1: i32) -> (i32, i32) {
    %c0_i32 = arith.constant 0 : i32
    %c0_i32_0 = arith.constant 0 : i32
    %c0_i32_1 = arith.constant 0 : i32
    return %c0_i32, %c0_i32_0 : i32, i32
  }
  func.func @transform_5(%arg0: i32, %arg1: i32) -> (i32, i32, i32, i32) {
    %c0_i32 = arith.constant 0 : i32
    %c0_i32_0 = arith.constant 0 : i32
    %c0_i32_1 = arith.constant 0 : i32
    return %arg0, %c0_i32, %arg1, %c0_i32_0 : i32, i32, i32, i32
  }
}

module attributes {stable_mosaic.version = 11 : i64} {
  func.func @_pool_attn_kernel(%arg0: i32, %arg1: i32, %arg2: memref<1x8x32x8xbf16, #tpu.memory_space<vmem>>, %arg3: memref<3x8x24xbf16, #tpu.memory_space<vmem>>, %arg4: memref<3x8xf32, #tpu.memory_space<vmem>>, %arg5: memref<3x8xf32, #tpu.memory_space<vmem>>, %arg6: memref<8x32xf32, #tpu.memory_space<vmem>>, %arg7: memref<1x32xf32, #tpu.memory_space<vmem>>, %arg8: memref<1x32xf32, #tpu.memory_space<vmem>>, %arg9: memref<1x32xf32, #tpu.memory_space<vmem>>, %arg10: memref<32x24xf32, #tpu.memory_space<vmem>>, %arg11: memref<1x24xf32, #tpu.memory_space<vmem>>, %arg12: memref<1x3x8xf32, #tpu.memory_space<vmem>>, %arg13: memref<1x8xf32, #tpu.memory_space<vmem>>) attributes {dimension_semantics = [#tpu.dimension_semantics<parallel>, #tpu.dimension_semantics<arbitrary>], iteration_bounds = array<i64: 2, 2>, scalar_prefetch = 0 : i64, scratch_operands = 1 : i64, tpu.core_type = #tpu.core_type<tc>, window_params = [{transform_indices = @transform_0, window_bounds = array<i64: 1, 8, 32, 8>}, {pipeline_mode = #tpu.pipeline_mode<synchronous>, transform_indices = @transform_1, window_bounds = array<i64: 3, 8, 24>}, {pipeline_mode = #tpu.pipeline_mode<synchronous>, transform_indices = @transform_2, window_bounds = array<i64: 3, 8>}, {pipeline_mode = #tpu.pipeline_mode<synchronous>, transform_indices = @transform_3, window_bounds = array<i64: 3, 8>}, {pipeline_mode = #tpu.pipeline_mode<synchronous>, transform_indices = @transform_4, window_bounds = array<i64: 8, 32>}, {pipeline_mode = #tpu.pipeline_mode<synchronous>, transform_indices = @transform_5, window_bounds = array<i64: 1, 32>}, {pipeline_mode = #tpu.pipeline_mode<synchronous>, transform_indices = @transform_6, window_bounds = array<i64: 1, 32>}, {pipeline_mode = #tpu.pipeline_mode<synchronous>, transform_indices = @transform_7, window_bounds = array<i64: 1, 32>}, {pipeline_mode = #tpu.pipeline_mode<synchronous>, transform_indices = @transform_8, window_bounds = array<i64: 32, 24>}, {pipeline_mode = #tpu.pipeline_mode<synchronous>, transform_indices = @transform_9, window_bounds = array<i64: 1, 24>}, {transform_indices = @transform_10, window_bounds = array<i64: 1, 3, 8>}]} {
    %c0_i32 = arith.constant 0 : i32
    %0 = arith.cmpi eq, %arg1, %c0_i32 : i32
    %1 = arith.extui %0 : i1 to i32
    %c0_i32_0 = arith.constant 0 : i32
    %2 = arith.cmpi ne, %1, %c0_i32_0 : i32
    scf.if %2 {
      %cst_37 = arith.constant 0.000000e+00 : f32
      %93 = vector.broadcast %cst_37 : f32 to vector<1x8xf32>
      %c0_38 = arith.constant 0 : index
      %c0_39 = arith.constant 0 : index
      %94 = vector.load %arg13[%c0_38, %c0_39] : memref<1x8xf32, #tpu.memory_space<vmem>>, vector<1x8xf32>
      tpu.vector_store %arg13[%c0_38, %c0_39], %93 {strides = array<i32>} : memref<1x8xf32, #tpu.memory_space<vmem>>, vector<1x8xf32>,
    } else {
    }
    %c0 = arith.constant 0 : index
    %c0_1 = arith.constant 0 : index
    %c0_2 = arith.constant 0 : index
    %c0_3 = arith.constant 0 : index
    %3 = vector.load %arg2[%c0, %c0_1, %c0_2, %c0_3] : memref<1x8x32x8xbf16, #tpu.memory_space<vmem>>, vector<1x8x32x8xbf16>
    %4 = vector.shape_cast %3 : vector<1x8x32x8xbf16> to vector<8x32x8xbf16>
    %5 = vector.shape_cast %4 : vector<8x32x8xbf16> to vector<256x8xbf16>
    %c0_4 = arith.constant 0 : index
    %c0_5 = arith.constant 0 : index
    %c0_6 = arith.constant 0 : index
    %6 = vector.load %arg3[%c0_4, %c0_5, %c0_6] : memref<3x8x24xbf16, #tpu.memory_space<vmem>>, vector<1x8x24xbf16>
    %7 = vector.shape_cast %6 : vector<1x8x24xbf16> to vector<8x24xbf16>
    %c0_7 = arith.constant 0 : index
    %c0_8 = arith.constant 0 : index
    %8 = vector.load %arg4[%c0_7, %c0_8] : memref<3x8xf32, #tpu.memory_space<vmem>>, vector<1x8xf32>
    %9 = vector.shape_cast %8 : vector<1x8xf32> to vector<8xf32>
    %10 = vector.shape_cast %9 : vector<8xf32> to vector<1x8xf32>
    %c0_9 = arith.constant 0 : index
    %c0_10 = arith.constant 0 : index
    %11 = vector.load %arg5[%c0_9, %c0_10] : memref<3x8xf32, #tpu.memory_space<vmem>>, vector<1x8xf32>
    %12 = vector.shape_cast %11 : vector<1x8xf32> to vector<8xf32>
    %13 = vector.shape_cast %12 : vector<8xf32> to vector<1x8xf32>
    %cst = arith.constant dense<0.000000e+00> : vector<256x24xf32>
    %14 = tpu.matmul %5, %7, %cst {dimension_numbers = #tpu.dot_dimension_numbers<[1], [0], [0], [1], [0, 0, 1, 1], [], []>} : vector<256x8xbf16>, vector<8x24xbf16>, vector<256x24xf32> -> vector<256x24xf32>
    %15 = vector.extract_strided_slice %14 {offsets = [0, 0], sizes = [256, 8], strides = [1, 1]} : vector<256x24xf32> to vector<256x8xf32>
    %16 = vector.extract_strided_slice %14 {offsets = [0, 8], sizes = [256, 8], strides = [1, 1]} : vector<256x24xf32> to vector<256x8xf32>
    %17 = vector.extract_strided_slice %14 {offsets = [0, 16], sizes = [256, 8], strides = [1, 1]} : vector<256x24xf32> to vector<256x8xf32>
    %cst_11 = arith.constant 0.000000e+00 : f32
    %18 = vector.broadcast %cst_11 : f32 to vector<32x8xf32>
    %19 = vector.extract_strided_slice %15 {offsets = [0, 0], sizes = [224, 8], strides = [1, 1]} : vector<256x8xf32> to vector<224x8xf32>
    %20 = tpu.concatenate %18, %19 in 0 : vector<32x8xf32>, vector<224x8xf32> -> vector<256x8xf32>
    %21 = arith.addf %16, %20 : vector<256x8xf32>
    %22 = vector.extract_strided_slice %17 {offsets = [32, 0], sizes = [224, 8], strides = [1, 1]} : vector<256x8xf32> to vector<224x8xf32>
    %23 = tpu.concatenate %22, %18 in 0 : vector<224x8xf32>, vector<32x8xf32> -> vector<256x8xf32>
    %24 = arith.addf %21, %23 : vector<256x8xf32>
    %25 = vector.broadcast %10 : vector<1x8xf32> to vector<256x8xf32>
    %26 = arith.mulf %24, %25 : vector<256x8xf32>
    %27 = vector.broadcast %13 : vector<1x8xf32> to vector<256x8xf32>
    %28 = arith.addf %26, %27 : vector<256x8xf32>
    %cst_12 = arith.constant 0.000000e+00 : f32
    %29 = vector.broadcast %cst_12 : f32 to vector<256x8xf32>
    %30 = arith.maximumf %28, %29 : vector<256x8xf32>
    %31 = arith.truncf %30 : vector<256x8xf32> to vector<256x8xbf16>
    %c1 = arith.constant 1 : index
    %c0_13 = arith.constant 0 : index
    %c0_14 = arith.constant 0 : index
    %32 = vector.load %arg3[%c1, %c0_13, %c0_14] : memref<3x8x24xbf16, #tpu.memory_space<vmem>>, vector<1x8x24xbf16>
    %33 = vector.shape_cast %32 : vector<1x8x24xbf16> to vector<8x24xbf16>
    %c1_15 = arith.constant 1 : index
    %c0_16 = arith.constant 0 : index
    %34 = vector.load %arg4[%c1_15, %c0_16] : memref<3x8xf32, #tpu.memory_space<vmem>>, vector<1x8xf32>
    %35 = vector.shape_cast %34 : vector<1x8xf32> to vector<8xf32>
    %36 = vector.shape_cast %35 : vector<8xf32> to vector<1x8xf32>
    %c1_17 = arith.constant 1 : index
    %c0_18 = arith.constant 0 : index
    %37 = vector.load %arg5[%c1_17, %c0_18] : memref<3x8xf32, #tpu.memory_space<vmem>>, vector<1x8xf32>
    %38 = vector.shape_cast %37 : vector<1x8xf32> to vector<8xf32>
    %39 = vector.shape_cast %38 : vector<8xf32> to vector<1x8xf32>
    %cst_19 = arith.constant dense<0.000000e+00> : vector<256x24xf32>
    %40 = tpu.matmul %31, %33, %cst_19 {dimension_numbers = #tpu.dot_dimension_numbers<[1], [0], [0], [1], [0, 0, 1, 1], [], []>} : vector<256x8xbf16>, vector<8x24xbf16>, vector<256x24xf32> -> vector<256x24xf32>
    %41 = vector.extract_strided_slice %40 {offsets = [0, 0], sizes = [256, 8], strides = [1, 1]} : vector<256x24xf32> to vector<256x8xf32>
    %42 = vector.extract_strided_slice %40 {offsets = [0, 8], sizes = [256, 8], strides = [1, 1]} : vector<256x24xf32> to vector<256x8xf32>
    %43 = vector.extract_strided_slice %40 {offsets = [0, 16], sizes = [256, 8], strides = [1, 1]} : vector<256x24xf32> to vector<256x8xf32>
    %cst_20 = arith.constant 0.000000e+00 : f32
    %44 = vector.broadcast %cst_20 : f32 to vector<32x8xf32>
    %45 = vector.extract_strided_slice %41 {offsets = [0, 0], sizes = [224, 8], strides = [1, 1]} : vector<256x8xf32> to vector<224x8xf32>
    %46 = tpu.concatenate %44, %45 in 0 : vector<32x8xf32>, vector<224x8xf32> -> vector<256x8xf32>
    %47 = arith.addf %42, %46 : vector<256x8xf32>
    %48 = vector.extract_strided_slice %43 {offsets = [32, 0], sizes = [224, 8], strides = [1, 1]} : vector<256x8xf32> to vector<224x8xf32>
    %49 = tpu.concatenate %48, %44 in 0 : vector<224x8xf32>, vector<32x8xf32> -> vector<256x8xf32>
    %50 = arith.addf %47, %49 : vector<256x8xf32>
    %51 = vector.broadcast %36 : vector<1x8xf32> to vector<256x8xf32>
    %52 = arith.mulf %50, %51 : vector<256x8xf32>
    %53 = vector.broadcast %39 : vector<1x8xf32> to vector<256x8xf32>
    %54 = arith.addf %52, %53 : vector<256x8xf32>
    %cst_21 = arith.constant 0.000000e+00 : f32
    %55 = vector.broadcast %cst_21 : f32 to vector<256x8xf32>
    %56 = arith.maximumf %54, %55 : vector<256x8xf32>
    %57 = arith.truncf %56 : vector<256x8xf32> to vector<256x8xbf16>
    %c2 = arith.constant 2 : index
    %c0_22 = arith.constant 0 : index
    %c0_23 = arith.constant 0 : index
    %58 = vector.load %arg3[%c2, %c0_22, %c0_23] : memref<3x8x24xbf16, #tpu.memory_space<vmem>>, vector<1x8x24xbf16>
    %59 = vector.shape_cast %58 : vector<1x8x24xbf16> to vector<8x24xbf16>
    %c2_24 = arith.constant 2 : index
    %c0_25 = arith.constant 0 : index
    %60 = vector.load %arg4[%c2_24, %c0_25] : memref<3x8xf32, #tpu.memory_space<vmem>>, vector<1x8xf32>
    %61 = vector.shape_cast %60 : vector<1x8xf32> to vector<8xf32>
    %62 = vector.shape_cast %61 : vector<8xf32> to vector<1x8xf32>
    %c2_26 = arith.constant 2 : index
    %c0_27 = arith.constant 0 : index
    %63 = vector.load %arg5[%c2_26, %c0_27] : memref<3x8xf32, #tpu.memory_space<vmem>>, vector<1x8xf32>
    %64 = vector.shape_cast %63 : vector<1x8xf32> to vector<8xf32>
    %65 = vector.shape_cast %64 : vector<8xf32> to vector<1x8xf32>
    %cst_28 = arith.constant dense<0.000000e+00> : vector<256x24xf32>
    %66 = tpu.matmul %57, %59, %cst_28 {dimension_numbers = #tpu.dot_dimension_numbers<[1], [0], [0], [1], [0, 0, 1, 1], [], []>} : vector<256x8xbf16>, vector<8x24xbf16>, vector<256x24xf32> -> vector<256x24xf32>
    %67 = vector.extract_strided_slice %66 {offsets = [0, 0], sizes = [256, 8], strides = [1, 1]} : vector<256x24xf32> to vector<256x8xf32>
    %68 = vector.extract_strided_slice %66 {offsets = [0, 8], sizes = [256, 8], strides = [1, 1]} : vector<256x24xf32> to vector<256x8xf32>
    %69 = vector.extract_strided_slice %66 {offsets = [0, 16], sizes = [256, 8], strides = [1, 1]} : vector<256x24xf32> to vector<256x8xf32>
    %cst_29 = arith.constant 0.000000e+00 : f32
    %70 = vector.broadcast %cst_29 : f32 to vector<32x8xf32>
    %71 = vector.extract_strided_slice %67 {offsets = [0, 0], sizes = [224, 8], strides = [1, 1]} : vector<256x8xf32> to vector<224x8xf32>
    %72 = tpu.concatenate %70, %71 in 0 : vector<32x8xf32>, vector<224x8xf32> -> vector<256x8xf32>
    %73 = arith.addf %68, %72 : vector<256x8xf32>
    %74 = vector.extract_strided_slice %69 {offsets = [32, 0], sizes = [224, 8], strides = [1, 1]} : vector<256x8xf32> to vector<224x8xf32>
    %75 = tpu.concatenate %74, %70 in 0 : vector<224x8xf32>, vector<32x8xf32> -> vector<256x8xf32>
    %76 = arith.addf %73, %75 : vector<256x8xf32>
    %77 = vector.broadcast %62 : vector<1x8xf32> to vector<256x8xf32>
    %78 = arith.mulf %76, %77 : vector<256x8xf32>
    %79 = vector.broadcast %65 : vector<1x8xf32> to vector<256x8xf32>
    %80 = arith.addf %78, %79 : vector<256x8xf32>
    %cst_30 = arith.constant 0.000000e+00 : f32
    %81 = vector.broadcast %cst_30 : f32 to vector<256x8xf32>
    %82 = arith.maximumf %80, %81 : vector<256x8xf32>
    %c0_31 = arith.constant 0 : index
    %c0_32 = arith.constant 0 : index
    %83 = vector.load %arg13[%c0_31, %c0_32] : memref<1x8xf32, #tpu.memory_space<vmem>>, vector<1x8xf32>
    %84 = arith.addf %30, %56 : vector<256x8xf32>
    %85 = arith.addf %84, %82 : vector<256x8xf32>
    %cst_33 = arith.constant dense<0.000000e+00> : vector<8xf32>
    %86 = vector.multi_reduction <add>, %85, %cst_33 [0] : vector<256x8xf32> to vector<8xf32>
    %87 = vector.shape_cast %86 : vector<8xf32> to vector<1x8xf32>
    %88 = arith.addf %83, %87 : vector<1x8xf32>
    %c0_34 = arith.constant 0 : index
    %c0_35 = arith.constant 0 : index
    %89 = vector.load %arg13[%c0_34, %c0_35] : memref<1x8xf32, #tpu.memory_space<vmem>>, vector<1x8xf32>
    tpu.vector_store %arg13[%c0_34, %c0_35], %88 {strides = array<i32>} : memref<1x8xf32, #tpu.memory_space<vmem>>, vector<1x8xf32>,
    %c1_i32 = arith.constant 1 : i32
    %90 = arith.cmpi eq, %arg1, %c1_i32 : i32
    %91 = arith.extui %90 : i1 to i32
    %c0_i32_36 = arith.constant 0 : i32
    %92 = arith.cmpi ne, %91, %c0_i32_36 : i32
    scf.if %92 {
      %c0_37 = arith.constant 0 : index
      %c0_38 = arith.constant 0 : index
      %93 = vector.load %arg13[%c0_37, %c0_38] : memref<1x8xf32, #tpu.memory_space<vmem>>, vector<1x8xf32>
      %cst_39 = arith.constant 6.51041686E-4 : f32
      %94 = vector.broadcast %cst_39 : f32 to vector<1x8xf32>
      %95 = arith.mulf %93, %94 : vector<1x8xf32>
      %c0_40 = arith.constant 0 : index
      %c0_41 = arith.constant 0 : index
      %96 = vector.load %arg6[%c0_40, %c0_41] : memref<8x32xf32, #tpu.memory_space<vmem>>, vector<8x32xf32>
      %cst_42 = arith.constant dense<0.000000e+00> : vector<1x32xf32>
      %97 = tpu.matmul %95, %96, %cst_42 {dimension_numbers = #tpu.dot_dimension_numbers<[1], [0], [0], [1], [0, 0, 1, 1], [], []>} : vector<1x8xf32>, vector<8x32xf32>, vector<1x32xf32> -> vector<1x32xf32>
      %c0_43 = arith.constant 0 : index
      %c0_44 = arith.constant 0 : index
      %98 = vector.load %arg7[%c0_43, %c0_44] : memref<1x32xf32, #tpu.memory_space<vmem>>, vector<1x32xf32>
      %99 = arith.addf %97, %98 : vector<1x32xf32>
      %c0_45 = arith.constant 0 : index
      %c0_46 = arith.constant 0 : index
      %100 = vector.load %arg8[%c0_45, %c0_46] : memref<1x32xf32, #tpu.memory_space<vmem>>, vector<1x32xf32>
      %101 = arith.mulf %99, %100 : vector<1x32xf32>
      %c0_47 = arith.constant 0 : index
      %c0_48 = arith.constant 0 : index
      %102 = vector.load %arg9[%c0_47, %c0_48] : memref<1x32xf32, #tpu.memory_space<vmem>>, vector<1x32xf32>
      %103 = arith.addf %101, %102 : vector<1x32xf32>
      %cst_49 = arith.constant 0.000000e+00 : f32
      %104 = vector.broadcast %cst_49 : f32 to vector<1x32xf32>
      %105 = arith.maximumf %103, %104 : vector<1x32xf32>
      %c0_50 = arith.constant 0 : index
      %c0_51 = arith.constant 0 : index
      %106 = vector.load %arg10[%c0_50, %c0_51] : memref<32x24xf32, #tpu.memory_space<vmem>>, vector<32x24xf32>
      %cst_52 = arith.constant dense<0.000000e+00> : vector<1x24xf32>
      %107 = tpu.matmul %105, %106, %cst_52 {dimension_numbers = #tpu.dot_dimension_numbers<[1], [0], [0], [1], [0, 0, 1, 1], [], []>} : vector<1x32xf32>, vector<32x24xf32>, vector<1x24xf32> -> vector<1x24xf32>
      %c0_53 = arith.constant 0 : index
      %c0_54 = arith.constant 0 : index
      %108 = vector.load %arg11[%c0_53, %c0_54] : memref<1x24xf32, #tpu.memory_space<vmem>>, vector<1x24xf32>
      %109 = arith.addf %107, %108 : vector<1x24xf32>
      %cst_55 = arith.constant 1.000000e+00 : f32
      %110 = vector.broadcast %cst_55 : f32 to vector<1x24xf32>
      %111 = arith.mulf %109, %110 : vector<1x24xf32>
      %112 = vector.extract_strided_slice %111 {offsets = [0, 0], sizes = [1, 8], strides = [1, 1]} : vector<1x24xf32> to vector<1x8xf32>
      %113 = vector.extract_strided_slice %111 {offsets = [0, 8], sizes = [1, 8], strides = [1, 1]} : vector<1x24xf32> to vector<1x8xf32>
      %114 = vector.extract_strided_slice %111 {offsets = [0, 16], sizes = [1, 8], strides = [1, 1]} : vector<1x24xf32> to vector<1x8xf32>
      %115 = arith.maximumf %112, %113 : vector<1x8xf32>
      %116 = arith.maximumf %115, %114 : vector<1x8xf32>
      %117 = arith.subf %112, %116 : vector<1x8xf32>
      %118 = math.exp %117 : vector<1x8xf32>
      %119 = arith.subf %113, %116 : vector<1x8xf32>
      %120 = math.exp %119 : vector<1x8xf32>
      %121 = arith.subf %114, %116 : vector<1x8xf32>
      %122 = math.exp %121 : vector<1x8xf32>
      %123 = arith.addf %118, %120 : vector<1x8xf32>
      %124 = arith.addf %123, %122 : vector<1x8xf32>
      %cst_56 = arith.constant 1.000000e+00 : f32
      %125 = vector.broadcast %cst_56 : f32 to vector<1x8xf32>
      %126 = arith.divf %125, %124 : vector<1x8xf32>
      %127 = arith.mulf %118, %126 : vector<1x8xf32>
      %128 = arith.mulf %120, %126 : vector<1x8xf32>
      %129 = arith.mulf %122, %126 : vector<1x8xf32>
      %130 = tpu.concatenate %127, %128, %129 in 0 : vector<1x8xf32>, vector<1x8xf32>, vector<1x8xf32> -> vector<3x8xf32>
      %c0_57 = arith.constant 0 : index
      %c0_58 = arith.constant 0 : index
      %c0_59 = arith.constant 0 : index
      %131 = vector.load %arg12[%c0_57, %c0_58, %c0_59] : memref<1x3x8xf32, #tpu.memory_space<vmem>>, vector<1x3x8xf32>
      %132 = vector.shape_cast %131 : vector<1x3x8xf32> to vector<3x8xf32>
      %133 = vector.shape_cast %130 : vector<3x8xf32> to vector<1x3x8xf32>
      tpu.vector_store %arg12[%c0_57, %c0_58, %c0_59], %133 {strides = array<i32>} : memref<1x3x8xf32, #tpu.memory_space<vmem>>, vector<1x3x8xf32>,
    } else {
    }
    return
  }
  func.func @transform_0(%arg0: i32, %arg1: i32) -> (i32, i32, i32, i32) {
    %c0_i32 = arith.constant 0 : i32
    %c0_i32_0 = arith.constant 0 : i32
    %c0_i32_1 = arith.constant 0 : i32
    return %arg0, %c0_i32, %arg1, %c0_i32_0 : i32, i32, i32, i32
  }
  func.func @transform_1(%arg0: i32, %arg1: i32) -> (i32, i32, i32) {
    %c0_i32 = arith.constant 0 : i32
    %c0_i32_0 = arith.constant 0 : i32
    %c0_i32_1 = arith.constant 0 : i32
    %c0_i32_2 = arith.constant 0 : i32
    return %c0_i32, %c0_i32_0, %c0_i32_1 : i32, i32, i32
  }
  func.func @transform_2(%arg0: i32, %arg1: i32) -> (i32, i32) {
    %c0_i32 = arith.constant 0 : i32
    %c0_i32_0 = arith.constant 0 : i32
    %c0_i32_1 = arith.constant 0 : i32
    return %c0_i32, %c0_i32_0 : i32, i32
  }
  func.func @transform_3(%arg0: i32, %arg1: i32) -> (i32, i32) {
    %c0_i32 = arith.constant 0 : i32
    %c0_i32_0 = arith.constant 0 : i32
    %c0_i32_1 = arith.constant 0 : i32
    return %c0_i32, %c0_i32_0 : i32, i32
  }
  func.func @transform_4(%arg0: i32, %arg1: i32) -> (i32, i32) {
    %c0_i32 = arith.constant 0 : i32
    %c0_i32_0 = arith.constant 0 : i32
    %c0_i32_1 = arith.constant 0 : i32
    return %c0_i32, %c0_i32_0 : i32, i32
  }
  func.func @transform_5(%arg0: i32, %arg1: i32) -> (i32, i32) {
    %c0_i32 = arith.constant 0 : i32
    %c0_i32_0 = arith.constant 0 : i32
    %c0_i32_1 = arith.constant 0 : i32
    return %c0_i32, %c0_i32_0 : i32, i32
  }
  func.func @transform_6(%arg0: i32, %arg1: i32) -> (i32, i32) {
    %c0_i32 = arith.constant 0 : i32
    %c0_i32_0 = arith.constant 0 : i32
    %c0_i32_1 = arith.constant 0 : i32
    return %c0_i32, %c0_i32_0 : i32, i32
  }
  func.func @transform_7(%arg0: i32, %arg1: i32) -> (i32, i32) {
    %c0_i32 = arith.constant 0 : i32
    %c0_i32_0 = arith.constant 0 : i32
    %c0_i32_1 = arith.constant 0 : i32
    return %c0_i32, %c0_i32_0 : i32, i32
  }
  func.func @transform_8(%arg0: i32, %arg1: i32) -> (i32, i32) {
    %c0_i32 = arith.constant 0 : i32
    %c0_i32_0 = arith.constant 0 : i32
    %c0_i32_1 = arith.constant 0 : i32
    return %c0_i32, %c0_i32_0 : i32, i32
  }
  func.func @transform_9(%arg0: i32, %arg1: i32) -> (i32, i32) {
    %c0_i32 = arith.constant 0 : i32
    %c0_i32_0 = arith.constant 0 : i32
    %c0_i32_1 = arith.constant 0 : i32
    return %c0_i32, %c0_i32_0 : i32, i32
  }
  func.func @transform_10(%arg0: i32, %arg1: i32) -> (i32, i32, i32) {
    %c0_i32 = arith.constant 0 : i32
    %c0_i32_0 = arith.constant 0 : i32
    %c0_i32_1 = arith.constant 0 : i32
    return %arg0, %c0_i32, %c0_i32_0 : i32, i32, i32
  }
}

</mosaic_0001>

<llo_original>
// kernel: multiscale_temporal_module.3
$region0: #{multiscale_temporal_module.3}
  #allocation0 [shape = 'u32[]', space=smem, size = 0x4, offset = 0x4, fixed_abs, tag = 'smem constant byte address 0x4 - core index']
  #allocation1 [shape = 'u32[144,128]{1,0:T(1,128)}', space=vmem, size = 0x12000, scoped, tag = 'internal scratch']
  #allocation12 [shape = 's32[]', space=sflag, size = 0x4, offset = 0, fixed_abs, tag = 'sflag constant byte address 0x0 - dummy sync flag']
  #allocation14 [shape = 's32[]', space=sflag, size = 0x4, offset = 0, fixed_abs, tag = 'sflag constant byte address 0x0 - dummy sync flag']
  %s0 = inlined_call_operand.hbm [shape: f32[2,3,8], index: 0, kind: input, shape index: {}]
  %s1 = inlined_call_operand.hbm [shape: bf16[2,8,64,8], index: 1, kind: input, shape index: {}]
  %s2 = inlined_call_operand.hbm [shape: bf16[3,8,24], index: 2, kind: input, shape index: {}]
  %s3 = inlined_call_operand.hbm [shape: f32[3,8], index: 3, kind: input, shape index: {}]
  %s4 = inlined_call_operand.hbm [shape: f32[3,8], index: 4, kind: input, shape index: {}]
  %s5 = inlined_call_operand.hbm [shape: f32[2,8,64,8], index: 5, kind: output, shape index: {}]
  %s6 = sld [smem:[#allocation0]]
  $region73: #{multiscale_temporal_module.3} parent=0
    _
  %s8 = ssub.s32 1, %s6
  %s9 = scalar_select 0, %s8, %s6
  $region1: #{multiscale_temporal_module.3} parent=0
    #allocation2 [shape = 'u8[4096]{0}', space=vmem, size = 0x1000, scoped, tag = 'input window, operand 0']
    #allocation3 [shape = 's32[2]{0}', space=sflag, size = 0x8, scoped, tag = 'scoped memory for multiscale_temporal_module.3']
    #allocation4 [shape = 's32[2]{0}', space=sflag, size = 0x8, scoped, tag = 'scoped memory for multiscale_temporal_module.3']
    #allocation5 [shape = 'u8[131072]{0}', space=vmem, size = 0x20000, scoped, tag = 'input window, operand 1']
    #allocation6 [shape = 's32[2]{0}', space=sflag, size = 0x8, scoped, tag = 'scoped memory for multiscale_temporal_module.3']
    #allocation7 [shape = 'u8[6144]{0}', space=vmem, size = 0x1800, scoped, tag = 'input window, operand 2, single buffered']
    #allocation8 [shape = 'u8[2048]{0}', space=vmem, size = 0x800, scoped, tag = 'input window, operand 3, single buffered']
    #allocation9 [shape = 's32[1]{0}', space=sflag, size = 0x4, scoped, tag = 'scoped memory for multiscale_temporal_module.3']
    #allocation10 [shape = 'u8[2048]{0}', space=vmem, size = 0x800, scoped, tag = 'input window, operand 4, single buffered']
    #allocation11 [shape = 'u8[262144]{0}', space=vmem, size = 0x40000, scoped, tag = 'output window, operand 0']
    %10 = vsyncpa [#allocation3], 0
    %s11 = scalar_lea.sflag [#allocation3], 1
    %12 = vsyncpa %s11, 0
    %13 = vsyncpa [#allocation6], 0
    %s14 = scalar_lea.sflag [#allocation6], 1
    %15 = vsyncpa %s14, 0
    %16 = vsyncpa [#allocation9], 0
    %17 = vsyncpa [#allocation4], 0
    %s18 = scalar_lea.sflag [#allocation4], 1
    %19 = vsyncpa %s18, 0
    loop: start=0, step=1, limit=6
    $region2: #{multiscale_temporal_module.3} parent=1 // loop_pre_header
      _
    $region3: #{multiscale_temporal_module.3} parent=1 // loop_header
      %s21 = sphi 0, %s25
      %p22 = scmp.ge.s32.totalorder %s21, 6
      %s28 = sphi 0, %s40
      %s29 = sphi 0, %s36
      %s30 = sphi 0, %s28
      %s31 = sphi 0, %s29
      %s32 = sphi 0, %s30
      %s33 = sphi 0, %s31
      %s43 = sphi 0, %s45
      %s46 = sphi 0, %s43
      %s47 = sphi 0, %s46
      %s63 = sphi 0, %s47
      %s71 = sphi 0, %s73
      %s74 = sphi 0, %s71
      %s75 = sphi 0, %s74
      %s91 = sphi 0, %s75
      %s95 = sphi 0, %s95
      %s97 = sphi 0, %s95
      %s98 = sphi 0, %s97
      %s112 = sphi 0, %s98
      %s116 = sphi 0, %s116
      %s118 = sphi 0, %s116
      %s119 = sphi 0, %s118
      %s133 = sphi 0, %s119
      %s137 = sphi 0, %s137
      %s139 = sphi 0, %s137
      %s140 = sphi 0, %s139
      %s154 = sphi 0, %s140
      %s162 = sphi 0, %s164
      %s165 = sphi 0, %s162
      %s166 = sphi 0, %s165
      %s182 = sphi 0, %s166
    $region4: #{multiscale_temporal_module.3} parent=1 // loop_header_branch
      %24 = sbr.rel (%p22) target = $region8
    $region5: #{multiscale_temporal_module.3} parent=1 // loop_body
      %s26 = ssub.s32 %s21, 1
      %s27 = ssub.s32 %s21, 2
      %s34 = sadd.s32 1, %s29
      %p35 = scmp.ge.s32.totalorder %s34, 2
      %s36 = scalar_select %p35, 0, %s34
      %s37 = sadd.s32 1, %s28
      %s38 = scalar_select %p35, %s37, %s28
      %p39 = scmp.ge.s32.totalorder %s38, 2
      %s40 = scalar_select %p39, 0, %s38
      %s41 = ssub.s32 %s28, %s40
      %p42 = scmp.eq.s32.totalorder %s41, 0
      %s44 = sadd.s32 %s43, 1
      %s45 = scalar_select %p42, %s43, %s44
      %p48 = pneg %p42
      %p49 = scmp.eq.s32.totalorder %s21, 3
      %p50 = por %p48, %p49
      %p51 = scmp.ne.s32.totalorder %s43, %s46
      %p52 = scmp.eq.s32.totalorder %s21, 0
      %p53 = por %p51, %p52
      %p54 = scmp.ne.s32.totalorder %s43, %s46
      %p55 = scmp.eq.s32.totalorder %s26, 3
      %p56 = por %p54, %p55
      %p57 = scmp.ne.s32.totalorder %s46, %s47
      %p58 = scmp.eq.s32.totalorder %s26, 0
      %p59 = por %p57, %p58
      %p60 = scmp.ne.s32.totalorder %s46, %s47
      %p61 = scmp.eq.s32.totalorder %s27, 3
      %p62 = por %p60, %p61
      %p64 = scmp.ne.s32.totalorder %s47, %s63
      %p65 = scmp.eq.s32.totalorder %s27, 0
      %p66 = por %p64, %p65
      %s67 = ssub.s32 %s28, %s40
      %s68 = ssub.s32 %s29, %s36
      %s69 = sor.u32 %s67, %s68
      %p70 = scmp.eq.s32.totalorder %s69, 0
      %s72 = sadd.s32 %s71, 1
      %s73 = scalar_select %p70, %s71, %s72
      %p76 = pneg %p70
      %p77 = scmp.eq.s32.totalorder %s21, 3
      %p78 = por %p76, %p77
      %p79 = scmp.ne.s32.totalorder %s71, %s74
      %p80 = scmp.eq.s32.totalorder %s21, 0
      %p81 = por %p79, %p80
      %p82 = scmp.ne.s32.totalorder %s71, %s74
      %p83 = scmp.eq.s32.totalorder %s26, 3
      %p84 = por %p82, %p83
      %p85 = scmp.ne.s32.totalorder %s74, %s75
      %p86 = scmp.eq.s32.totalorder %s26, 0
      %p87 = por %p85, %p86
      %p88 = scmp.ne.s32.totalorder %s74, %s75
      %p89 = scmp.eq.s32.totalorder %s27, 3
      %p90 = por %p88, %p89
      %p92 = scmp.ne.s32.totalorder %s75, %s91
      %p93 = scmp.eq.s32.totalorder %s27, 0
      %p94 = por %p92, %p93
      %s96 = sadd.s32 %s95, 1
      %p99 = scmp.eq.s32.totalorder %s21, 3
      %p100 = scmp.ne.s32.totalorder %s95, %s97
      %p101 = scmp.eq.s32.totalorder %s21, 0
      %p102 = por %p100, %p101
      %p103 = scmp.ne.s32.totalorder %s95, %s97
      %p104 = scmp.eq.s32.totalorder %s26, 3
      %p105 = por %p103, %p104
      %p106 = scmp.ne.s32.totalorder %s97, %s98
      %p107 = scmp.eq.s32.totalorder %s26, 0
      %p108 = por %p106, %p107
      %p109 = scmp.ne.s32.totalorder %s97, %s98
      %p110 = scmp.eq.s32.totalorder %s27, 3
      %p111 = por %p109, %p110
      %p113 = scmp.ne.s32.totalorder %s98, %s112
      %p114 = scmp.eq.s32.totalorder %s27, 0
      %p115 = por %p113, %p114
      %s117 = sadd.s32 %s116, 1
      %p120 = scmp.eq.s32.totalorder %s21, 3
      %p121 = scmp.ne.s32.totalorder %s116, %s118
      %p122 = scmp.eq.s32.totalorder %s21, 0
      %p123 = por %p121, %p122
      %p124 = scmp.ne.s32.totalorder %s116, %s118
      %p125 = scmp.eq.s32.totalorder %s26, 3
      %p126 = por %p124, %p125
      %p127 = scmp.ne.s32.totalorder %s118, %s119
      %p128 = scmp.eq.s32.totalorder %s26, 0
      %p129 = por %p127, %p128
      %p130 = scmp.ne.s32.totalorder %s118, %s119
      %p131 = scmp.eq.s32.totalorder %s27, 3
      %p132 = por %p130, %p131
      %p134 = scmp.ne.s32.totalorder %s119, %s133
      %p135 = scmp.eq.s32.totalorder %s27, 0
      %p136 = por %p134, %p135
      %s138 = sadd.s32 %s137, 1
      %p141 = scmp.eq.s32.totalorder %s21, 3
      %p142 = scmp.ne.s32.totalorder %s137, %s139
      %p143 = scmp.eq.s32.totalorder %s21, 0
      %p144 = por %p142, %p143
      %p145 = scmp.ne.s32.totalorder %s137, %s139
      %p146 = scmp.eq.s32.totalorder %s26, 3
      %p147 = por %p145, %p146
      %p148 = scmp.ne.s32.totalorder %s139, %s140
      %p149 = scmp.eq.s32.totalorder %s26, 0
      %p150 = por %p148, %p149
      %p151 = scmp.ne.s32.totalorder %s139, %s140
      %p152 = scmp.eq.s32.totalorder %s27, 3
      %p153 = por %p151, %p152
      %p155 = scmp.ne.s32.totalorder %s140, %s154
      %p156 = scmp.eq.s32.totalorder %s27, 0
      %p157 = por %p155, %p156
      %s158 = ssub.s32 %s28, %s40
      %s159 = ssub.s32 %s29, %s36
      %s160 = sor.u32 %s158, %s159
      %p161 = scmp.eq.s32.totalorder %s160, 0
      %s163 = sadd.s32 %s162, 1
      %s164 = scalar_select %p161, %s162, %s163
      %p167 = pneg %p161
      %p168 = scmp.eq.s32.totalorder %s21, 3
      %p169 = por %p167, %p168
      %p170 = scmp.ne.s32.totalorder %s162, %s165
      %p171 = scmp.eq.s32.totalorder %s21, 0
      %p172 = por %p170, %p171
      %p173 = scmp.ne.s32.totalorder %s162, %s165
      %p174 = scmp.eq.s32.totalorder %s26, 3
      %p175 = por %p173, %p174
      %p176 = scmp.ne.s32.totalorder %s165, %s166
      %p177 = scmp.eq.s32.totalorder %s26, 0
      %p178 = por %p176, %p177
      %p179 = scmp.ne.s32.totalorder %s165, %s166
      %p180 = scmp.eq.s32.totalorder %s27, 3
      %p181 = por %p179, %p180
      %p183 = scmp.ne.s32.totalorder %s166, %s182
      %p184 = scmp.eq.s32.totalorder %s27, 0
      %p185 = por %p183, %p184
      %p186 = scmp.le.s32.totalorder 1, %s21
      %p187 = scmp.lt.s32.totalorder %s21, 5
      %p188 = pnand %p186, %p187
      %p189 = pneg %p188
      // Predicated region
      $region9: #{multiscale_temporal_module.3} parent=5 // pred_check
        _
      $region10: #{multiscale_temporal_module.3} parent=5 // pred_check_branch
        %191 = sbr.rel (%p188) target = $region12
      $region11: #{multiscale_temporal_module.3} parent=5 // pred_region
        %s192 = ssub.s32 %s21, 1
        // Predicated region
        $region13: #{multiscale_temporal_module.3} parent=11 // pred_check
          %p193 = pneg %p108
        $region14: #{multiscale_temporal_module.3} parent=11 // pred_check_branch
          %195 = sbr.rel (%p193) target = $region16
        $region15: #{multiscale_temporal_module.3} parent=11 // pred_region
          %s197 = ssub.s32 192, 192
          %198 = vsyncadd [#allocation6], %s197
          %s199 = sshll.u32 [#allocation7], 4
          %s200 = int_to_ptr.vmem [resolvable:$true] %s199
          %205 = dma.hbm_to_vmem [thread:$0]  %s2, 192, %s200, [#allocation6], 64, 64, 4
        $region16: #{multiscale_temporal_module.3} parent=11 // pred_fallthru
          _
        // Predicated region
        $region17: #{multiscale_temporal_module.3} parent=11 // pred_check
          %p206 = pneg %p129
        $region18: #{multiscale_temporal_module.3} parent=11 // pred_check_branch
          %208 = sbr.rel (%p206) target = $region20
        $region19: #{multiscale_temporal_module.3} parent=11 // pred_region
          %s210 = ssub.s32 64, 64
          %211 = vsyncadd [#allocation9], %s210
          %s213 = sshll.u32 [#allocation8], 4
          %s214 = int_to_ptr.vmem [resolvable:$true] %s213
          %216 = dma.hbm_to_vmem [thread:$0]  %s3, 64, %s214, [#allocation9]
        $region20: #{multiscale_temporal_module.3} parent=11 // pred_fallthru
          _
        // Predicated region
        $region21: #{multiscale_temporal_module.3} parent=11 // pred_check
          %p217 = pneg %p150
        $region22: #{multiscale_temporal_module.3} parent=11 // pred_check_branch
          %219 = sbr.rel (%p217) target = $region24
        $region23: #{multiscale_temporal_module.3} parent=11 // pred_region
          %s221 = ssub.s32 64, 64
          %222 = vsyncadd [#allocation9], %s221
          %s224 = sshll.u32 [#allocation10], 4
          %s225 = int_to_ptr.vmem [resolvable:$true] %s224
          %227 = dma.hbm_to_vmem [thread:$0]  %s4, 64, %s225, [#allocation9]
        $region24: #{multiscale_temporal_module.3} parent=11 // pred_fallthru
          _
      $region12: #{multiscale_temporal_module.3} parent=5 // pred_fallthru
        _
      %p228 = scmp.lt.s32.totalorder %s21, 4
      // Predicated region
      $region25: #{multiscale_temporal_module.3} parent=5 // pred_check
        %p229 = pneg %p228
      $region26: #{multiscale_temporal_module.3} parent=5 // pred_check_branch
        %231 = sbr.rel (%p229) target = $region28
      $region27: #{multiscale_temporal_module.3} parent=5 // pred_region
        // Predicated region
        $region29: #{multiscale_temporal_module.3} parent=27 // pred_check
          %p232 = pneg %p53
        $region30: #{multiscale_temporal_module.3} parent=27 // pred_check_branch
          %234 = sbr.rel (%p232) target = $region32
        $region31: #{multiscale_temporal_module.3} parent=27 // pred_region
          %s235 = sand.u32 %s43, 1
          %s236 = scalar_lea.sflag [#allocation3], %s235
          %s237 = sand.u32 %s43, 1
          %s238 = smul.addr %s237, 4
          %s239 = scalar_lea.vmem [#allocation2], %s238
          %s241 = ssub.s32 64, 64
          %242 = vsyncadd %s236, %s241
          %s243 = smul.addr %s28, 64
          %s244 = scalar_lea.hbm %s0, %s243
          %s246 = sshll.u32 %s239, 4
          %s247 = int_to_ptr.vmem [resolvable:$true] %s246
          %249 = dma.hbm_to_vmem [thread:$0]  %s244, 64, %s247, %s236
        $region32: #{multiscale_temporal_module.3} parent=27 // pred_fallthru
          _
        // Predicated region
        $region33: #{multiscale_temporal_module.3} parent=27 // pred_check
          %p250 = pneg %p81
        $region34: #{multiscale_temporal_module.3} parent=27 // pred_check_branch
          %252 = sbr.rel (%p250) target = $region36
        $region35: #{multiscale_temporal_module.3} parent=27 // pred_region
          #allocation13 [shape = 'u32[6]{0}', space=smem, size = 0x18, scoped, tag = 'DMA stride descriptor']
          %s253 = sand.u32 %s21, 1
          %s254 = scalar_lea.sflag [#allocation6], %s253
          %s255 = sand.u32 %s71, 1
          %s256 = smul.addr %s255, 128
          %s257 = scalar_lea.vmem [#allocation5], %s256
          %s258 = smul.u32 4, %s29
          %s260 = ssub.s32 2048, 2048
          %261 = vsyncadd %s254, %s260
          %s262 = smul.addr %s28, 64
          %s263 = sadd.s32 %s258, %s262
          %s264 = smul.addr %s263, 64
          %s265 = scalar_lea.hbm %s1, %s264
          %s267 = sshll.u32 1, 14
          %s268 = sxor.u32 4294967295, %s267
          %s270 = sld [smem:[#allocation0]]
          %s271 = sadd.s32 2, %s270
          %s273 = sshll.u32 7, 26
          %s274 = sxor.u32 4294967295, %s273
          %s275 = sand.u32 0, %s274
          %s276 = sshll.u32 %s271, 26
          %s277 = sor.u32 %s275, %s276
          %s278 = sshll.u32 %s257, 4
          %s279 = int_to_ptr.vmem [resolvable:$true] %s278
          %285 = sst [smem:[#allocation13]] 512
          %s286 = scalar_lea.smem [#allocation13], 1
          %287 = sst [smem:[%s286]] 256
          %s288 = scalar_lea.smem [#allocation13], 2
          %289 = sst [smem:[%s288]] 4
          %s290 = scalar_lea.smem [#allocation13], 3
          %291 = sst [smem:[%s290]] 64
          %s292 = scalar_lea.smem [#allocation13], 4
          %293 = sst [smem:[%s292]] 64
          %s294 = scalar_lea.smem [#allocation13], 5
          %295 = sst [smem:[%s294]] 4
          %297 = dma.general %s265, 2048, %s279, %s254, [#allocation12], [#allocation13], %s277, 0
        $region36: #{multiscale_temporal_module.3} parent=27 // pred_fallthru
          _
      $region28: #{multiscale_temporal_module.3} parent=5 // pred_fallthru
        _
      %p298 = scmp.le.s32.totalorder 1, %s21
      %p299 = scmp.lt.s32.totalorder %s21, 5
      %p300 = pnand %p298, %p299
      %p301 = pneg %p300
      // Predicated region
      $region37: #{multiscale_temporal_module.3} parent=5 // pred_check
        _
      $region38: #{multiscale_temporal_module.3} parent=5 // pred_check_branch
        %303 = sbr.rel (%p300) target = $region40
      $region39: #{multiscale_temporal_module.3} parent=5 // pred_region
        %s304 = ssub.s32 %s21, 1
        %s305 = sand.u32 %s46, 1
        %s306 = scalar_lea.sflag [#allocation3], %s305
        %s307 = sand.u32 %s46, 1
        %s308 = smul.addr %s307, 4
        %s309 = scalar_lea.vmem [#allocation2], %s308
        // Predicated region
        $region41: #{multiscale_temporal_module.3} parent=39 // pred_check
          %p310 = pneg %p59
        $region42: #{multiscale_temporal_module.3} parent=39 // pred_check_branch
          %312 = sbr.rel (%p310) target = $region44
        $region43: #{multiscale_temporal_module.3} parent=39 // pred_region
          %313 = dma.done %s306, 64
        $region44: #{multiscale_temporal_module.3} parent=39 // pred_fallthru
          _
        %s314 = sand.u32 %s26, 1
        %s315 = scalar_lea.sflag [#allocation6], %s314
        %s316 = sand.u32 %s74, 1
        %s317 = smul.addr %s316, 128
        %s318 = scalar_lea.vmem [#allocation5], %s317
        // Predicated region
        $region45: #{multiscale_temporal_module.3} parent=39 // pred_check
          %p319 = pneg %p87
        $region46: #{multiscale_temporal_module.3} parent=39 // pred_check_branch
          %321 = sbr.rel (%p319) target = $region48
        $region47: #{multiscale_temporal_module.3} parent=39 // pred_region
          %322 = dma.done %s315, 2048
        $region48: #{multiscale_temporal_module.3} parent=39 // pred_fallthru
          _
        // Predicated region
        $region49: #{multiscale_temporal_module.3} parent=39 // pred_check
          %p323 = pneg %p108
        $region50: #{multiscale_temporal_module.3} parent=39 // pred_check_branch
          %325 = sbr.rel (%p323) target = $region52
        $region51: #{multiscale_temporal_module.3} parent=39 // pred_region
          %326 = dma.done [#allocation6], 192
        $region52: #{multiscale_temporal_module.3} parent=39 // pred_fallthru
          _
        // Predicated region
        $region53: #{multiscale_temporal_module.3} parent=39 // pred_check
          %p327 = pneg %p129
        $region54: #{multiscale_temporal_module.3} parent=39 // pred_check_branch
          %329 = sbr.rel (%p327) target = $region56
        $region55: #{multiscale_temporal_module.3} parent=39 // pred_region
          %330 = dma.done [#allocation9], 64
        $region56: #{multiscale_temporal_module.3} parent=39 // pred_fallthru
          _
        // Predicated region
        $region57: #{multiscale_temporal_module.3} parent=39 // pred_check
          %p331 = pneg %p150
        $region58: #{multiscale_temporal_module.3} parent=39 // pred_check_branch
          %333 = sbr.rel (%p331) target = $region60
        $region59: #{multiscale_temporal_module.3} parent=39 // pred_region
          %334 = dma.done [#allocation9], 64
        $region60: #{multiscale_temporal_module.3} parent=39 // pred_fallthru
          _
        %s335 = sand.u32 %s46, 1
        %s336 = scalar_lea.sflag [#allocation3], %s335
        %s337 = sand.u32 %s46, 1
        %s338 = smul.addr %s337, 4
        %s339 = scalar_lea.vmem [#allocation2], %s338
        %p340 = pneg %p59
        %p341 = pneg %p56
        %s342 = sand.u32 %s26, 1
        %s343 = scalar_lea.sflag [#allocation6], %s342
        %s344 = sand.u32 %s74, 1
        %s345 = smul.addr %s344, 128
        %s346 = scalar_lea.vmem [#allocation5], %s345
        %p347 = pneg %p87
        %p348 = pneg %p84
        %p349 = pneg %p108
        %p350 = pneg %p105
        %p351 = pneg %p129
        %p352 = pneg %p126
        %p353 = pneg %p150
        %p354 = pneg %p147
        %p355 = pneg %p178
        %p356 = pneg %p175
        %s357 = sand.u32 %s165, 1
        %s358 = scalar_lea.sflag [#allocation4], %s357
        %s359 = sand.u32 %s165, 1
        %s360 = smul.addr %s359, 256
        %s361 = scalar_lea.vmem [#allocation11], %s360
        %s362 = smul.u32 4, %s31
        %s363 = smul.u32 4, %s31
        %v365 = vld [vmem:[%s318] sm:$0xf]
        %v366 = vld [vmem:[%s318 + $0x4] sm:$0xf]
        %v367 = vld [vmem:[%s318 + $0x8] sm:$0xf]
        %v368 = vld [vmem:[%s318 + $0xc] sm:$0xf]
        %v369 = vld [vmem:[%s318 + $0x10] sm:$0xf]
        %v370 = vld [vmem:[%s318 + $0x14] sm:$0xf]
        %v371 = vld [vmem:[%s318 + $0x18] sm:$0xf]
        %v372 = vld [vmem:[%s318 + $0x1c] sm:$0xf]
        %v373 = vld [vmem:[%s318 + $0x20] sm:$0xf]
        %v374 = vld [vmem:[%s318 + $0x24] sm:$0xf]
        %v375 = vld [vmem:[%s318 + $0x28] sm:$0xf]
        %v376 = vld [vmem:[%s318 + $0x2c] sm:$0xf]
        %v377 = vld [vmem:[%s318 + $0x30] sm:$0xf]
        %v378 = vld [vmem:[%s318 + $0x34] sm:$0xf]
        %v379 = vld [vmem:[%s318 + $0x38] sm:$0xf]
        %v380 = vld [vmem:[%s318 + $0x3c] sm:$0xf]
        %v381 = vld [vmem:[%s318 + $0x40] sm:$0xf]
        %v382 = vld [vmem:[%s318 + $0x44] sm:$0xf]
        %v383 = vld [vmem:[%s318 + $0x48] sm:$0xf]
        %v384 = vld [vmem:[%s318 + $0x4c] sm:$0xf]
        %v385 = vld [vmem:[%s318 + $0x50] sm:$0xf]
        %v386 = vld [vmem:[%s318 + $0x54] sm:$0xf]
        %v387 = vld [vmem:[%s318 + $0x58] sm:$0xf]
        %v388 = vld [vmem:[%s318 + $0x5c] sm:$0xf]
        %v389 = vld [vmem:[%s318 + $0x60] sm:$0xf]
        %v390 = vld [vmem:[%s318 + $0x64] sm:$0xf]
        %v391 = vld [vmem:[%s318 + $0x68] sm:$0xf]
        %v392 = vld [vmem:[%s318 + $0x6c] sm:$0xf]
        %v393 = vld [vmem:[%s318 + $0x70] sm:$0xf]
        %v394 = vld [vmem:[%s318 + $0x74] sm:$0xf]
        %v395 = vld [vmem:[%s318 + $0x78] sm:$0xf]
        %v396 = vld [vmem:[%s318 + $0x7c] sm:$0xf]
        %v397 = vld [vmem:[#allocation7] sm:$0xf]
        %v398 = vld [vmem:[#allocation8] sm:$0x1]
        %v399 = vld [vmem:[#allocation10] sm:$0x1]
        %v432 = vunpack.c.l.b16 %v365
        %v433 = vunpack.c.l.b16 %v366
        %v434 = vunpack.c.l.b16 %v367
        %v435 = vunpack.c.l.b16 %v368
        %v436 = vunpack.c.l.b16 %v369
        %v437 = vunpack.c.l.b16 %v370
        %v438 = vunpack.c.l.b16 %v371
        %v439 = vunpack.c.l.b16 %v372
        %v440 = vunpack.c.l.b16 %v373
        %v441 = vunpack.c.l.b16 %v374
        %v442 = vunpack.c.l.b16 %v375
        %v443 = vunpack.c.l.b16 %v376
        %v444 = vunpack.c.l.b16 %v377
        %v445 = vunpack.c.l.b16 %v378
        %v446 = vunpack.c.l.b16 %v379
        %v447 = vunpack.c.l.b16 %v380
        %v448 = vunpack.c.l.b16 %v381
        %v449 = vunpack.c.l.b16 %v382
        %v450 = vunpack.c.l.b16 %v383
        %v451 = vunpack.c.l.b16 %v384
        %v452 = vunpack.c.l.b16 %v385
        %v453 = vunpack.c.l.b16 %v386
        %v454 = vunpack.c.l.b16 %v387
        %v455 = vunpack.c.l.b16 %v388
        %v456 = vunpack.c.l.b16 %v389
        %v457 = vunpack.c.l.b16 %v390
        %v458 = vunpack.c.l.b16 %v391
        %v459 = vunpack.c.l.b16 %v392
        %v460 = vunpack.c.l.b16 %v393
        %v461 = vunpack.c.l.b16 %v394
        %v462 = vunpack.c.l.b16 %v395
        %v463 = vunpack.c.l.b16 %v396
        %v464 = vpack.c.b16 %v433, %v432
        %v465 = vpack.c.b16 %v435, %v434
        %v466 = vpack.c.b16 %v437, %v436
        %v467 = vpack.c.b16 %v439, %v438
        %v468 = vpack.c.b16 %v441, %v440
        %v469 = vpack.c.b16 %v443, %v442
        %v470 = vpack.c.b16 %v445, %v444
        %v471 = vpack.c.b16 %v447, %v446
        %v472 = vpack.c.b16 %v449, %v448
        %v473 = vpack.c.b16 %v451, %v450
        %v474 = vpack.c.b16 %v453, %v452
        %v475 = vpack.c.b16 %v455, %v454
        %v476 = vpack.c.b16 %v457, %v456
        %v477 = vpack.c.b16 %v459, %v458
        %v478 = vpack.c.b16 %v461, %v460
        %v479 = vpack.c.b16 %v463, %v462
        %vm480 = vcmask 64512
        %v482 = vsel %vm480, %v464, 0
        %v485 = vsel %vm480, %v465, 0
        %v488 = vsel %vm480, %v466, 0
        %v491 = vsel %vm480, %v467, 0
        %v494 = vsel %vm480, %v468, 0
        %v497 = vsel %vm480, %v469, 0
        %v500 = vsel %vm480, %v470, 0
        %v503 = vsel %vm480, %v471, 0
        %v506 = vsel %vm480, %v472, 0
        %v509 = vsel %vm480, %v473, 0
        %v512 = vsel %vm480, %v474, 0
        %v515 = vsel %vm480, %v475, 0
        %v518 = vsel %vm480, %v476, 0
        %v521 = vsel %vm480, %v477, 0
        %v524 = vsel %vm480, %v478, 0
        %v527 = vsel %vm480, %v479, 0
        %vm529 = vcmask 1043456
        %v531 = vsel %vm529, %v397, 0
        %533 = vmatprep.subr.bf16.mxu0 0
        %534 = vmatpush1.bf16.msra.mxu0 %v531
        %535 = vmatprep.subr.bf16.mxu0 0
        %536 = vmatpush1.bf16.msra.mxu0 0
        %537 = vmatprep.subr.bf16.mxu0 0
        %538 = vmatpush1.bf16.msra.mxu0 0
        %539 = vmatprep.subr.bf16.mxu0 0
        %540 = vmatpush1.bf16.msra.mxu0 0
        %541 = vmatprep.subr.bf16.mxu0 0
        %542 = vmatpush1.bf16.msra.mxu0 0
        %543 = vmatprep.subr.bf16.mxu0 0
        %544 = vmatpush1.bf16.msra.mxu0 0
        %545 = vmatprep.subr.bf16.mxu0 0
        %546 = vmatpush1.bf16.msra.mxu0 0
        %547 = vmatprep.subr.bf16.mxu0 0
        %548 = vmatpush1.bf16.msra.mxu0 0
        %549 = vmatprep.subr.bf16.mxu0 0
        %550 = vmatpush1.bf16.msra.mxu0 0
        %551 = vmatprep.subr.bf16.mxu0 0
        %552 = vmatpush1.bf16.msra.mxu0 0
        %553 = vmatprep.subr.bf16.mxu0 0
        %554 = vmatpush1.bf16.msra.mxu0 0
        %555 = vmatprep.subr.bf16.mxu0 0
        %556 = vmatpush1.bf16.msra.mxu0 0
        %557 = vmatprep.subr.bf16.mxu0 0
        %558 = vmatpush1.bf16.msra.mxu0 0
        %559 = vmatprep.subr.bf16.mxu0 0
        %560 = vmatpush1.bf16.msra.mxu0 0
        %561 = vmatprep.subr.bf16.mxu0 0
        %562 = vmatpush1.bf16.msra.mxu0 0
        %563 = vmatprep.subr.bf16.mxu0 0
        %564 = vmatpush1.bf16.msra.mxu0 0
        %565 = vmatprep.mubr.bf16.mxu0 0
        %566 = vmatmul.mubr.bf16.gmra.mrb[0].mxu0 %v482
        %v567 = vpop.f32.mrb[0].mxu0
        %v568 = vadd.f32 0.0, %v567
        %v569 = vpop.f32.mrb[0].mxu0
        %v570 = vpop.f32.mrb[0].mxu0
        %v571 = vadd.f32 0.0, %v570
        %v572 = vpop.f32.mrb[0].mxu0
        %573 = vmatprep.mubr.bf16.mxu0 0
        %574 = vmatmul.mubr.bf16.gmra.mrb[0].mxu0 %v485
        %v575 = vpop.f32.mrb[0].mxu0
        %v576 = vadd.f32 0.0, %v575
        %v577 = vpop.f32.mrb[0].mxu0
        %v578 = vpop.f32.mrb[0].mxu0
        %v579 = vadd.f32 0.0, %v578
        %v580 = vpop.f32.mrb[0].mxu0
        %581 = vmatprep.mubr.bf16.mxu0 0
        %582 = vmatmul.mubr.bf16.gmra.mrb[0].mxu0 %v488
        %v583 = vpop.f32.mrb[0].mxu0
        %v584 = vadd.f32 0.0, %v583
        %v585 = vpop.f32.mrb[0].mxu0
        %v586 = vpop.f32.mrb[0].mxu0
        %v587 = vadd.f32 0.0, %v586
        %v588 = vpop.f32.mrb[0].mxu0
        %589 = vmatprep.mubr.bf16.mxu0 0
        %590 = vmatmul.mubr.bf16.gmra.mrb[0].mxu0 %v491
        %v591 = vpop.f32.mrb[0].mxu0
        %v592 = vadd.f32 0.0, %v591
        %v593 = vpop.f32.mrb[0].mxu0
        %v594 = vpop.f32.mrb[0].mxu0
        %v595 = vadd.f32 0.0, %v594
        %v596 = vpop.f32.mrb[0].mxu0
        %597 = vmatprep.mubr.bf16.mxu0 0
        %598 = vmatmul.mubr.bf16.gmra.mrb[0].mxu0 %v494
        %v599 = vpop.f32.mrb[0].mxu0
        %v600 = vadd.f32 0.0, %v599
        %v601 = vpop.f32.mrb[0].mxu0
        %v602 = vpop.f32.mrb[0].mxu0
        %v603 = vadd.f32 0.0, %v602
        %v604 = vpop.f32.mrb[0].mxu0
        %605 = vmatprep.mubr.bf16.mxu0 0
        %606 = vmatmul.mubr.bf16.gmra.mrb[0].mxu0 %v497
        %v607 = vpop.f32.mrb[0].mxu0
        %v608 = vadd.f32 0.0, %v607
        %v609 = vpop.f32.mrb[0].mxu0
        %v610 = vpop.f32.mrb[0].mxu0
        %v611 = vadd.f32 0.0, %v610
        %v612 = vpop.f32.mrb[0].mxu0
        %613 = vmatprep.mubr.bf16.mxu0 0
        %614 = vmatmul.mubr.bf16.gmra.mrb[0].mxu0 %v500
        %v615 = vpop.f32.mrb[0].mxu0
        %v616 = vadd.f32 0.0, %v615
        %v617 = vpop.f32.mrb[0].mxu0
        %v618 = vpop.f32.mrb[0].mxu0
        %v619 = vadd.f32 0.0, %v618
        %v620 = vpop.f32.mrb[0].mxu0
        %621 = vmatprep.mubr.bf16.mxu0 0
        %622 = vmatmul.mubr.bf16.gmra.mrb[0].mxu0 %v503
        %v623 = vpop.f32.mrb[0].mxu0
        %v624 = vadd.f32 0.0, %v623
        %v625 = vpop.f32.mrb[0].mxu0
        %v626 = vpop.f32.mrb[0].mxu0
        %v627 = vadd.f32 0.0, %v626
        %v628 = vpop.f32.mrb[0].mxu0
        %629 = vmatprep.mubr.bf16.mxu0 0
        %630 = vmatmul.mubr.bf16.gmra.mrb[0].mxu0 %v506
        %v631 = vpop.f32.mrb[0].mxu0
        %v632 = vadd.f32 0.0, %v631
        %v633 = vpop.f32.mrb[0].mxu0
        %v634 = vpop.f32.mrb[0].mxu0
        %v635 = vadd.f32 0.0, %v634
        %v636 = vpop.f32.mrb[0].mxu0
        %637 = vmatprep.mubr.bf16.mxu0 0
        %638 = vmatmul.mubr.bf16.gmra.mrb[0].mxu0 %v509
        %v639 = vpop.f32.mrb[0].mxu0
        %v640 = vadd.f32 0.0, %v639
        %v641 = vpop.f32.mrb[0].mxu0
        %v642 = vpop.f32.mrb[0].mxu0
        %v643 = vadd.f32 0.0, %v642
        %v644 = vpop.f32.mrb[0].mxu0
        %645 = vmatprep.mubr.bf16.mxu0 0
        %646 = vmatmul.mubr.bf16.gmra.mrb[0].mxu0 %v512
        %v647 = vpop.f32.mrb[0].mxu0
        %v648 = vadd.f32 0.0, %v647
        %v649 = vpop.f32.mrb[0].mxu0
        %v650 = vpop.f32.mrb[0].mxu0
        %v651 = vadd.f32 0.0, %v650
        %v652 = vpop.f32.mrb[0].mxu0
        %653 = vmatprep.mubr.bf16.mxu0 0
        %654 = vmatmul.mubr.bf16.gmra.mrb[0].mxu0 %v515
        %v655 = vpop.f32.mrb[0].mxu0
        %v656 = vadd.f32 0.0, %v655
        %v657 = vpop.f32.mrb[0].mxu0
        %v658 = vpop.f32.mrb[0].mxu0
        %v659 = vadd.f32 0.0, %v658
        %v660 = vpop.f32.mrb[0].mxu0
        %661 = vmatprep.mubr.bf16.mxu0 0
        %662 = vmatmul.mubr.bf16.gmra.mrb[0].mxu0 %v518
        %v663 = vpop.f32.mrb[0].mxu0
        %v664 = vadd.f32 0.0, %v663
        %v665 = vpop.f32.mrb[0].mxu0
        %v666 = vpop.f32.mrb[0].mxu0
        %v667 = vadd.f32 0.0, %v666
        %v668 = vpop.f32.mrb[0].mxu0
        %669 = vmatprep.mubr.bf16.mxu0 0
        %670 = vmatmul.mubr.bf16.gmra.mrb[0].mxu0 %v521
        %v671 = vpop.f32.mrb[0].mxu0
        %v672 = vadd.f32 0.0, %v671
        %v673 = vpop.f32.mrb[0].mxu0
        %v674 = vpop.f32.mrb[0].mxu0
        %v675 = vadd.f32 0.0, %v674
        %v676 = vpop.f32.mrb[0].mxu0
        %677 = vmatprep.mubr.bf16.mxu0 0
        %678 = vmatmul.mubr.bf16.gmra.mrb[0].mxu0 %v524
        %v679 = vpop.f32.mrb[0].mxu0
        %v680 = vadd.f32 0.0, %v679
        %v681 = vpop.f32.mrb[0].mxu0
        %v682 = vpop.f32.mrb[0].mxu0
        %v683 = vadd.f32 0.0, %v682
        %v684 = vpop.f32.mrb[0].mxu0
        %685 = vmatprep.mubr.bf16.mxu0 0
        %686 = vmatmul.mubr.bf16.gmra.mrb[0].mxu0 %v527
        %v687 = vpop.f32.mrb[0].mxu0
        %v688 = vadd.f32 0.0, %v687
        %v689 = vpop.f32.mrb[0].mxu0
        %v690 = vpop.f32.mrb[0].mxu0
        %v691 = vadd.f32 0.0, %v690
        %v692 = vpop.f32.mrb[0].mxu0
        %693 = vdwg.mxu0
        %723 = vrot.lane.b32.xlu0 0.0, 8
        %v724 = vpop.permute.xlu0 %723
        %725 = vrot.lane.b32.xlu0 %v568, 8
        %v726 = vpop.permute.xlu0 %725
        %727 = vrot.lane.b32.xlu0 %v571, 8
        %v728 = vpop.permute.xlu0 %727
        %729 = vrot.lane.b32.xlu0 %v576, 8
        %v730 = vpop.permute.xlu0 %729
        %731 = vrot.lane.b32.xlu0 %v579, 8
        %v732 = vpop.permute.xlu0 %731
        %733 = vrot.lane.b32.xlu0 %v584, 8
        %v734 = vpop.permute.xlu0 %733
        %735 = vrot.lane.b32.xlu0 %v587, 8
        %v736 = vpop.permute.xlu0 %735
        %737 = vrot.lane.b32.xlu0 %v592, 8
        %v738 = vpop.permute.xlu0 %737
        %739 = vrot.lane.b32.xlu0 %v595, 8
        %v740 = vpop.permute.xlu0 %739
        %741 = vrot.lane.b32.xlu0 %v600, 8
        %v742 = vpop.permute.xlu0 %741
        %743 = vrot.lane.b32.xlu0 %v603, 8
        %v744 = vpop.permute.xlu0 %743
        %745 = vrot.lane.b32.xlu0 %v608, 8
        %v746 = vpop.permute.xlu0 %745
        %747 = vrot.lane.b32.xlu0 %v611, 8
        %v748 = vpop.permute.xlu0 %747
        %749 = vrot.lane.b32.xlu0 %v616, 8
        %v750 = vpop.permute.xlu0 %749
        %751 = vrot.lane.b32.xlu0 %v619, 8
        %v752 = vpop.permute.xlu0 %751
        %753 = vrot.lane.b32.xlu0 %v624, 8
        %v754 = vpop.permute.xlu0 %753
        %755 = vrot.lane.b32.xlu0 %v627, 8
        %v756 = vpop.permute.xlu0 %755
        %757 = vrot.lane.b32.xlu0 %v632, 8
        %v758 = vpop.permute.xlu0 %757
        %759 = vrot.lane.b32.xlu0 %v635, 8
        %v760 = vpop.permute.xlu0 %759
        %761 = vrot.lane.b32.xlu0 %v640, 8
        %v762 = vpop.permute.xlu0 %761
        %763 = vrot.lane.b32.xlu0 %v643, 8
        %v764 = vpop.permute.xlu0 %763
        %765 = vrot.lane.b32.xlu0 %v648, 8
        %v766 = vpop.permute.xlu0 %765
        %767 = vrot.lane.b32.xlu0 %v651, 8
        %v768 = vpop.permute.xlu0 %767
        %769 = vrot.lane.b32.xlu0 %v656, 8
        %v770 = vpop.permute.xlu0 %769
        %771 = vrot.lane.b32.xlu0 %v659, 8
        %v772 = vpop.permute.xlu0 %771
        %773 = vrot.lane.b32.xlu0 %v664, 8
        %v774 = vpop.permute.xlu0 %773
        %775 = vrot.lane.b32.xlu0 %v667, 8
        %v776 = vpop.permute.xlu0 %775
        %777 = vrot.lane.b32.xlu0 %v672, 8
        %v778 = vpop.permute.xlu0 %777
        %779 = vrot.lane.b32.xlu0 %v675, 8
        %v780 = vpop.permute.xlu0 %779
        %v810 = vadd.f32 %v568, %v724
        %v811 = vadd.f32 %v571, %v724
        %v812 = vadd.f32 %v576, %v724
        %v813 = vadd.f32 %v579, %v724
        %v814 = vadd.f32 %v584, %v726
        %v815 = vadd.f32 %v587, %v728
        %v816 = vadd.f32 %v592, %v730
        %v817 = vadd.f32 %v595, %v732
        %v818 = vadd.f32 %v600, %v734
        %v819 = vadd.f32 %v603, %v736
        %v820 = vadd.f32 %v608, %v738
        %v821 = vadd.f32 %v611, %v740
        %v822 = vadd.f32 %v616, %v742
        %v823 = vadd.f32 %v619, %v744
        %v824 = vadd.f32 %v624, %v746
        %v825 = vadd.f32 %v627, %v748
        %v826 = vadd.f32 %v632, %v750
        %v827 = vadd.f32 %v635, %v752
        %v828 = vadd.f32 %v640, %v754
        %v829 = vadd.f32 %v643, %v756
        %v830 = vadd.f32 %v648, %v758
        %v831 = vadd.f32 %v651, %v760
        %v832 = vadd.f32 %v656, %v762
        %v833 = vadd.f32 %v659, %v764
        %v834 = vadd.f32 %v664, %v766
        %v835 = vadd.f32 %v667, %v768
        %v836 = vadd.f32 %v672, %v770
        %v837 = vadd.f32 %v675, %v772
        %v838 = vadd.f32 %v680, %v774
        %v839 = vadd.f32 %v683, %v776
        %v840 = vadd.f32 %v688, %v778
        %v841 = vadd.f32 %v691, %v780
        %846 = vrot.lane.b32.xlu0 %v584, 120
        %v847 = vpop.permute.xlu0 %846
        %848 = vrot.lane.b32.xlu0 %v587, 120
        %v849 = vpop.permute.xlu0 %848
        %850 = vrot.lane.b32.xlu0 %v592, 120
        %v851 = vpop.permute.xlu0 %850
        %852 = vrot.lane.b32.xlu0 %v595, 120
        %v853 = vpop.permute.xlu0 %852
        %854 = vrot.lane.b32.xlu0 %v600, 120
        %v855 = vpop.permute.xlu0 %854
        %856 = vrot.lane.b32.xlu0 %v603, 120
        %v857 = vpop.permute.xlu0 %856
        %858 = vrot.lane.b32.xlu0 %v608, 120
        %v859 = vpop.permute.xlu0 %858
        %860 = vrot.lane.b32.xlu0 %v611, 120
        %v861 = vpop.permute.xlu0 %860
        %862 = vrot.lane.b32.xlu0 %v616, 120
        %v863 = vpop.permute.xlu0 %862
        %864 = vrot.lane.b32.xlu0 %v619, 120
        %v865 = vpop.permute.xlu0 %864
        %866 = vrot.lane.b32.xlu0 %v624, 120
        %v867 = vpop.permute.xlu0 %866
        %868 = vrot.lane.b32.xlu0 %v627, 120
        %v869 = vpop.permute.xlu0 %868
        %870 = vrot.lane.b32.xlu0 %v632, 120
        %v871 = vpop.permute.xlu0 %870
        %872 = vrot.lane.b32.xlu0 %v635, 120
        %v873 = vpop.permute.xlu0 %872
        %874 = vrot.lane.b32.xlu0 %v640, 120
        %v875 = vpop.permute.xlu0 %874
        %876 = vrot.lane.b32.xlu0 %v643, 120
        %v877 = vpop.permute.xlu0 %876
        %878 = vrot.lane.b32.xlu0 %v648, 120
        %v879 = vpop.permute.xlu0 %878
        %880 = vrot.lane.b32.xlu0 %v651, 120
        %v881 = vpop.permute.xlu0 %880
        %882 = vrot.lane.b32.xlu0 %v656, 120
        %v883 = vpop.permute.xlu0 %882
        %884 = vrot.lane.b32.xlu0 %v659, 120
        %v885 = vpop.permute.xlu0 %884
        %886 = vrot.lane.b32.xlu0 %v664, 120
        %v887 = vpop.permute.xlu0 %886
        %888 = vrot.lane.b32.xlu0 %v667, 120
        %v889 = vpop.permute.xlu0 %888
        %890 = vrot.lane.b32.xlu0 %v672, 120
        %v891 = vpop.permute.xlu0 %890
        %892 = vrot.lane.b32.xlu0 %v675, 120
        %v893 = vpop.permute.xlu0 %892
        %894 = vrot.lane.b32.xlu0 %v680, 120
        %v895 = vpop.permute.xlu0 %894
        %896 = vrot.lane.b32.xlu0 %v683, 120
        %v897 = vpop.permute.xlu0 %896
        %898 = vrot.lane.b32.xlu0 %v688, 120
        %v899 = vpop.permute.xlu0 %898
        %900 = vrot.lane.b32.xlu0 %v691, 120
        %v901 = vpop.permute.xlu0 %900
        %902 = vrot.lane.b32.xlu0 0.0, 120
        %v903 = vpop.permute.xlu0 %902
        %v933 = vadd.f32 %v810, %v847
        %v934 = vadd.f32 %v811, %v849
        %v935 = vadd.f32 %v812, %v851
        %v936 = vadd.f32 %v813, %v853
        %v937 = vadd.f32 %v814, %v855
        %v938 = vadd.f32 %v815, %v857
        %v939 = vadd.f32 %v816, %v859
        %v940 = vadd.f32 %v817, %v861
        %v941 = vadd.f32 %v818, %v863
        %v942 = vadd.f32 %v819, %v865
        %v943 = vadd.f32 %v820, %v867
        %v944 = vadd.f32 %v821, %v869
        %v945 = vadd.f32 %v822, %v871
        %v946 = vadd.f32 %v823, %v873
        %v947 = vadd.f32 %v824, %v875
        %v948 = vadd.f32 %v825, %v877
        %v949 = vadd.f32 %v826, %v879
        %v950 = vadd.f32 %v827, %v881
        %v951 = vadd.f32 %v828, %v883
        %v952 = vadd.f32 %v829, %v885
        %v953 = vadd.f32 %v830, %v887
        %v954 = vadd.f32 %v831, %v889
        %v955 = vadd.f32 %v832, %v891
        %v956 = vadd.f32 %v833, %v893
        %v957 = vadd.f32 %v834, %v895
        %v958 = vadd.f32 %v835, %v897
        %v959 = vadd.f32 %v836, %v899
        %v960 = vadd.f32 %v837, %v901
        %v961 = vadd.f32 %v838, %v903
        %v962 = vadd.f32 %v839, %v903
        %v963 = vadd.f32 %v840, %v903
        %v964 = vadd.f32 %v841, %v903
        %v965 = vlaneseq
        %v966 = vshrl.u32 %v965, 7
        %v967 = vsub.s32 0, %v966
        %v968 = vrot.slane %v398, %v967
        %970 = vrot.lane.b32.xlu0 %v968, 8
        %v971 = vpop.permute.xlu0 %970
        %v973 = vmul.f32 %v933, %v971
        %v974 = vmul.f32 %v934, %v971
        %v975 = vmul.f32 %v935, %v971
        %v976 = vmul.f32 %v936, %v971
        %v977 = vmul.f32 %v937, %v971
        %v978 = vmul.f32 %v938, %v971
        %v979 = vmul.f32 %v939, %v971
        %v980 = vmul.f32 %v940, %v971
        %v981 = vmul.f32 %v941, %v971
        %v982 = vmul.f32 %v942, %v971
        %v983 = vmul.f32 %v943, %v971
        %v984 = vmul.f32 %v944, %v971
        %v985 = vmul.f32 %v945, %v971
        %v986 = vmul.f32 %v946, %v971
        %v987 = vmul.f32 %v947, %v971
        %v988 = vmul.f32 %v948, %v971
        %v989 = vmul.f32 %v949, %v971
        %v990 = vmul.f32 %v950, %v971
        %v991 = vmul.f32 %v951, %v971
        %v992 = vmul.f32 %v952, %v971
        %v993 = vmul.f32 %v953, %v971
        %v994 = vmul.f32 %v954, %v971
        %v995 = vmul.f32 %v955, %v971
        %v996 = vmul.f32 %v956, %v971
        %v997 = vmul.f32 %v957, %v971
        %v998 = vmul.f32 %v958, %v971
        %v999 = vmul.f32 %v959, %v971
        %v1000 = vmul.f32 %v960, %v971
        %v1001 = vmul.f32 %v961, %v971
        %v1002 = vmul.f32 %v962, %v971
        %v1003 = vmul.f32 %v963, %v971
        %v1004 = vmul.f32 %v964, %v971
        %v1005 = vlaneseq
        %v1006 = vshrl.u32 %v1005, 7
        %v1007 = vsub.s32 0, %v1006
        %v1008 = vrot.slane %v399, %v1007
        %1010 = vrot.lane.b32.xlu0 %v1008, 8
        %v1011 = vpop.permute.xlu0 %1010
        %v1013 = vadd.f32 %v973, %v1011
        %v1014 = vadd.f32 %v974, %v1011
        %v1015 = vadd.f32 %v975, %v1011
        %v1016 = vadd.f32 %v976, %v1011
        %v1017 = vadd.f32 %v977, %v1011
        %v1018 = vadd.f32 %v978, %v1011
        %v1019 = vadd.f32 %v979, %v1011
        %v1020 = vadd.f32 %v980, %v1011
        %v1021 = vadd.f32 %v981, %v1011
        %v1022 = vadd.f32 %v982, %v1011
        %v1023 = vadd.f32 %v983, %v1011
        %v1024 = vadd.f32 %v984, %v1011
        %v1025 = vadd.f32 %v985, %v1011
        %v1026 = vadd.f32 %v986, %v1011
        %v1027 = vadd.f32 %v987, %v1011
        %v1028 = vadd.f32 %v988, %v1011
        %v1029 = vadd.f32 %v989, %v1011
        %v1030 = vadd.f32 %v990, %v1011
        %v1031 = vadd.f32 %v991, %v1011
        %v1032 = vadd.f32 %v992, %v1011
        %v1033 = vadd.f32 %v993, %v1011
        %v1034 = vadd.f32 %v994, %v1011
        %v1035 = vadd.f32 %v995, %v1011
        %v1036 = vadd.f32 %v996, %v1011
        %v1037 = vadd.f32 %v997, %v1011
        %v1038 = vadd.f32 %v998, %v1011
        %v1039 = vadd.f32 %v999, %v1011
        %v1040 = vadd.f32 %v1000, %v1011
        %v1041 = vadd.f32 %v1001, %v1011
        %v1042 = vadd.f32 %v1002, %v1011
        %v1043 = vadd.f32 %v1003, %v1011
        %v1044 = vadd.f32 %v1004, %v1011
        %v1045 = vmax.f32 %v1013, 0.0
        %v1046 = vmax.f32 %v1014, 0.0
        %v1047 = vmax.f32 %v1015, 0.0
        %v1048 = vmax.f32 %v1016, 0.0
        %v1049 = vmax.f32 %v1017, 0.0
        %v1050 = vmax.f32 %v1018, 0.0
        %v1051 = vmax.f32 %v1019, 0.0
        %v1052 = vmax.f32 %v1020, 0.0
        %v1053 = vmax.f32 %v1021, 0.0
        %v1054 = vmax.f32 %v1022, 0.0
        %v1055 = vmax.f32 %v1023, 0.0
        %v1056 = vmax.f32 %v1024, 0.0
        %v1057 = vmax.f32 %v1025, 0.0
        %v1058 = vmax.f32 %v1026, 0.0
        %v1059 = vmax.f32 %v1027, 0.0
        %v1060 = vmax.f32 %v1028, 0.0
        %v1061 = vmax.f32 %v1029, 0.0
        %v1062 = vmax.f32 %v1030, 0.0
        %v1063 = vmax.f32 %v1031, 0.0
        %v1064 = vmax.f32 %v1032, 0.0
        %v1065 = vmax.f32 %v1033, 0.0
        %v1066 = vmax.f32 %v1034, 0.0
        %v1067 = vmax.f32 %v1035, 0.0
        %v1068 = vmax.f32 %v1036, 0.0
        %v1069 = vmax.f32 %v1037, 0.0
        %v1070 = vmax.f32 %v1038, 0.0
        %v1071 = vmax.f32 %v1039, 0.0
        %v1072 = vmax.f32 %v1040, 0.0
        %v1073 = vmax.f32 %v1041, 0.0
        %v1074 = vmax.f32 %v1042, 0.0
        %v1075 = vmax.f32 %v1043, 0.0
        %v1076 = vmax.f32 %v1044, 0.0
        %v1077 = vpack.c.bf16 %v1046, %v1045
        %v1078 = vpack.c.bf16 %v1048, %v1047
        %v1079 = vpack.c.bf16 %v1050, %v1049
        %v1080 = vpack.c.bf16 %v1052, %v1051
        %v1081 = vpack.c.bf16 %v1054, %v1053
        %v1082 = vpack.c.bf16 %v1056, %v1055
        %v1083 = vpack.c.bf16 %v1058, %v1057
        %v1084 = vpack.c.bf16 %v1060, %v1059
        %v1085 = vpack.c.bf16 %v1062, %v1061
        %v1086 = vpack.c.bf16 %v1064, %v1063
        %v1087 = vpack.c.bf16 %v1066, %v1065
        %v1088 = vpack.c.bf16 %v1068, %v1067
        %v1089 = vpack.c.bf16 %v1070, %v1069
        %v1090 = vpack.c.bf16 %v1072, %v1071
        %v1091 = vpack.c.bf16 %v1074, %v1073
        %v1092 = vpack.c.bf16 %v1076, %v1075
        %s1093 = scalar_lea.vmem [#allocation7], 4
        %v1094 = vld [vmem:[%s1093] sm:$0xf]
        %v1095 = vld [vmem:[#allocation8 + $0x1] sm:$0x1]
        %v1096 = vld [vmem:[#allocation10 + $0x1] sm:$0x1]
        %1113 = vrot.lane.b32.xlu0 %v1077, 120
        %v1114 = vpop.permute.xlu0 %1113
        %1115 = vrot.lane.b32.xlu0 %v1078, 120
        %v1116 = vpop.permute.xlu0 %1115
        %1117 = vrot.lane.b32.xlu0 %v1079, 120
        %v1118 = vpop.permute.xlu0 %1117
        %1119 = vrot.lane.b32.xlu0 %v1080, 120
        %v1120 = vpop.permute.xlu0 %1119
        %1121 = vrot.lane.b32.xlu0 %v1081, 120
        %v1122 = vpop.permute.xlu0 %1121
        %1123 = vrot.lane.b32.xlu0 %v1082, 120
        %v1124 = vpop.permute.xlu0 %1123
        %1125 = vrot.lane.b32.xlu0 %v1083, 120
        %v1126 = vpop.permute.xlu0 %1125
        %1127 = vrot.lane.b32.xlu0 %v1084, 120
        %v1128 = vpop.permute.xlu0 %1127
        %1129 = vrot.lane.b32.xlu0 %v1085, 120
        %v1130 = vpop.permute.xlu0 %1129
        %1131 = vrot.lane.b32.xlu0 %v1086, 120
        %v1132 = vpop.permute.xlu0 %1131
        %1133 = vrot.lane.b32.xlu0 %v1087, 120
        %v1134 = vpop.permute.xlu0 %1133
        %1135 = vrot.lane.b32.xlu0 %v1088, 120
        %v1136 = vpop.permute.xlu0 %1135
        %1137 = vrot.lane.b32.xlu0 %v1089, 120
        %v1138 = vpop.permute.xlu0 %1137
        %1139 = vrot.lane.b32.xlu0 %v1090, 120
        %v1140 = vpop.permute.xlu0 %1139
        %1141 = vrot.lane.b32.xlu0 %v1091, 120
        %v1142 = vpop.permute.xlu0 %1141
        %1143 = vrot.lane.b32.xlu0 %v1092, 120
        %v1144 = vpop.permute.xlu0 %1143
        %v1146 = vsel %vm480, %v1114, 0
        %v1149 = vsel %vm480, %v1116, 0
        %v1152 = vsel %vm480, %v1118, 0
        %v1155 = vsel %vm480, %v1120, 0
        %v1158 = vsel %vm480, %v1122, 0
        %v1161 = vsel %vm480, %v1124, 0
        %v1164 = vsel %vm480, %v1126, 0
        %v1167 = vsel %vm480, %v1128, 0
        %v1170 = vsel %vm480, %v1130, 0
        %v1173 = vsel %vm480, %v1132, 0
        %v1176 = vsel %vm480, %v1134, 0
        %v1179 = vsel %vm480, %v1136, 0
        %v1182 = vsel %vm480, %v1138, 0
        %v1185 = vsel %vm480, %v1140, 0
        %v1188 = vsel %vm480, %v1142, 0
        %v1191 = vsel %vm480, %v1144, 0
        %v1194 = vsel %vm529, %v1094, 0
        %1196 = vmatprep.subr.bf16.mxu0 0
        %1197 = vmatpush1.bf16.msra.mxu0 %v1194
        %1198 = vmatprep.subr.bf16.mxu0 0
        %1199 = vmatpush1.bf16.msra.mxu0 0
        %1200 = vmatprep.subr.bf16.mxu0 0
        %1201 = vmatpush1.bf16.msra.mxu0 0
        %1202 = vmatprep.subr.bf16.mxu0 0
        %1203 = vmatpush1.bf16.msra.mxu0 0
        %1204 = vmatprep.subr.bf16.mxu0 0
        %1205 = vmatpush1.bf16.msra.mxu0 0
        %1206 = vmatprep.subr.bf16.mxu0 0
        %1207 = vmatpush1.bf16.msra.mxu0 0
        %1208 = vmatprep.subr.bf16.mxu0 0
        %1209 = vmatpush1.bf16.msra.mxu0 0
        %1210 = vmatprep.subr.bf16.mxu0 0
        %1211 = vmatpush1.bf16.msra.mxu0 0
        %1212 = vmatprep.subr.bf16.mxu0 0
        %1213 = vmatpush1.bf16.msra.mxu0 0
        %1214 = vmatprep.subr.bf16.mxu0 0
        %1215 = vmatpush1.bf16.msra.mxu0 0
        %1216 = vmatprep.subr.bf16.mxu0 0
        %1217 = vmatpush1.bf16.msra.mxu0 0
        %1218 = vmatprep.subr.bf16.mxu0 0
        %1219 = vmatpush1.bf16.msra.mxu0 0
        %1220 = vmatprep.subr.bf16.mxu0 0
        %1221 = vmatpush1.bf16.msra.mxu0 0
        %1222 = vmatprep.subr.bf16.mxu0 0
        %1223 = vmatpush1.bf16.msra.mxu0 0
        %1224 = vmatprep.subr.bf16.mxu0 0
        %1225 = vmatpush1.bf16.msra.mxu0 0
        %1226 = vmatprep.subr.bf16.mxu0 0
        %1227 = vmatpush1.bf16.msra.mxu0 0
        %1228 = vmatprep.mubr.bf16.mxu0 0
        %1229 = vmatmul.mubr.bf16.gmra.mrb[0].mxu0 %v1146
        %v1230 = vpop.f32.mrb[0].mxu0
        %v1231 = vadd.f32 0.0, %v1230
        %v1232 = vpop.f32.mrb[0].mxu0
        %v1233 = vpop.f32.mrb[0].mxu0
        %v1234 = vadd.f32 0.0, %v1233
        %v1235 = vpop.f32.mrb[0].mxu0
        %1236 = vmatprep.mubr.bf16.mxu0 0
        %1237 = vmatmul.mubr.bf16.gmra.mrb[0].mxu0 %v1149
        %v1238 = vpop.f32.mrb[0].mxu0
        %v1239 = vadd.f32 0.0, %v1238
        %v1240 = vpop.f32.mrb[0].mxu0
        %v1241 = vpop.f32.mrb[0].mxu0
        %v1242 = vadd.f32 0.0, %v1241
        %v1243 = vpop.f32.mrb[0].mxu0
        %1244 = vmatprep.mubr.bf16.mxu0 0
        %1245 = vmatmul.mubr.bf16.gmra.mrb[0].mxu0 %v1152
        %v1246 = vpop.f32.mrb[0].mxu0
        %v1247 = vadd.f32 0.0, %v1246
        %v1248 = vpop.f32.mrb[0].mxu0
        %v1249 = vpop.f32.mrb[0].mxu0
        %v1250 = vadd.f32 0.0, %v1249
        %v1251 = vpop.f32.mrb[0].mxu0
        %1252 = vmatprep.mubr.bf16.mxu0 0
        %1253 = vmatmul.mubr.bf16.gmra.mrb[0].mxu0 %v1155
        %v1254 = vpop.f32.mrb[0].mxu0
        %v1255 = vadd.f32 0.0, %v1254
        %v1256 = vpop.f32.mrb[0].mxu0
        %v1257 = vpop.f32.mrb[0].mxu0
        %v1258 = vadd.f32 0.0, %v1257
        %v1259 = vpop.f32.mrb[0].mxu0
        %1260 = vmatprep.mubr.bf16.mxu0 0
        %1261 = vmatmul.mubr.bf16.gmra.mrb[0].mxu0 %v1158
        %v1262 = vpop.f32.mrb[0].mxu0
        %v1263 = vadd.f32 0.0, %v1262
        %v1264 = vpop.f32.mrb[0].mxu0
        %v1265 = vpop.f32.mrb[0].mxu0
        %v1266 = vadd.f32 0.0, %v1265
        %v1267 = vpop.f32.mrb[0].mxu0
        %1268 = vmatprep.mubr.bf16.mxu0 0
        %1269 = vmatmul.mubr.bf16.gmra.mrb[0].mxu0 %v1161
        %v1270 = vpop.f32.mrb[0].mxu0
        %v1271 = vadd.f32 0.0, %v1270
        %v1272 = vpop.f32.mrb[0].mxu0
        %v1273 = vpop.f32.mrb[0].mxu0
        %v1274 = vadd.f32 0.0, %v1273
        %v1275 = vpop.f32.mrb[0].mxu0
        %1276 = vmatprep.mubr.bf16.mxu0 0
        %1277 = vmatmul.mubr.bf16.gmra.mrb[0].mxu0 %v1164
        %v1278 = vpop.f32.mrb[0].mxu0
        %v1279 = vadd.f32 0.0, %v1278
        %v1280 = vpop.f32.mrb[0].mxu0
        %v1281 = vpop.f32.mrb[0].mxu0
        %v1282 = vadd.f32 0.0, %v1281
        %v1283 = vpop.f32.mrb[0].mxu0
        %1284 = vmatprep.mubr.bf16.mxu0 0
        %1285 = vmatmul.mubr.bf16.gmra.mrb[0].mxu0 %v1167
        %v1286 = vpop.f32.mrb[0].mxu0
        %v1287 = vadd.f32 0.0, %v1286
        %v1288 = vpop.f32.mrb[0].mxu0
        %v1289 = vpop.f32.mrb[0].mxu0
        %v1290 = vadd.f32 0.0, %v1289
        %v1291 = vpop.f32.mrb[0].mxu0
        %1292 = vmatprep.mubr.bf16.mxu0 0
        %1293 = vmatmul.mubr.bf16.gmra.mrb[0].mxu0 %v1170
        %v1294 = vpop.f32.mrb[0].mxu0
        %v1295 = vadd.f32 0.0, %v1294
        %v1296 = vpop.f32.mrb[0].mxu0
        %v1297 = vpop.f32.mrb[0].mxu0
        %v1298 = vadd.f32 0.0, %v1297
        %v1299 = vpop.f32.mrb[0].mxu0
        %1300 = vmatprep.mubr.bf16.mxu0 0
        %1301 = vmatmul.mubr.bf16.gmra.mrb[0].mxu0 %v1173
        %v1302 = vpop.f32.mrb[0].mxu0
        %v1303 = vadd.f32 0.0, %v1302
        %v1304 = vpop.f32.mrb[0].mxu0
        %v1305 = vpop.f32.mrb[0].mxu0
        %v1306 = vadd.f32 0.0, %v1305
        %v1307 = vpop.f32.mrb[0].mxu0
        %1308 = vmatprep.mubr.bf16.mxu0 0
        %1309 = vmatmul.mubr.bf16.gmra.mrb[0].mxu0 %v1176
        %v1310 = vpop.f32.mrb[0].mxu0
        %v1311 = vadd.f32 0.0, %v1310
        %v1312 = vpop.f32.mrb[0].mxu0
        %v1313 = vpop.f32.mrb[0].mxu0
        %v1314 = vadd.f32 0.0, %v1313
        %v1315 = vpop.f32.mrb[0].mxu0
        %1316 = vmatprep.mubr.bf16.mxu0 0
        %1317 = vmatmul.mubr.bf16.gmra.mrb[0].mxu0 %v1179
        %v1318 = vpop.f32.mrb[0].mxu0
        %v1319 = vadd.f32 0.0, %v1318
        %v1320 = vpop.f32.mrb[0].mxu0
        %v1321 = vpop.f32.mrb[0].mxu0
        %v1322 = vadd.f32 0.0, %v1321
        %v1323 = vpop.f32.mrb[0].mxu0
        %1324 = vmatprep.mubr.bf16.mxu0 0
        %1325 = vmatmul.mubr.bf16.gmra.mrb[0].mxu0 %v1182
        %v1326 = vpop.f32.mrb[0].mxu0
        %v1327 = vadd.f32 0.0, %v1326
        %v1328 = vpop.f32.mrb[0].mxu0
        %v1329 = vpop.f32.mrb[0].mxu0
        %v1330 = vadd.f32 0.0, %v1329
        %v1331 = vpop.f32.mrb[0].mxu0
        %1332 = vmatprep.mubr.bf16.mxu0 0
        %1333 = vmatmul.mubr.bf16.gmra.mrb[0].mxu0 %v1185
        %v1334 = vpop.f32.mrb[0].mxu0
        %v1335 = vadd.f32 0.0, %v1334
        %v1336 = vpop.f32.mrb[0].mxu0
        %v1337 = vpop.f32.mrb[0].mxu0
        %v1338 = vadd.f32 0.0, %v1337
        %v1339 = vpop.f32.mrb[0].mxu0
        %1340 = vmatprep.mubr.bf16.mxu0 0
        %1341 = vmatmul.mubr.bf16.gmra.mrb[0].mxu0 %v1188
        %v1342 = vpop.f32.mrb[0].mxu0
        %v1343 = vadd.f32 0.0, %v1342
        %v1344 = vpop.f32.mrb[0].mxu0
        %v1345 = vpop.f32.mrb[0].mxu0
        %v1346 = vadd.f32 0.0, %v1345
        %v1347 = vpop.f32.mrb[0].mxu0
        %1348 = vmatprep.mubr.bf16.mxu0 0
        %1349 = vmatmul.mubr.bf16.gmra.mrb[0].mxu0 %v1191
        %v1350 = vpop.f32.mrb[0].mxu0
        %v1351 = vadd.f32 0.0, %v1350
        %v1352 = vpop.f32.mrb[0].mxu0
        %v1353 = vpop.f32.mrb[0].mxu0
        %v1354 = vadd.f32 0.0, %v1353
        %v1355 = vpop.f32.mrb[0].mxu0
        %1356 = vdwg.mxu0
        %1385 = vrot.lane.b32.xlu0 %v1231, 8
        %v1386 = vpop.permute.xlu0 %1385
        %1387 = vrot.lane.b32.xlu0 %v1234, 8
        %v1388 = vpop.permute.xlu0 %1387
        %1389 = vrot.lane.b32.xlu0 %v1239, 8
        %v1390 = vpop.permute.xlu0 %1389
        %1391 = vrot.lane.b32.xlu0 %v1242, 8
        %v1392 = vpop.permute.xlu0 %1391
        %1393 = vrot.lane.b32.xlu0 %v1247, 8
        %v1394 = vpop.permute.xlu0 %1393
        %1395 = vrot.lane.b32.xlu0 %v1250, 8
        %v1396 = vpop.permute.xlu0 %1395
        %1397 = vrot.lane.b32.xlu0 %v1255, 8
        %v1398 = vpop.permute.xlu0 %1397
        %1399 = vrot.lane.b32.xlu0 %v1258, 8
        %v1400 = vpop.permute.xlu0 %1399
        %1401 = vrot.lane.b32.xlu0 %v1263, 8
        %v1402 = vpop.permute.xlu0 %1401
        %1403 = vrot.lane.b32.xlu0 %v1266, 8
        %v1404 = vpop.permute.xlu0 %1403
        %1405 = vrot.lane.b32.xlu0 %v1271, 8
        %v1406 = vpop.permute.xlu0 %1405
        %1407 = vrot.lane.b32.xlu0 %v1274, 8
        %v1408 = vpop.permute.xlu0 %1407
        %1409 = vrot.lane.b32.xlu0 %v1279, 8
        %v1410 = vpop.permute.xlu0 %1409
        %1411 = vrot.lane.b32.xlu0 %v1282, 8
        %v1412 = vpop.permute.xlu0 %1411
        %1413 = vrot.lane.b32.xlu0 %v1287, 8
        %v1414 = vpop.permute.xlu0 %1413
        %1415 = vrot.lane.b32.xlu0 %v1290, 8
        %v1416 = vpop.permute.xlu0 %1415
        %1417 = vrot.lane.b32.xlu0 %v1295, 8
        %v1418 = vpop.permute.xlu0 %1417
        %1419 = vrot.lane.b32.xlu0 %v1298, 8
        %v1420 = vpop.permute.xlu0 %1419
        %1421 = vrot.lane.b32.xlu0 %v1303, 8
        %v1422 = vpop.permute.xlu0 %1421
        %1423 = vrot.lane.b32.xlu0 %v1306, 8
        %v1424 = vpop.permute.xlu0 %1423
        %1425 = vrot.lane.b32.xlu0 %v1311, 8
        %v1426 = vpop.permute.xlu0 %1425
        %1427 = vrot.lane.b32.xlu0 %v1314, 8
        %v1428 = vpop.permute.xlu0 %1427
        %1429 = vrot.lane.b32.xlu0 %v1319, 8
        %v1430 = vpop.permute.xlu0 %1429
        %1431 = vrot.lane.b32.xlu0 %v1322, 8
        %v1432 = vpop.permute.xlu0 %1431
        %1433 = vrot.lane.b32.xlu0 %v1327, 8
        %v1434 = vpop.permute.xlu0 %1433
        %1435 = vrot.lane.b32.xlu0 %v1330, 8
        %v1436 = vpop.permute.xlu0 %1435
        %1437 = vrot.lane.b32.xlu0 %v1335, 8
        %v1438 = vpop.permute.xlu0 %1437
        %1439 = vrot.lane.b32.xlu0 %v1338, 8
        %v1440 = vpop.permute.xlu0 %1439
        %v1469 = vadd.f32 %v1231, %v724
        %v1470 = vadd.f32 %v1234, %v724
        %v1471 = vadd.f32 %v1239, %v724
        %v1472 = vadd.f32 %v1242, %v724
        %v1473 = vadd.f32 %v1247, %v1386
        %v1474 = vadd.f32 %v1250, %v1388
        %v1475 = vadd.f32 %v1255, %v1390
        %v1476 = vadd.f32 %v1258, %v1392
        %v1477 = vadd.f32 %v1263, %v1394
        %v1478 = vadd.f32 %v1266, %v1396
        %v1479 = vadd.f32 %v1271, %v1398
        %v1480 = vadd.f32 %v1274, %v1400
        %v1481 = vadd.f32 %v1279, %v1402
        %v1482 = vadd.f32 %v1282, %v1404
        %v1483 = vadd.f32 %v1287, %v1406
        %v1484 = vadd.f32 %v1290, %v1408
        %v1485 = vadd.f32 %v1295, %v1410
        %v1486 = vadd.f32 %v1298, %v1412
        %v1487 = vadd.f32 %v1303, %v1414
        %v1488 = vadd.f32 %v1306, %v1416
        %v1489 = vadd.f32 %v1311, %v1418
        %v1490 = vadd.f32 %v1314, %v1420
        %v1491 = vadd.f32 %v1319, %v1422
        %v1492 = vadd.f32 %v1322, %v1424
        %v1493 = vadd.f32 %v1327, %v1426
        %v1494 = vadd.f32 %v1330, %v1428
        %v1495 = vadd.f32 %v1335, %v1430
        %v1496 = vadd.f32 %v1338, %v1432
        %v1497 = vadd.f32 %v1343, %v1434
        %v1498 = vadd.f32 %v1346, %v1436
        %v1499 = vadd.f32 %v1351, %v1438
        %v1500 = vadd.f32 %v1354, %v1440
        %1505 = vrot.lane.b32.xlu0 %v1247, 120
        %v1506 = vpop.permute.xlu0 %1505
        %1507 = vrot.lane.b32.xlu0 %v1250, 120
        %v1508 = vpop.permute.xlu0 %1507
        %1509 = vrot.lane.b32.xlu0 %v1255, 120
        %v1510 = vpop.permute.xlu0 %1509
        %1511 = vrot.lane.b32.xlu0 %v1258, 120
        %v1512 = vpop.permute.xlu0 %1511
        %1513 = vrot.lane.b32.xlu0 %v1263, 120
        %v1514 = vpop.permute.xlu0 %1513
        %1515 = vrot.lane.b32.xlu0 %v1266, 120
        %v1516 = vpop.permute.xlu0 %1515
        %1517 = vrot.lane.b32.xlu0 %v1271, 120
        %v1518 = vpop.permute.xlu0 %1517
        %1519 = vrot.lane.b32.xlu0 %v1274, 120
        %v1520 = vpop.permute.xlu0 %1519
        %1521 = vrot.lane.b32.xlu0 %v1279, 120
        %v1522 = vpop.permute.xlu0 %1521
        %1523 = vrot.lane.b32.xlu0 %v1282, 120
        %v1524 = vpop.permute.xlu0 %1523
        %1525 = vrot.lane.b32.xlu0 %v1287, 120
        %v1526 = vpop.permute.xlu0 %1525
        %1527 = vrot.lane.b32.xlu0 %v1290, 120
        %v1528 = vpop.permute.xlu0 %1527
        %1529 = vrot.lane.b32.xlu0 %v1295, 120
        %v1530 = vpop.permute.xlu0 %1529
        %1531 = vrot.lane.b32.xlu0 %v1298, 120
        %v1532 = vpop.permute.xlu0 %1531
        %1533 = vrot.lane.b32.xlu0 %v1303, 120
        %v1534 = vpop.permute.xlu0 %1533
        %1535 = vrot.lane.b32.xlu0 %v1306, 120
        %v1536 = vpop.permute.xlu0 %1535
        %1537 = vrot.lane.b32.xlu0 %v1311, 120
        %v1538 = vpop.permute.xlu0 %1537
        %1539 = vrot.lane.b32.xlu0 %v1314, 120
        %v1540 = vpop.permute.xlu0 %1539
        %1541 = vrot.lane.b32.xlu0 %v1319, 120
        %v1542 = vpop.permute.xlu0 %1541
        %1543 = vrot.lane.b32.xlu0 %v1322, 120
        %v1544 = vpop.permute.xlu0 %1543
        %1545 = vrot.lane.b32.xlu0 %v1327, 120
        %v1546 = vpop.permute.xlu0 %1545
        %1547 = vrot.lane.b32.xlu0 %v1330, 120
        %v1548 = vpop.permute.xlu0 %1547
        %1549 = vrot.lane.b32.xlu0 %v1335, 120
        %v1550 = vpop.permute.xlu0 %1549
        %1551 = vrot.lane.b32.xlu0 %v1338, 120
        %v1552 = vpop.permute.xlu0 %1551
        %1553 = vrot.lane.b32.xlu0 %v1343, 120
        %v1554 = vpop.permute.xlu0 %1553
        %1555 = vrot.lane.b32.xlu0 %v1346, 120
        %v1556 = vpop.permute.xlu0 %1555
        %1557 = vrot.lane.b32.xlu0 %v1351, 120
        %v1558 = vpop.permute.xlu0 %1557
        %1559 = vrot.lane.b32.xlu0 %v1354, 120
        %v1560 = vpop.permute.xlu0 %1559
        %v1589 = vadd.f32 %v1469, %v1506
        %v1590 = vadd.f32 %v1470, %v1508
        %v1591 = vadd.f32 %v1471, %v1510
        %v1592 = vadd.f32 %v1472, %v1512
        %v1593 = vadd.f32 %v1473, %v1514
        %v1594 = vadd.f32 %v1474, %v1516
        %v1595 = vadd.f32 %v1475, %v1518
        %v1596 = vadd.f32 %v1476, %v1520
        %v1597 = vadd.f32 %v1477, %v1522
        %v1598 = vadd.f32 %v1478, %v1524
        %v1599 = vadd.f32 %v1479, %v1526
        %v1600 = vadd.f32 %v1480, %v1528
        %v1601 = vadd.f32 %v1481, %v1530
        %v1602 = vadd.f32 %v1482, %v1532
        %v1603 = vadd.f32 %v1483, %v1534
        %v1604 = vadd.f32 %v1484, %v1536
        %v1605 = vadd.f32 %v1485, %v1538
        %v1606 = vadd.f32 %v1486, %v1540
        %v1607 = vadd.f32 %v1487, %v1542
        %v1608 = vadd.f32 %v1488, %v1544
        %v1609 = vadd.f32 %v1489, %v1546
        %v1610 = vadd.f32 %v1490, %v1548
        %v1611 = vadd.f32 %v1491, %v1550
        %v1612 = vadd.f32 %v1492, %v1552
        %v1613 = vadd.f32 %v1493, %v1554
        %v1614 = vadd.f32 %v1494, %v1556
        %v1615 = vadd.f32 %v1495, %v1558
        %v1616 = vadd.f32 %v1496, %v1560
        %v1617 = vadd.f32 %v1497, %v903
        %v1618 = vadd.f32 %v1498, %v903
        %v1619 = vadd.f32 %v1499, %v903
        %v1620 = vadd.f32 %v1500, %v903
        %v1621 = vlaneseq
        %v1622 = vshrl.u32 %v1621, 7
        %v1623 = vsub.s32 0, %v1622
        %v1624 = vrot.slane %v1095, %v1623
        %1626 = vrot.lane.b32.xlu0 %v1624, 8
        %v1627 = vpop.permute.xlu0 %1626
        %v1629 = vmul.f32 %v1589, %v1627
        %v1630 = vmul.f32 %v1590, %v1627
        %v1631 = vmul.f32 %v1591, %v1627
        %v1632 = vmul.f32 %v1592, %v1627
        %v1633 = vmul.f32 %v1593, %v1627
        %v1634 = vmul.f32 %v1594, %v1627
        %v1635 = vmul.f32 %v1595, %v1627
        %v1636 = vmul.f32 %v1596, %v1627
        %v1637 = vmul.f32 %v1597, %v1627
        %v1638 = vmul.f32 %v1598, %v1627
        %v1639 = vmul.f32 %v1599, %v1627
        %v1640 = vmul.f32 %v1600, %v1627
        %v1641 = vmul.f32 %v1601, %v1627
        %v1642 = vmul.f32 %v1602, %v1627
        %v1643 = vmul.f32 %v1603, %v1627
        %v1644 = vmul.f32 %v1604, %v1627
        %v1645 = vmul.f32 %v1605, %v1627
        %v1646 = vmul.f32 %v1606, %v1627
        %v1647 = vmul.f32 %v1607, %v1627
        %v1648 = vmul.f32 %v1608, %v1627
        %v1649 = vmul.f32 %v1609, %v1627
        %v1650 = vmul.f32 %v1610, %v1627
        %v1651 = vmul.f32 %v1611, %v1627
        %v1652 = vmul.f32 %v1612, %v1627
        %v1653 = vmul.f32 %v1613, %v1627
        %v1654 = vmul.f32 %v1614, %v1627
        %v1655 = vmul.f32 %v1615, %v1627
        %v1656 = vmul.f32 %v1616, %v1627
        %v1657 = vmul.f32 %v1617, %v1627
        %v1658 = vmul.f32 %v1618, %v1627
        %v1659 = vmul.f32 %v1619, %v1627
        %v1660 = vmul.f32 %v1620, %v1627
        %v1661 = vlaneseq
        %v1662 = vshrl.u32 %v1661, 7
        %v1663 = vsub.s32 0, %v1662
        %v1664 = vrot.slane %v1096, %v1663
        %1666 = vrot.lane.b32.xlu0 %v1664, 8
        %v1667 = vpop.permute.xlu0 %1666
        %v1669 = vadd.f32 %v1629, %v1667
        %v1670 = vadd.f32 %v1630, %v1667
        %v1671 = vadd.f32 %v1631, %v1667
        %v1672 = vadd.f32 %v1632, %v1667
        %v1673 = vadd.f32 %v1633, %v1667
        %v1674 = vadd.f32 %v1634, %v1667
        %v1675 = vadd.f32 %v1635, %v1667
        %v1676 = vadd.f32 %v1636, %v1667
        %v1677 = vadd.f32 %v1637, %v1667
        %v1678 = vadd.f32 %v1638, %v1667
        %v1679 = vadd.f32 %v1639, %v1667
        %v1680 = vadd.f32 %v1640, %v1667
        %v1681 = vadd.f32 %v1641, %v1667
        %v1682 = vadd.f32 %v1642, %v1667
        %v1683 = vadd.f32 %v1643, %v1667
        %v1684 = vadd.f32 %v1644, %v1667
        %v1685 = vadd.f32 %v1645, %v1667
        %v1686 = vadd.f32 %v1646, %v1667
        %v1687 = vadd.f32 %v1647, %v1667
        %v1688 = vadd.f32 %v1648, %v1667
        %v1689 = vadd.f32 %v1649, %v1667
        %v1690 = vadd.f32 %v1650, %v1667
        %v1691 = vadd.f32 %v1651, %v1667
        %v1692 = vadd.f32 %v1652, %v1667
        %v1693 = vadd.f32 %v1653, %v1667
        %v1694 = vadd.f32 %v1654, %v1667
        %v1695 = vadd.f32 %v1655, %v1667
        %v1696 = vadd.f32 %v1656, %v1667
        %v1697 = vadd.f32 %v1657, %v1667
        %v1698 = vadd.f32 %v1658, %v1667
        %v1699 = vadd.f32 %v1659, %v1667
        %v1700 = vadd.f32 %v1660, %v1667
        %v1701 = vmax.f32 %v1669, 0.0
        %v1702 = vmax.f32 %v1670, 0.0
        %v1703 = vmax.f32 %v1671, 0.0
        %v1704 = vmax.f32 %v1672, 0.0
        %v1705 = vmax.f32 %v1673, 0.0
        %v1706 = vmax.f32 %v1674, 0.0
        %v1707 = vmax.f32 %v1675, 0.0
        %v1708 = vmax.f32 %v1676, 0.0
        %v1709 = vmax.f32 %v1677, 0.0
        %v1710 = vmax.f32 %v1678, 0.0
        %v1711 = vmax.f32 %v1679, 0.0
        %v1712 = vmax.f32 %v1680, 0.0
        %v1713 = vmax.f32 %v1681, 0.0
        %v1714 = vmax.f32 %v1682, 0.0
        %v1715 = vmax.f32 %v1683, 0.0
        %v1716 = vmax.f32 %v1684, 0.0
        %v1717 = vmax.f32 %v1685, 0.0
        %v1718 = vmax.f32 %v1686, 0.0
        %v1719 = vmax.f32 %v1687, 0.0
        %v1720 = vmax.f32 %v1688, 0.0
        %v1721 = vmax.f32 %v1689, 0.0
        %v1722 = vmax.f32 %v1690, 0.0
        %v1723 = vmax.f32 %v1691, 0.0
        %v1724 = vmax.f32 %v1692, 0.0
        %v1725 = vmax.f32 %v1693, 0.0
        %v1726 = vmax.f32 %v1694, 0.0
        %v1727 = vmax.f32 %v1695, 0.0
        %v1728 = vmax.f32 %v1696, 0.0
        %v1729 = vmax.f32 %v1697, 0.0
        %v1730 = vmax.f32 %v1698, 0.0
        %v1731 = vmax.f32 %v1699, 0.0
        %v1732 = vmax.f32 %v1700, 0.0
        %v1733 = vpack.c.bf16 %v1702, %v1701
        %v1734 = vpack.c.bf16 %v1704, %v1703
        %v1735 = vpack.c.bf16 %v1706, %v1705
        %v1736 = vpack.c.bf16 %v1708, %v1707
        %v1737 = vpack.c.bf16 %v1710, %v1709
        %v1738 = vpack.c.bf16 %v1712, %v1711
        %v1739 = vpack.c.bf16 %v1714, %v1713
        %v1740 = vpack.c.bf16 %v1716, %v1715
        %v1741 = vpack.c.bf16 %v1718, %v1717
        %v1742 = vpack.c.bf16 %v1720, %v1719
        %v1743 = vpack.c.bf16 %v1722, %v1721
        %v1744 = vpack.c.bf16 %v1724, %v1723
        %v1745 = vpack.c.bf16 %v1726, %v1725
        %v1746 = vpack.c.bf16 %v1728, %v1727
        %v1747 = vpack.c.bf16 %v1730, %v1729
        %v1748 = vpack.c.bf16 %v1732, %v1731
        %s1749 = scalar_lea.vmem [#allocation7], 8
        %v1750 = vld [vmem:[%s1749] sm:$0xf]
        %v1751 = vld [vmem:[#allocation8 + $0x2] sm:$0x1]
        %v1752 = vld [vmem:[#allocation10 + $0x2] sm:$0x1]
        %1769 = vrot.lane.b32.xlu0 %v1733, 120
        %v1770 = vpop.permute.xlu0 %1769
        %1771 = vrot.lane.b32.xlu0 %v1734, 120
        %v1772 = vpop.permute.xlu0 %1771
        %1773 = vrot.lane.b32.xlu0 %v1735, 120
        %v1774 = vpop.permute.xlu0 %1773
        %1775 = vrot.lane.b32.xlu0 %v1736, 120
        %v1776 = vpop.permute.xlu0 %1775
        %1777 = vrot.lane.b32.xlu0 %v1737, 120
        %v1778 = vpop.permute.xlu0 %1777
        %1779 = vrot.lane.b32.xlu0 %v1738, 120
        %v1780 = vpop.permute.xlu0 %1779
        %1781 = vrot.lane.b32.xlu0 %v1739, 120
        %v1782 = vpop.permute.xlu0 %1781
        %1783 = vrot.lane.b32.xlu0 %v1740, 120
        %v1784 = vpop.permute.xlu0 %1783
        %1785 = vrot.lane.b32.xlu0 %v1741, 120
        %v1786 = vpop.permute.xlu0 %1785
        %1787 = vrot.lane.b32.xlu0 %v1742, 120
        %v1788 = vpop.permute.xlu0 %1787
        %1789 = vrot.lane.b32.xlu0 %v1743, 120
        %v1790 = vpop.permute.xlu0 %1789
        %1791 = vrot.lane.b32.xlu0 %v1744, 120
        %v1792 = vpop.permute.xlu0 %1791
        %1793 = vrot.lane.b32.xlu0 %v1745, 120
        %v1794 = vpop.permute.xlu0 %1793
        %1795 = vrot.lane.b32.xlu0 %v1746, 120
        %v1796 = vpop.permute.xlu0 %1795
        %1797 = vrot.lane.b32.xlu0 %v1747, 120
        %v1798 = vpop.permute.xlu0 %1797
        %1799 = vrot.lane.b32.xlu0 %v1748, 120
        %v1800 = vpop.permute.xlu0 %1799
        %v1802 = vsel %vm480, %v1770, 0
        %v1805 = vsel %vm480, %v1772, 0
        %v1808 = vsel %vm480, %v1774, 0
        %v1811 = vsel %vm480, %v1776, 0
        %v1814 = vsel %vm480, %v1778, 0
        %v1817 = vsel %vm480, %v1780, 0
        %v1820 = vsel %vm480, %v1782, 0
        %v1823 = vsel %vm480, %v1784, 0
        %v1826 = vsel %vm480, %v1786, 0
        %v1829 = vsel %vm480, %v1788, 0
        %v1832 = vsel %vm480, %v1790, 0
        %v1835 = vsel %vm480, %v1792, 0
        %v1838 = vsel %vm480, %v1794, 0
        %v1841 = vsel %vm480, %v1796, 0
        %v1844 = vsel %vm480, %v1798, 0
        %v1847 = vsel %vm480, %v1800, 0
        %v1850 = vsel %vm529, %v1750, 0
        %1852 = vmatprep.subr.bf16.mxu0 0
        %1853 = vmatpush1.bf16.msra.mxu0 %v1850
        %1854 = vmatprep.subr.bf16.mxu0 0
        %1855 = vmatpush1.bf16.msra.mxu0 0
        %1856 = vmatprep.subr.bf16.mxu0 0
        %1857 = vmatpush1.bf16.msra.mxu0 0
        %1858 = vmatprep.subr.bf16.mxu0 0
        %1859 = vmatpush1.bf16.msra.mxu0 0
        %1860 = vmatprep.subr.bf16.mxu0 0
        %1861 = vmatpush1.bf16.msra.mxu0 0
        %1862 = vmatprep.subr.bf16.mxu0 0
        %1863 = vmatpush1.bf16.msra.mxu0 0
        %1864 = vmatprep.subr.bf16.mxu0 0
        %1865 = vmatpush1.bf16.msra.mxu0 0
        %1866 = vmatprep.subr.bf16.mxu0 0
        %1867 = vmatpush1.bf16.msra.mxu0 0
        %1868 = vmatprep.subr.bf16.mxu0 0
        %1869 = vmatpush1.bf16.msra.mxu0 0
        %1870 = vmatprep.subr.bf16.mxu0 0
        %1871 = vmatpush1.bf16.msra.mxu0 0
        %1872 = vmatprep.subr.bf16.mxu0 0
        %1873 = vmatpush1.bf16.msra.mxu0 0
        %1874 = vmatprep.subr.bf16.mxu0 0
        %1875 = vmatpush1.bf16.msra.mxu0 0
        %1876 = vmatprep.subr.bf16.mxu0 0
        %1877 = vmatpush1.bf16.msra.mxu0 0
        %1878 = vmatprep.subr.bf16.mxu0 0
        %1879 = vmatpush1.bf16.msra.mxu0 0
        %1880 = vmatprep.subr.bf16.mxu0 0
        %1881 = vmatpush1.bf16.msra.mxu0 0
        %1882 = vmatprep.subr.bf16.mxu0 0
        %1883 = vmatpush1.bf16.msra.mxu0 0
        %1884 = vmatprep.mubr.bf16.mxu0 0
        %1885 = vmatmul.mubr.bf16.gmra.mrb[0].mxu0 %v1802
        %v1886 = vpop.f32.mrb[0].mxu0
        %v1887 = vadd.f32 0.0, %v1886
        %v1888 = vpop.f32.mrb[0].mxu0
        %v1889 = vpop.f32.mrb[0].mxu0
        %v1890 = vadd.f32 0.0, %v1889
        %v1891 = vpop.f32.mrb[0].mxu0
        %1892 = vmatprep.mubr.bf16.mxu0 0
        %1893 = vmatmul.mubr.bf16.gmra.mrb[0].mxu0 %v1805
        %v1894 = vpop.f32.mrb[0].mxu0
        %v1895 = vadd.f32 0.0, %v1894
        %v1896 = vpop.f32.mrb[0].mxu0
        %v1897 = vpop.f32.mrb[0].mxu0
        %v1898 = vadd.f32 0.0, %v1897
        %v1899 = vpop.f32.mrb[0].mxu0
        %1900 = vmatprep.mubr.bf16.mxu0 0
        %1901 = vmatmul.mubr.bf16.gmra.mrb[0].mxu0 %v1808
        %v1902 = vpop.f32.mrb[0].mxu0
        %v1903 = vadd.f32 0.0, %v1902
        %v1904 = vpop.f32.mrb[0].mxu0
        %v1905 = vpop.f32.mrb[0].mxu0
        %v1906 = vadd.f32 0.0, %v1905
        %v1907 = vpop.f32.mrb[0].mxu0
        %1908 = vmatprep.mubr.bf16.mxu0 0
        %1909 = vmatmul.mubr.bf16.gmra.mrb[0].mxu0 %v1811
        %v1910 = vpop.f32.mrb[0].mxu0
        %v1911 = vadd.f32 0.0, %v1910
        %v1912 = vpop.f32.mrb[0].mxu0
        %v1913 = vpop.f32.mrb[0].mxu0
        %v1914 = vadd.f32 0.0, %v1913
        %v1915 = vpop.f32.mrb[0].mxu0
        %1916 = vmatprep.mubr.bf16.mxu0 0
        %1917 = vmatmul.mubr.bf16.gmra.mrb[0].mxu0 %v1814
        %v1918 = vpop.f32.mrb[0].mxu0
        %v1919 = vadd.f32 0.0, %v1918
        %v1920 = vpop.f32.mrb[0].mxu0
        %v1921 = vpop.f32.mrb[0].mxu0
        %v1922 = vadd.f32 0.0, %v1921
        %v1923 = vpop.f32.mrb[0].mxu0
        %1924 = vmatprep.mubr.bf16.mxu0 0
        %1925 = vmatmul.mubr.bf16.gmra.mrb[0].mxu0 %v1817
        %v1926 = vpop.f32.mrb[0].mxu0
        %v1927 = vadd.f32 0.0, %v1926
        %v1928 = vpop.f32.mrb[0].mxu0
        %v1929 = vpop.f32.mrb[0].mxu0
        %v1930 = vadd.f32 0.0, %v1929
        %v1931 = vpop.f32.mrb[0].mxu0
        %1932 = vmatprep.mubr.bf16.mxu0 0
        %1933 = vmatmul.mubr.bf16.gmra.mrb[0].mxu0 %v1820
        %v1934 = vpop.f32.mrb[0].mxu0
        %v1935 = vadd.f32 0.0, %v1934
        %v1936 = vpop.f32.mrb[0].mxu0
        %v1937 = vpop.f32.mrb[0].mxu0
        %v1938 = vadd.f32 0.0, %v1937
        %v1939 = vpop.f32.mrb[0].mxu0
        %1940 = vmatprep.mubr.bf16.mxu0 0
        %1941 = vmatmul.mubr.bf16.gmra.mrb[0].mxu0 %v1823
        %v1942 = vpop.f32.mrb[0].mxu0
        %v1943 = vadd.f32 0.0, %v1942
        %v1944 = vpop.f32.mrb[0].mxu0
        %v1945 = vpop.f32.mrb[0].mxu0
        %v1946 = vadd.f32 0.0, %v1945
        %v1947 = vpop.f32.mrb[0].mxu0
        %1948 = vmatprep.mubr.bf16.mxu0 0
        %1949 = vmatmul.mubr.bf16.gmra.mrb[0].mxu0 %v1826
        %v1950 = vpop.f32.mrb[0].mxu0
        %v1951 = vadd.f32 0.0, %v1950
        %v1952 = vpop.f32.mrb[0].mxu0
        %v1953 = vpop.f32.mrb[0].mxu0
        %v1954 = vadd.f32 0.0, %v1953
        %v1955 = vpop.f32.mrb[0].mxu0
        %1956 = vmatprep.mubr.bf16.mxu0 0
        %1957 = vmatmul.mubr.bf16.gmra.mrb[0].mxu0 %v1829
        %v1958 = vpop.f32.mrb[0].mxu0
        %v1959 = vadd.f32 0.0, %v1958
        %v1960 = vpop.f32.mrb[0].mxu0
        %v1961 = vpop.f32.mrb[0].mxu0
        %v1962 = vadd.f32 0.0, %v1961
        %v1963 = vpop.f32.mrb[0].mxu0
        %1964 = vmatprep.mubr.bf16.mxu0 0
        %1965 = vmatmul.mubr.bf16.gmra.mrb[0].mxu0 %v1832
        %v1966 = vpop.f32.mrb[0].mxu0
        %v1967 = vadd.f32 0.0, %v1966
        %v1968 = vpop.f32.mrb[0].mxu0
        %v1969 = vpop.f32.mrb[0].mxu0
        %v1970 = vadd.f32 0.0, %v1969
        %v1971 = vpop.f32.mrb[0].mxu0
        %1972 = vmatprep.mubr.bf16.mxu0 0
        %1973 = vmatmul.mubr.bf16.gmra.mrb[0].mxu0 %v1835
        %v1974 = vpop.f32.mrb[0].mxu0
        %v1975 = vadd.f32 0.0, %v1974
        %v1976 = vpop.f32.mrb[0].mxu0
        %v1977 = vpop.f32.mrb[0].mxu0
        %v1978 = vadd.f32 0.0, %v1977
        %v1979 = vpop.f32.mrb[0].mxu0
        %1980 = vmatprep.mubr.bf16.mxu0 0
        %1981 = vmatmul.mubr.bf16.gmra.mrb[0].mxu0 %v1838
        %v1982 = vpop.f32.mrb[0].mxu0
        %v1983 = vadd.f32 0.0, %v1982
        %v1984 = vpop.f32.mrb[0].mxu0
        %v1985 = vpop.f32.mrb[0].mxu0
        %v1986 = vadd.f32 0.0, %v1985
        %v1987 = vpop.f32.mrb[0].mxu0
        %1988 = vmatprep.mubr.bf16.mxu0 0
        %1989 = vmatmul.mubr.bf16.gmra.mrb[0].mxu0 %v1841
        %v1990 = vpop.f32.mrb[0].mxu0
        %v1991 = vadd.f32 0.0, %v1990
        %v1992 = vpop.f32.mrb[0].mxu0
        %v1993 = vpop.f32.mrb[0].mxu0
        %v1994 = vadd.f32 0.0, %v1993
        %v1995 = vpop.f32.mrb[0].mxu0
        %1996 = vmatprep.mubr.bf16.mxu0 0
        %1997 = vmatmul.mubr.bf16.gmra.mrb[0].mxu0 %v1844
        %v1998 = vpop.f32.mrb[0].mxu0
        %v1999 = vadd.f32 0.0, %v1998
        %v2000 = vpop.f32.mrb[0].mxu0
        %v2001 = vpop.f32.mrb[0].mxu0
        %v2002 = vadd.f32 0.0, %v2001
        %v2003 = vpop.f32.mrb[0].mxu0
        %2004 = vmatprep.mubr.bf16.mxu0 0
        %2005 = vmatmul.mubr.bf16.gmra.mrb[0].mxu0 %v1847
        %v2006 = vpop.f32.mrb[0].mxu0
        %v2007 = vadd.f32 0.0, %v2006
        %v2008 = vpop.f32.mrb[0].mxu0
        %v2009 = vpop.f32.mrb[0].mxu0
        %v2010 = vadd.f32 0.0, %v2009
        %v2011 = vpop.f32.mrb[0].mxu0
        %2012 = vdwg.mxu0
        %2041 = vrot.lane.b32.xlu0 %v1887, 8
        %v2042 = vpop.permute.xlu0 %2041
        %2043 = vrot.lane.b32.xlu0 %v1890, 8
        %v2044 = vpop.permute.xlu0 %2043
        %2045 = vrot.lane.b32.xlu0 %v1895, 8
        %v2046 = vpop.permute.xlu0 %2045
        %2047 = vrot.lane.b32.xlu0 %v1898, 8
        %v2048 = vpop.permute.xlu0 %2047
        %2049 = vrot.lane.b32.xlu0 %v1903, 8
        %v2050 = vpop.permute.xlu0 %2049
        %2051 = vrot.lane.b32.xlu0 %v1906, 8
        %v2052 = vpop.permute.xlu0 %2051
        %2053 = vrot.lane.b32.xlu0 %v1911, 8
        %v2054 = vpop.permute.xlu0 %2053
        %2055 = vrot.lane.b32.xlu0 %v1914, 8
        %v2056 = vpop.permute.xlu0 %2055
        %2057 = vrot.lane.b32.xlu0 %v1919, 8
        %v2058 = vpop.permute.xlu0 %2057
        %2059 = vrot.lane.b32.xlu0 %v1922, 8
        %v2060 = vpop.permute.xlu0 %2059
        %2061 = vrot.lane.b32.xlu0 %v1927, 8
        %v2062 = vpop.permute.xlu0 %2061
        %2063 = vrot.lane.b32.xlu0 %v1930, 8
        %v2064 = vpop.permute.xlu0 %2063
        %2065 = vrot.lane.b32.xlu0 %v1935, 8
        %v2066 = vpop.permute.xlu0 %2065
        %2067 = vrot.lane.b32.xlu0 %v1938, 8
        %v2068 = vpop.permute.xlu0 %2067
        %2069 = vrot.lane.b32.xlu0 %v1943, 8
        %v2070 = vpop.permute.xlu0 %2069
        %2071 = vrot.lane.b32.xlu0 %v1946, 8
        %v2072 = vpop.permute.xlu0 %2071
        %2073 = vrot.lane.b32.xlu0 %v1951, 8
        %v2074 = vpop.permute.xlu0 %2073
        %2075 = vrot.lane.b32.xlu0 %v1954, 8
        %v2076 = vpop.permute.xlu0 %2075
        %2077 = vrot.lane.b32.xlu0 %v1959, 8
        %v2078 = vpop.permute.xlu0 %2077
        %2079 = vrot.lane.b32.xlu0 %v1962, 8
        %v2080 = vpop.permute.xlu0 %2079
        %2081 = vrot.lane.b32.xlu0 %v1967, 8
        %v2082 = vpop.permute.xlu0 %2081
        %2083 = vrot.lane.b32.xlu0 %v1970, 8
        %v2084 = vpop.permute.xlu0 %2083
        %2085 = vrot.lane.b32.xlu0 %v1975, 8
        %v2086 = vpop.permute.xlu0 %2085
        %2087 = vrot.lane.b32.xlu0 %v1978, 8
        %v2088 = vpop.permute.xlu0 %2087
        %2089 = vrot.lane.b32.xlu0 %v1983, 8
        %v2090 = vpop.permute.xlu0 %2089
        %2091 = vrot.lane.b32.xlu0 %v1986, 8
        %v2092 = vpop.permute.xlu0 %2091
        %2093 = vrot.lane.b32.xlu0 %v1991, 8
        %v2094 = vpop.permute.xlu0 %2093
        %2095 = vrot.lane.b32.xlu0 %v1994, 8
        %v2096 = vpop.permute.xlu0 %2095
        %v2125 = vadd.f32 %v1887, %v724
        %v2126 = vadd.f32 %v1890, %v724
        %v2127 = vadd.f32 %v1895, %v724
        %v2128 = vadd.f32 %v1898, %v724
        %v2129 = vadd.f32 %v1903, %v2042
        %v2130 = vadd.f32 %v1906, %v2044
        %v2131 = vadd.f32 %v1911, %v2046
        %v2132 = vadd.f32 %v1914, %v2048
        %v2133 = vadd.f32 %v1919, %v2050
        %v2134 = vadd.f32 %v1922, %v2052
        %v2135 = vadd.f32 %v1927, %v2054
        %v2136 = vadd.f32 %v1930, %v2056
        %v2137 = vadd.f32 %v1935, %v2058
        %v2138 = vadd.f32 %v1938, %v2060
        %v2139 = vadd.f32 %v1943, %v2062
        %v2140 = vadd.f32 %v1946, %v2064
        %v2141 = vadd.f32 %v1951, %v2066
        %v2142 = vadd.f32 %v1954, %v2068
        %v2143 = vadd.f32 %v1959, %v2070
        %v2144 = vadd.f32 %v1962, %v2072
        %v2145 = vadd.f32 %v1967, %v2074
        %v2146 = vadd.f32 %v1970, %v2076
        %v2147 = vadd.f32 %v1975, %v2078
        %v2148 = vadd.f32 %v1978, %v2080
        %v2149 = vadd.f32 %v1983, %v2082
        %v2150 = vadd.f32 %v1986, %v2084
        %v2151 = vadd.f32 %v1991, %v2086
        %v2152 = vadd.f32 %v1994, %v2088
        %v2153 = vadd.f32 %v1999, %v2090
        %v2154 = vadd.f32 %v2002, %v2092
        %v2155 = vadd.f32 %v2007, %v2094
        %v2156 = vadd.f32 %v2010, %v2096
        %2161 = vrot.lane.b32.xlu0 %v1903, 120
        %v2162 = vpop.permute.xlu0 %2161
        %2163 = vrot.lane.b32.xlu0 %v1906, 120
        %v2164 = vpop.permute.xlu0 %2163
        %2165 = vrot.lane.b32.xlu0 %v1911, 120
        %v2166 = vpop.permute.xlu0 %2165
        %2167 = vrot.lane.b32.xlu0 %v1914, 120
        %v2168 = vpop.permute.xlu0 %2167
        %2169 = vrot.lane.b32.xlu0 %v1919, 120
        %v2170 = vpop.permute.xlu0 %2169
        %2171 = vrot.lane.b32.xlu0 %v1922, 120
        %v2172 = vpop.permute.xlu0 %2171
        %2173 = vrot.lane.b32.xlu0 %v1927, 120
        %v2174 = vpop.permute.xlu0 %2173
        %2175 = vrot.lane.b32.xlu0 %v1930, 120
        %v2176 = vpop.permute.xlu0 %2175
        %2177 = vrot.lane.b32.xlu0 %v1935, 120
        %v2178 = vpop.permute.xlu0 %2177
        %2179 = vrot.lane.b32.xlu0 %v1938, 120
        %v2180 = vpop.permute.xlu0 %2179
        %2181 = vrot.lane.b32.xlu0 %v1943, 120
        %v2182 = vpop.permute.xlu0 %2181
        %2183 = vrot.lane.b32.xlu0 %v1946, 120
        %v2184 = vpop.permute.xlu0 %2183
        %2185 = vrot.lane.b32.xlu0 %v1951, 120
        %v2186 = vpop.permute.xlu0 %2185
        %2187 = vrot.lane.b32.xlu0 %v1954, 120
        %v2188 = vpop.permute.xlu0 %2187
        %2189 = vrot.lane.b32.xlu0 %v1959, 120
        %v2190 = vpop.permute.xlu0 %2189
        %2191 = vrot.lane.b32.xlu0 %v1962, 120
        %v2192 = vpop.permute.xlu0 %2191
        %2193 = vrot.lane.b32.xlu0 %v1967, 120
        %v2194 = vpop.permute.xlu0 %2193
        %2195 = vrot.lane.b32.xlu0 %v1970, 120
        %v2196 = vpop.permute.xlu0 %2195
        %2197 = vrot.lane.b32.xlu0 %v1975, 120
        %v2198 = vpop.permute.xlu0 %2197
        %2199 = vrot.lane.b32.xlu0 %v1978, 120
        %v2200 = vpop.permute.xlu0 %2199
        %2201 = vrot.lane.b32.xlu0 %v1983, 120
        %v2202 = vpop.permute.xlu0 %2201
        %2203 = vrot.lane.b32.xlu0 %v1986, 120
        %v2204 = vpop.permute.xlu0 %2203
        %2205 = vrot.lane.b32.xlu0 %v1991, 120
        %v2206 = vpop.permute.xlu0 %2205
        %2207 = vrot.lane.b32.xlu0 %v1994, 120
        %v2208 = vpop.permute.xlu0 %2207
        %2209 = vrot.lane.b32.xlu0 %v1999, 120
        %v2210 = vpop.permute.xlu0 %2209
        %2211 = vrot.lane.b32.xlu0 %v2002, 120
        %v2212 = vpop.permute.xlu0 %2211
        %2213 = vrot.lane.b32.xlu0 %v2007, 120
        %v2214 = vpop.permute.xlu0 %2213
        %2215 = vrot.lane.b32.xlu0 %v2010, 120
        %v2216 = vpop.permute.xlu0 %2215
        %v2245 = vadd.f32 %v2125, %v2162
        %v2246 = vadd.f32 %v2126, %v2164
        %v2247 = vadd.f32 %v2127, %v2166
        %v2248 = vadd.f32 %v2128, %v2168
        %v2249 = vadd.f32 %v2129, %v2170
        %v2250 = vadd.f32 %v2130, %v2172
        %v2251 = vadd.f32 %v2131, %v2174
        %v2252 = vadd.f32 %v2132, %v2176
        %v2253 = vadd.f32 %v2133, %v2178
        %v2254 = vadd.f32 %v2134, %v2180
        %v2255 = vadd.f32 %v2135, %v2182
        %v2256 = vadd.f32 %v2136, %v2184
        %v2257 = vadd.f32 %v2137, %v2186
        %v2258 = vadd.f32 %v2138, %v2188
        %v2259 = vadd.f32 %v2139, %v2190
        %v2260 = vadd.f32 %v2140, %v2192
        %v2261 = vadd.f32 %v2141, %v2194
        %v2262 = vadd.f32 %v2142, %v2196
        %v2263 = vadd.f32 %v2143, %v2198
        %v2264 = vadd.f32 %v2144, %v2200
        %v2265 = vadd.f32 %v2145, %v2202
        %v2266 = vadd.f32 %v2146, %v2204
        %v2267 = vadd.f32 %v2147, %v2206
        %v2268 = vadd.f32 %v2148, %v2208
        %v2269 = vadd.f32 %v2149, %v2210
        %v2270 = vadd.f32 %v2150, %v2212
        %v2271 = vadd.f32 %v2151, %v2214
        %v2272 = vadd.f32 %v2152, %v2216
        %v2273 = vadd.f32 %v2153, %v903
        %v2274 = vadd.f32 %v2154, %v903
        %v2275 = vadd.f32 %v2155, %v903
        %v2276 = vadd.f32 %v2156, %v903
        %v2277 = vlaneseq
        %v2278 = vshrl.u32 %v2277, 7
        %v2279 = vsub.s32 0, %v2278
        %v2280 = vrot.slane %v1751, %v2279
        %2282 = vrot.lane.b32.xlu0 %v2280, 8
        %v2283 = vpop.permute.xlu0 %2282
        %v2285 = vmul.f32 %v2245, %v2283
        %v2286 = vmul.f32 %v2246, %v2283
        %v2287 = vmul.f32 %v2247, %v2283
        %v2288 = vmul.f32 %v2248, %v2283
        %v2289 = vmul.f32 %v2249, %v2283
        %v2290 = vmul.f32 %v2250, %v2283
        %v2291 = vmul.f32 %v2251, %v2283
        %v2292 = vmul.f32 %v2252, %v2283
        %v2293 = vmul.f32 %v2253, %v2283
        %v2294 = vmul.f32 %v2254, %v2283
        %v2295 = vmul.f32 %v2255, %v2283
        %v2296 = vmul.f32 %v2256, %v2283
        %v2297 = vmul.f32 %v2257, %v2283
        %v2298 = vmul.f32 %v2258, %v2283
        %v2299 = vmul.f32 %v2259, %v2283
        %v2300 = vmul.f32 %v2260, %v2283
        %v2301 = vmul.f32 %v2261, %v2283
        %v2302 = vmul.f32 %v2262, %v2283
        %v2303 = vmul.f32 %v2263, %v2283
        %v2304 = vmul.f32 %v2264, %v2283
        %v2305 = vmul.f32 %v2265, %v2283
        %v2306 = vmul.f32 %v2266, %v2283
        %v2307 = vmul.f32 %v2267, %v2283
        %v2308 = vmul.f32 %v2268, %v2283
        %v2309 = vmul.f32 %v2269, %v2283
        %v2310 = vmul.f32 %v2270, %v2283
        %v2311 = vmul.f32 %v2271, %v2283
        %v2312 = vmul.f32 %v2272, %v2283
        %v2313 = vmul.f32 %v2273, %v2283
        %v2314 = vmul.f32 %v2274, %v2283
        %v2315 = vmul.f32 %v2275, %v2283
        %v2316 = vmul.f32 %v2276, %v2283
        %v2317 = vlaneseq
        %v2318 = vshrl.u32 %v2317, 7
        %v2319 = vsub.s32 0, %v2318
        %v2320 = vrot.slane %v1752, %v2319
        %2322 = vrot.lane.b32.xlu0 %v2320, 8
        %v2323 = vpop.permute.xlu0 %2322
        %v2325 = vadd.f32 %v2285, %v2323
        %v2326 = vadd.f32 %v2286, %v2323
        %v2327 = vadd.f32 %v2287, %v2323
        %v2328 = vadd.f32 %v2288, %v2323
        %v2329 = vadd.f32 %v2289, %v2323
        %v2330 = vadd.f32 %v2290, %v2323
        %v2331 = vadd.f32 %v2291, %v2323
        %v2332 = vadd.f32 %v2292, %v2323
        %v2333 = vadd.f32 %v2293, %v2323
        %v2334 = vadd.f32 %v2294, %v2323
        %v2335 = vadd.f32 %v2295, %v2323
        %v2336 = vadd.f32 %v2296, %v2323
        %v2337 = vadd.f32 %v2297, %v2323
        %v2338 = vadd.f32 %v2298, %v2323
        %v2339 = vadd.f32 %v2299, %v2323
        %v2340 = vadd.f32 %v2300, %v2323
        %v2341 = vadd.f32 %v2301, %v2323
        %v2342 = vadd.f32 %v2302, %v2323
        %v2343 = vadd.f32 %v2303, %v2323
        %v2344 = vadd.f32 %v2304, %v2323
        %v2345 = vadd.f32 %v2305, %v2323
        %v2346 = vadd.f32 %v2306, %v2323
        %v2347 = vadd.f32 %v2307, %v2323
        %v2348 = vadd.f32 %v2308, %v2323
        %v2349 = vadd.f32 %v2309, %v2323
        %v2350 = vadd.f32 %v2310, %v2323
        %v2351 = vadd.f32 %v2311, %v2323
        %v2352 = vadd.f32 %v2312, %v2323
        %v2353 = vadd.f32 %v2313, %v2323
        %v2354 = vadd.f32 %v2314, %v2323
        %v2355 = vadd.f32 %v2315, %v2323
        %v2356 = vadd.f32 %v2316, %v2323
        %v2357 = vmax.f32 %v2325, 0.0
        %v2358 = vmax.f32 %v2326, 0.0
        %v2359 = vmax.f32 %v2327, 0.0
        %v2360 = vmax.f32 %v2328, 0.0
        %v2361 = vmax.f32 %v2329, 0.0
        %v2362 = vmax.f32 %v2330, 0.0
        %v2363 = vmax.f32 %v2331, 0.0
        %v2364 = vmax.f32 %v2332, 0.0
        %v2365 = vmax.f32 %v2333, 0.0
        %v2366 = vmax.f32 %v2334, 0.0
        %v2367 = vmax.f32 %v2335, 0.0
        %v2368 = vmax.f32 %v2336, 0.0
        %v2369 = vmax.f32 %v2337, 0.0
        %v2370 = vmax.f32 %v2338, 0.0
        %v2371 = vmax.f32 %v2339, 0.0
        %v2372 = vmax.f32 %v2340, 0.0
        %v2373 = vmax.f32 %v2341, 0.0
        %v2374 = vmax.f32 %v2342, 0.0
        %v2375 = vmax.f32 %v2343, 0.0
        %v2376 = vmax.f32 %v2344, 0.0
        %v2377 = vmax.f32 %v2345, 0.0
        %v2378 = vmax.f32 %v2346, 0.0
        %v2379 = vmax.f32 %v2347, 0.0
        %v2380 = vmax.f32 %v2348, 0.0
        %v2381 = vmax.f32 %v2349, 0.0
        %v2382 = vmax.f32 %v2350, 0.0
        %v2383 = vmax.f32 %v2351, 0.0
        %v2384 = vmax.f32 %v2352, 0.0
        %v2385 = vmax.f32 %v2353, 0.0
        %v2386 = vmax.f32 %v2354, 0.0
        %v2387 = vmax.f32 %v2355, 0.0
        %v2388 = vmax.f32 %v2356, 0.0
        %v2389 = vld [vmem:[%s309] sm:$0x7]
        %v2390 = vlaneseq
        %v2391 = vshrl.u32 %v2390, 7
        %v2392 = vsub.s32 0, %v2391
        %v2393 = vrot.slane %v2389, %v2392
        %2395 = vrot.lane.b32.xlu0 %v2393, 8
        %v2396 = vpop.permute.xlu0 %2395
        %v2398 = vmul.f32 %v1045, %v2396
        %v2399 = vmul.f32 %v1046, %v2396
        %v2400 = vmul.f32 %v1047, %v2396
        %v2401 = vmul.f32 %v1048, %v2396
        %v2402 = vmul.f32 %v1049, %v2396
        %v2403 = vmul.f32 %v1050, %v2396
        %v2404 = vmul.f32 %v1051, %v2396
        %v2405 = vmul.f32 %v1052, %v2396
        %v2406 = vmul.f32 %v1053, %v2396
        %v2407 = vmul.f32 %v1054, %v2396
        %v2408 = vmul.f32 %v1055, %v2396
        %v2409 = vmul.f32 %v1056, %v2396
        %v2410 = vmul.f32 %v1057, %v2396
        %v2411 = vmul.f32 %v1058, %v2396
        %v2412 = vmul.f32 %v1059, %v2396
        %v2413 = vmul.f32 %v1060, %v2396
        %v2414 = vmul.f32 %v1061, %v2396
        %v2415 = vmul.f32 %v1062, %v2396
        %v2416 = vmul.f32 %v1063, %v2396
        %v2417 = vmul.f32 %v1064, %v2396
        %v2418 = vmul.f32 %v1065, %v2396
        %v2419 = vmul.f32 %v1066, %v2396
        %v2420 = vmul.f32 %v1067, %v2396
        %v2421 = vmul.f32 %v1068, %v2396
        %v2422 = vmul.f32 %v1069, %v2396
        %v2423 = vmul.f32 %v1070, %v2396
        %v2424 = vmul.f32 %v1071, %v2396
        %v2425 = vmul.f32 %v1072, %v2396
        %v2426 = vmul.f32 %v1073, %v2396
        %v2427 = vmul.f32 %v1074, %v2396
        %v2428 = vmul.f32 %v1075, %v2396
        %v2429 = vmul.f32 %v1076, %v2396
        %v2430 = vlaneseq
        %v2431 = vshrl.u32 %v2430, 7
        %v2432 = vsub.s32 1, %v2431
        %v2433 = vrot.slane %v2389, %v2432
        %2435 = vrot.lane.b32.xlu0 %v2433, 8
        %v2436 = vpop.permute.xlu0 %2435
        %v2438 = vmul.f32 %v1701, %v2436
        %v2439 = vmul.f32 %v1702, %v2436
        %v2440 = vmul.f32 %v1703, %v2436
        %v2441 = vmul.f32 %v1704, %v2436
        %v2442 = vmul.f32 %v1705, %v2436
        %v2443 = vmul.f32 %v1706, %v2436
        %v2444 = vmul.f32 %v1707, %v2436
        %v2445 = vmul.f32 %v1708, %v2436
        %v2446 = vmul.f32 %v1709, %v2436
        %v2447 = vmul.f32 %v1710, %v2436
        %v2448 = vmul.f32 %v1711, %v2436
        %v2449 = vmul.f32 %v1712, %v2436
        %v2450 = vmul.f32 %v1713, %v2436
        %v2451 = vmul.f32 %v1714, %v2436
        %v2452 = vmul.f32 %v1715, %v2436
        %v2453 = vmul.f32 %v1716, %v2436
        %v2454 = vmul.f32 %v1717, %v2436
        %v2455 = vmul.f32 %v1718, %v2436
        %v2456 = vmul.f32 %v1719, %v2436
        %v2457 = vmul.f32 %v1720, %v2436
        %v2458 = vmul.f32 %v1721, %v2436
        %v2459 = vmul.f32 %v1722, %v2436
        %v2460 = vmul.f32 %v1723, %v2436
        %v2461 = vmul.f32 %v1724, %v2436
        %v2462 = vmul.f32 %v1725, %v2436
        %v2463 = vmul.f32 %v1726, %v2436
        %v2464 = vmul.f32 %v1727, %v2436
        %v2465 = vmul.f32 %v1728, %v2436
        %v2466 = vmul.f32 %v1729, %v2436
        %v2467 = vmul.f32 %v1730, %v2436
        %v2468 = vmul.f32 %v1731, %v2436
        %v2469 = vmul.f32 %v1732, %v2436
        %v2470 = vadd.f32 %v2398, %v2438
        %v2471 = vadd.f32 %v2399, %v2439
        %v2472 = vadd.f32 %v2400, %v2440
        %v2473 = vadd.f32 %v2401, %v2441
        %v2474 = vadd.f32 %v2402, %v2442
        %v2475 = vadd.f32 %v2403, %v2443
        %v2476 = vadd.f32 %v2404, %v2444
        %v2477 = vadd.f32 %v2405, %v2445
        %v2478 = vadd.f32 %v2406, %v2446
        %v2479 = vadd.f32 %v2407, %v2447
        %v2480 = vadd.f32 %v2408, %v2448
        %v2481 = vadd.f32 %v2409, %v2449
        %v2482 = vadd.f32 %v2410, %v2450
        %v2483 = vadd.f32 %v2411, %v2451
        %v2484 = vadd.f32 %v2412, %v2452
        %v2485 = vadd.f32 %v2413, %v2453
        %v2486 = vadd.f32 %v2414, %v2454
        %v2487 = vadd.f32 %v2415, %v2455
        %v2488 = vadd.f32 %v2416, %v2456
        %v2489 = vadd.f32 %v2417, %v2457
        %v2490 = vadd.f32 %v2418, %v2458
        %v2491 = vadd.f32 %v2419, %v2459
        %v2492 = vadd.f32 %v2420, %v2460
        %v2493 = vadd.f32 %v2421, %v2461
        %v2494 = vadd.f32 %v2422, %v2462
        %v2495 = vadd.f32 %v2423, %v2463
        %v2496 = vadd.f32 %v2424, %v2464
        %v2497 = vadd.f32 %v2425, %v2465
        %v2498 = vadd.f32 %v2426, %v2466
        %v2499 = vadd.f32 %v2427, %v2467
        %v2500 = vadd.f32 %v2428, %v2468
        %v2501 = vadd.f32 %v2429, %v2469
        %v2502 = vlaneseq
        %v2503 = vshrl.u32 %v2502, 7
        %v2504 = vsub.s32 2, %v2503
        %v2505 = vrot.slane %v2389, %v2504
        %2507 = vrot.lane.b32.xlu0 %v2505, 8
        %v2508 = vpop.permute.xlu0 %2507
        %v2510 = vmul.f32 %v2357, %v2508
        %v2511 = vmul.f32 %v2358, %v2508
        %v2512 = vmul.f32 %v2359, %v2508
        %v2513 = vmul.f32 %v2360, %v2508
        %v2514 = vmul.f32 %v2361, %v2508
        %v2515 = vmul.f32 %v2362, %v2508
        %v2516 = vmul.f32 %v2363, %v2508
        %v2517 = vmul.f32 %v2364, %v2508
        %v2518 = vmul.f32 %v2365, %v2508
        %v2519 = vmul.f32 %v2366, %v2508
        %v2520 = vmul.f32 %v2367, %v2508
        %v2521 = vmul.f32 %v2368, %v2508
        %v2522 = vmul.f32 %v2369, %v2508
        %v2523 = vmul.f32 %v2370, %v2508
        %v2524 = vmul.f32 %v2371, %v2508
        %v2525 = vmul.f32 %v2372, %v2508
        %v2526 = vmul.f32 %v2373, %v2508
        %v2527 = vmul.f32 %v2374, %v2508
        %v2528 = vmul.f32 %v2375, %v2508
        %v2529 = vmul.f32 %v2376, %v2508
        %v2530 = vmul.f32 %v2377, %v2508
        %v2531 = vmul.f32 %v2378, %v2508
        %v2532 = vmul.f32 %v2379, %v2508
        %v2533 = vmul.f32 %v2380, %v2508
        %v2534 = vmul.f32 %v2381, %v2508
        %v2535 = vmul.f32 %v2382, %v2508
        %v2536 = vmul.f32 %v2383, %v2508
        %v2537 = vmul.f32 %v2384, %v2508
        %v2538 = vmul.f32 %v2385, %v2508
        %v2539 = vmul.f32 %v2386, %v2508
        %v2540 = vmul.f32 %v2387, %v2508
        %v2541 = vmul.f32 %v2388, %v2508
        %v2542 = vadd.f32 %v2470, %v2510
        %v2543 = vadd.f32 %v2471, %v2511
        %v2544 = vadd.f32 %v2472, %v2512
        %v2545 = vadd.f32 %v2473, %v2513
        %v2546 = vadd.f32 %v2474, %v2514
        %v2547 = vadd.f32 %v2475, %v2515
        %v2548 = vadd.f32 %v2476, %v2516
        %v2549 = vadd.f32 %v2477, %v2517
        %v2550 = vadd.f32 %v2478, %v2518
        %v2551 = vadd.f32 %v2479, %v2519
        %v2552 = vadd.f32 %v2480, %v2520
        %v2553 = vadd.f32 %v2481, %v2521
        %v2554 = vadd.f32 %v2482, %v2522
        %v2555 = vadd.f32 %v2483, %v2523
        %v2556 = vadd.f32 %v2484, %v2524
        %v2557 = vadd.f32 %v2485, %v2525
        %v2558 = vadd.f32 %v2486, %v2526
        %v2559 = vadd.f32 %v2487, %v2527
        %v2560 = vadd.f32 %v2488, %v2528
        %v2561 = vadd.f32 %v2489, %v2529
        %v2562 = vadd.f32 %v2490, %v2530
        %v2563 = vadd.f32 %v2491, %v2531
        %v2564 = vadd.f32 %v2492, %v2532
        %v2565 = vadd.f32 %v2493, %v2533
        %v2566 = vadd.f32 %v2494, %v2534
        %v2567 = vadd.f32 %v2495, %v2535
        %v2568 = vadd.f32 %v2496, %v2536
        %v2569 = vadd.f32 %v2497, %v2537
        %v2570 = vadd.f32 %v2498, %v2538
        %v2571 = vadd.f32 %v2499, %v2539
        %v2572 = vadd.f32 %v2500, %v2540
        %v2573 = vadd.f32 %v2501, %v2541
        %2606 = vrot.lane.b32.xlu0 %v2542, 120
        %v2607 = vpop.permute.xlu0 %2606
        %2608 = vrot.lane.b32.xlu0 %v2543, 120
        %v2609 = vpop.permute.xlu0 %2608
        %2610 = vrot.lane.b32.xlu0 %v2544, 120
        %v2611 = vpop.permute.xlu0 %2610
        %2612 = vrot.lane.b32.xlu0 %v2545, 120
        %v2613 = vpop.permute.xlu0 %2612
        %2614 = vrot.lane.b32.xlu0 %v2546, 120
        %v2615 = vpop.permute.xlu0 %2614
        %2616 = vrot.lane.b32.xlu0 %v2547, 120
        %v2617 = vpop.permute.xlu0 %2616
        %2618 = vrot.lane.b32.xlu0 %v2548, 120
        %v2619 = vpop.permute.xlu0 %2618
        %2620 = vrot.lane.b32.xlu0 %v2549, 120
        %v2621 = vpop.permute.xlu0 %2620
        %2622 = vrot.lane.b32.xlu0 %v2550, 120
        %v2623 = vpop.permute.xlu0 %2622
        %2624 = vrot.lane.b32.xlu0 %v2551, 120
        %v2625 = vpop.permute.xlu0 %2624
        %2626 = vrot.lane.b32.xlu0 %v2552, 120
        %v2627 = vpop.permute.xlu0 %2626
        %2628 = vrot.lane.b32.xlu0 %v2553, 120
        %v2629 = vpop.permute.xlu0 %2628
        %2630 = vrot.lane.b32.xlu0 %v2554, 120
        %v2631 = vpop.permute.xlu0 %2630
        %2632 = vrot.lane.b32.xlu0 %v2555, 120
        %v2633 = vpop.permute.xlu0 %2632
        %2634 = vrot.lane.b32.xlu0 %v2556, 120
        %v2635 = vpop.permute.xlu0 %2634
        %2636 = vrot.lane.b32.xlu0 %v2557, 120
        %v2637 = vpop.permute.xlu0 %2636
        %2638 = vrot.lane.b32.xlu0 %v2558, 120
        %v2639 = vpop.permute.xlu0 %2638
        %2640 = vrot.lane.b32.xlu0 %v2559, 120
        %v2641 = vpop.permute.xlu0 %2640
        %2642 = vrot.lane.b32.xlu0 %v2560, 120
        %v2643 = vpop.permute.xlu0 %2642
        %2644 = vrot.lane.b32.xlu0 %v2561, 120
        %v2645 = vpop.permute.xlu0 %2644
        %2646 = vrot.lane.b32.xlu0 %v2562, 120
        %v2647 = vpop.permute.xlu0 %2646
        %2648 = vrot.lane.b32.xlu0 %v2563, 120
        %v2649 = vpop.permute.xlu0 %2648
        %2650 = vrot.lane.b32.xlu0 %v2564, 120
        %v2651 = vpop.permute.xlu0 %2650
        %2652 = vrot.lane.b32.xlu0 %v2565, 120
        %v2653 = vpop.permute.xlu0 %2652
        %2654 = vrot.lane.b32.xlu0 %v2566, 120
        %v2655 = vpop.permute.xlu0 %2654
        %2656 = vrot.lane.b32.xlu0 %v2567, 120
        %v2657 = vpop.permute.xlu0 %2656
        %2658 = vrot.lane.b32.xlu0 %v2568, 120
        %v2659 = vpop.permute.xlu0 %2658
        %2660 = vrot.lane.b32.xlu0 %v2569, 120
        %v2661 = vpop.permute.xlu0 %2660
        %2662 = vrot.lane.b32.xlu0 %v2570, 120
        %v2663 = vpop.permute.xlu0 %2662
        %2664 = vrot.lane.b32.xlu0 %v2571, 120
        %v2665 = vpop.permute.xlu0 %2664
        %2666 = vrot.lane.b32.xlu0 %v2572, 120
        %v2667 = vpop.permute.xlu0 %2666
        %2668 = vrot.lane.b32.xlu0 %v2573, 120
        %v2669 = vpop.permute.xlu0 %2668
        %2702 = vst.msk [vmem:[%s361] sm:$0xff] %vm480, %v2607
        %2703 = vst.msk [vmem:[%s361 + $0x8] sm:$0xff] %vm480, %v2609
        %2704 = vst.msk [vmem:[%s361 + $0x10] sm:$0xff] %vm480, %v2611
        %2705 = vst.msk [vmem:[%s361 + $0x18] sm:$0xff] %vm480, %v2613
        %2706 = vst.msk [vmem:[%s361 + $0x20] sm:$0xff] %vm480, %v2615
        %2707 = vst.msk [vmem:[%s361 + $0x28] sm:$0xff] %vm480, %v2617
        %2708 = vst.msk [vmem:[%s361 + $0x30] sm:$0xff] %vm480, %v2619
        %2709 = vst.msk [vmem:[%s361 + $0x38] sm:$0xff] %vm480, %v2621
        %2710 = vst.msk [vmem:[%s361 + $0x40] sm:$0xff] %vm480, %v2623
        %2711 = vst.msk [vmem:[%s361 + $0x48] sm:$0xff] %vm480, %v2625
        %2712 = vst.msk [vmem:[%s361 + $0x50] sm:$0xff] %vm480, %v2627
        %2713 = vst.msk [vmem:[%s361 + $0x58] sm:$0xff] %vm480, %v2629
        %2714 = vst.msk [vmem:[%s361 + $0x60] sm:$0xff] %vm480, %v2631
        %2715 = vst.msk [vmem:[%s361 + $0x68] sm:$0xff] %vm480, %v2633
        %2716 = vst.msk [vmem:[%s361 + $0x70] sm:$0xff] %vm480, %v2635
        %2717 = vst.msk [vmem:[%s361 + $0x78] sm:$0xff] %vm480, %v2637
        %2718 = vst.msk [vmem:[%s361 + $0x80] sm:$0xff] %vm480, %v2639
        %2719 = vst.msk [vmem:[%s361 + $0x88] sm:$0xff] %vm480, %v2641
        %2720 = vst.msk [vmem:[%s361 + $0x90] sm:$0xff] %vm480, %v2643
        %2721 = vst.msk [vmem:[%s361 + $0x98] sm:$0xff] %vm480, %v2645
        %2722 = vst.msk [vmem:[%s361 + $0xa0] sm:$0xff] %vm480, %v2647
        %2723 = vst.msk [vmem:[%s361 + $0xa8] sm:$0xff] %vm480, %v2649
        %2724 = vst.msk [vmem:[%s361 + $0xb0] sm:$0xff] %vm480, %v2651
        %2725 = vst.msk [vmem:[%s361 + $0xb8] sm:$0xff] %vm480, %v2653
        %2726 = vst.msk [vmem:[%s361 + $0xc0] sm:$0xff] %vm480, %v2655
        %2727 = vst.msk [vmem:[%s361 + $0xc8] sm:$0xff] %vm480, %v2657
        %2728 = vst.msk [vmem:[%s361 + $0xd0] sm:$0xff] %vm480, %v2659
        %2729 = vst.msk [vmem:[%s361 + $0xd8] sm:$0xff] %vm480, %v2661
        %2730 = vst.msk [vmem:[%s361 + $0xe0] sm:$0xff] %vm480, %v2663
        %2731 = vst.msk [vmem:[%s361 + $0xe8] sm:$0xff] %vm480, %v2665
        %2732 = vst.msk [vmem:[%s361 + $0xf0] sm:$0xff] %vm480, %v2667
        %2733 = vst.msk [vmem:[%s361 + $0xf8] sm:$0xff] %vm480, %v2669
        %s2734 = sand.u32 %s165, 1
        %s2735 = scalar_lea.sflag [#allocation4], %s2734
        %s2736 = sand.u32 %s165, 1
        %s2737 = smul.addr %s2736, 256
        %s2738 = scalar_lea.vmem [#allocation11], %s2737
        // Predicated region
        $region61: #{multiscale_temporal_module.3} parent=39 // pred_check
          %p2739 = pneg %p175
        $region62: #{multiscale_temporal_module.3} parent=39 // pred_check_branch
          %2741 = sbr.rel (%p2739) target = $region64
        $region63: #{multiscale_temporal_module.3} parent=39 // pred_region
          #allocation15 [shape = 'u32[6]{0}', space=smem, size = 0x18, scoped, tag = 'DMA stride descriptor']
          %s2742 = smul.u32 4, %s31
          %s2744 = ssub.s32 4096, 4096
          %2745 = vsyncadd %s2735, %s2744
          %s2746 = smul.addr %s30, 64
          %s2747 = sadd.s32 %s2742, %s2746
          %s2748 = smul.addr %s2747, 128
          %s2749 = scalar_lea.hbm %s5, %s2748
          %s2751 = sshll.u32 1, 14
          %s2752 = sxor.u32 4294967295, %s2751
          %s2755 = sshll.u32 7, 18
          %s2756 = sxor.u32 4294967295, %s2755
          %s2757 = sand.u32 0, %s2756
          %s2759 = sor.u32 %s2757, 0
          %s2761 = sshll.u32 3, 24
          %s2762 = sxor.u32 4294967295, %s2761
          %s2763 = sand.u32 %s2759, %s2762
          %s2765 = sor.u32 %s2763, 0
          %s2766 = sshll.u32 %s2738, 4
          %s2767 = int_to_ptr.vmem [resolvable:$true] %s2766
          %2773 = sst [smem:[#allocation15]] 512
          %s2774 = scalar_lea.smem [#allocation15], 1
          %2775 = sst [smem:[%s2774]] 1024
          %s2776 = scalar_lea.smem [#allocation15], 2
          %2777 = sst [smem:[%s2776]] 4
          %s2778 = scalar_lea.smem [#allocation15], 3
          %2779 = sst [smem:[%s2778]] 128
          %s2780 = scalar_lea.smem [#allocation15], 4
          %2781 = sst [smem:[%s2780]] 128
          %s2782 = scalar_lea.smem [#allocation15], 5
          %2783 = sst [smem:[%s2782]] 8
          %2785 = dma.general %s2767, 4096, %s2749, %s2735, [#allocation14], [#allocation15], %s2765, 0
        $region64: #{multiscale_temporal_module.3} parent=39 // pred_fallthru
          _
      $region40: #{multiscale_temporal_module.3} parent=5 // pred_fallthru
        _
      %p2786 = scmp.le.s32.totalorder 2, %s21
      // Predicated region
      $region65: #{multiscale_temporal_module.3} parent=5 // pred_check
        %p2787 = pneg %p2786
      $region66: #{multiscale_temporal_module.3} parent=5 // pred_check_branch
        %2789 = sbr.rel (%p2787) target = $region68
      $region67: #{multiscale_temporal_module.3} parent=5 // pred_region
        %s2790 = ssub.s32 %s21, 2
        // Predicated region
        $region69: #{multiscale_temporal_module.3} parent=67 // pred_check
          %p2791 = pneg %p181
        $region70: #{multiscale_temporal_module.3} parent=67 // pred_check_branch
          %2793 = sbr.rel (%p2791) target = $region72
        $region71: #{multiscale_temporal_module.3} parent=67 // pred_region
          %s2794 = sand.u32 %s166, 1
          %s2795 = scalar_lea.sflag [#allocation4], %s2794
          %s2796 = sand.u32 %s166, 1
          %s2797 = smul.addr %s2796, 256
          %s2798 = scalar_lea.vmem [#allocation11], %s2797
          %2799 = dma.done %s2795, 4096
        $region72: #{multiscale_temporal_module.3} parent=67 // pred_fallthru
          _
      $region68: #{multiscale_temporal_module.3} parent=5 // pred_fallthru
        _
    $region6: #{multiscale_temporal_module.3} parent=1 // loop_footer
      %s25 = sadd.s32 1, %s21
    $region7: #{multiscale_temporal_module.3} parent=1 // loop_footer_branch
      %20 = sbr.rel target = $region3
    $region8: #{multiscale_temporal_module.3} parent=1 // loop_exit
      _
    %2800 = vsyncpa [#allocation3], 1
    %s2801 = scalar_lea.sflag [#allocation3], 1
    %2802 = vsyncpa %s2801, 1
    %2803 = vsyncpa [#allocation6], 1
    %s2804 = scalar_lea.sflag [#allocation6], 1
    %2805 = vsyncpa %s2804, 1
    %2806 = vsyncpa [#allocation9], 1
    %2807 = vsyncpa [#allocation4], 1
    %s2808 = scalar_lea.sflag [#allocation4], 1
    %2809 = vsyncpa %s2808, 1

// kernel: multiscale_temporal_module.2
$region0: #{multiscale_temporal_module.2}
  #allocation0 [shape = 'u32[]', space=smem, size = 0x4, offset = 0x4, fixed_abs, tag = 'smem constant byte address 0x4 - core index']
  #allocation1 [shape = 'u32[144,128]{1,0:T(1,128)}', space=vmem, size = 0x12000, scoped, tag = 'internal scratch']
  #allocation2 [shape = 'f32[1,8]{1,0:T(1,128)}', space=vmem, size = 0x200, scoped, tag = 'scratch operand']
  #allocation21 [shape = 's32[]', space=sflag, size = 0x4, offset = 0, fixed_abs, tag = 'sflag constant byte address 0x0 - dummy sync flag']
  %s0 = inlined_call_operand.hbm [shape: bf16[2,8,64,8], index: 0, kind: input, shape index: {}]
  %s1 = inlined_call_operand.hbm [shape: bf16[3,8,24], index: 1, kind: input, shape index: {}]
  %s2 = inlined_call_operand.hbm [shape: f32[3,8], index: 2, kind: input, shape index: {}]
  %s3 = inlined_call_operand.hbm [shape: f32[3,8], index: 3, kind: input, shape index: {}]
  %s4 = inlined_call_operand.hbm [shape: f32[8,32], index: 4, kind: input, shape index: {}]
  %s5 = inlined_call_operand.hbm [shape: f32[1,32], index: 5, kind: input, shape index: {}]
  %s6 = inlined_call_operand.hbm [shape: f32[1,32], index: 6, kind: input, shape index: {}]
  %s7 = inlined_call_operand.hbm [shape: f32[1,32], index: 7, kind: input, shape index: {}]
  %s8 = inlined_call_operand.hbm [shape: f32[32,24], index: 8, kind: input, shape index: {}]
  %s9 = inlined_call_operand.hbm [shape: f32[1,24], index: 9, kind: input, shape index: {}]
  %s10 = inlined_call_operand.hbm [shape: f32[2,3,8], index: 10, kind: output, shape index: {}]
  %s11 = sld [smem:[#allocation0]]
  $region121: #{multiscale_temporal_module.2} parent=0
    _
  %s13 = ssub.s32 1, %s11
  %s14 = scalar_select 0, %s13, %s11
  $region1: #{multiscale_temporal_module.2} parent=0
    #allocation3 [shape = 'u8[131072]{0}', space=vmem, size = 0x20000, scoped, tag = 'input window, operand 0']
    #allocation4 [shape = 's32[2]{0}', space=sflag, size = 0x8, scoped, tag = 'scoped memory for multiscale_temporal_module.2']
    #allocation5 [shape = 's32[2]{0}', space=sflag, size = 0x8, scoped, tag = 'scoped memory for multiscale_temporal_module.2']
    #allocation6 [shape = 'u8[6144]{0}', space=vmem, size = 0x1800, scoped, tag = 'input window, operand 1, single buffered']
    #allocation7 [shape = 's32[1]{0}', space=sflag, size = 0x4, scoped, tag = 'scoped memory for multiscale_temporal_module.2']
    #allocation8 [shape = 'u8[2048]{0}', space=vmem, size = 0x800, scoped, tag = 'input window, operand 2, single buffered']
    #allocation9 [shape = 'u8[2048]{0}', space=vmem, size = 0x800, scoped, tag = 'input window, operand 3, single buffered']
    #allocation10 [shape = 's32[1]{0}', space=sflag, size = 0x4, scoped, tag = 'scoped memory for multiscale_temporal_module.2']
    #allocation11 [shape = 'u8[4096]{0}', space=vmem, size = 0x1000, scoped, tag = 'input window, operand 4, single buffered']
    #allocation12 [shape = 'u8[512]{0}', space=vmem, size = 0x400, scoped, tag = 'input window, operand 5, single buffered']
    #allocation13 [shape = 's32[1]{0}', space=sflag, size = 0x4, scoped, tag = 'scoped memory for multiscale_temporal_module.2']
    #allocation14 [shape = 'u8[512]{0}', space=vmem, size = 0x400, scoped, tag = 'input window, operand 6, single buffered']
    #allocation15 [shape = 'u8[512]{0}', space=vmem, size = 0x400, scoped, tag = 'input window, operand 7, single buffered']
    #allocation16 [shape = 's32[1]{0}', space=sflag, size = 0x4, scoped, tag = 'scoped memory for multiscale_temporal_module.2']
    #allocation17 [shape = 'u8[16384]{0}', space=vmem, size = 0x4000, scoped, tag = 'input window, operand 8, single buffered']
    #allocation18 [shape = 'u8[512]{0}', space=vmem, size = 0x400, scoped, tag = 'input window, operand 9, single buffered']
    #allocation19 [shape = 's32[1]{0}', space=sflag, size = 0x4, scoped, tag = 'scoped memory for multiscale_temporal_module.2']
    #allocation20 [shape = 'u8[4096]{0}', space=vmem, size = 0x1000, scoped, tag = 'output window, operand 0']
    %15 = vsyncpa [#allocation4], 0
    %s16 = scalar_lea.sflag [#allocation4], 1
    %17 = vsyncpa %s16, 0
    %18 = vsyncpa [#allocation7], 0
    %19 = vsyncpa [#allocation10], 0
    %20 = vsyncpa [#allocation13], 0
    %21 = vsyncpa [#allocation16], 0
    %22 = vsyncpa [#allocation19], 0
    %23 = vsyncpa [#allocation5], 0
    %s24 = scalar_lea.sflag [#allocation5], 1
    %25 = vsyncpa %s24, 0
    loop: start=0, step=1, limit=6
    $region2: #{multiscale_temporal_module.2} parent=1 // loop_pre_header
      _
    $region3: #{multiscale_temporal_module.2} parent=1 // loop_header
      %s27 = sphi 0, %s31
      %p28 = scmp.ge.s32.totalorder %s27, 6
      %s34 = sphi 0, %s46
      %s35 = sphi 0, %s42
      %s36 = sphi 0, %s34
      %s37 = sphi 0, %s35
      %s38 = sphi 0, %s36
      %s39 = sphi 0, %s37
      %s51 = sphi 0, %s53
      %s54 = sphi 0, %s51
      %s55 = sphi 0, %s54
      %s71 = sphi 0, %s55
      %s75 = sphi 0, %s75
      %s77 = sphi 0, %s75
      %s78 = sphi 0, %s77
      %s92 = sphi 0, %s78
      %s96 = sphi 0, %s96
      %s98 = sphi 0, %s96
      %s99 = sphi 0, %s98
      %s113 = sphi 0, %s99
      %s117 = sphi 0, %s117
      %s119 = sphi 0, %s117
      %s120 = sphi 0, %s119
      %s134 = sphi 0, %s120
      %s138 = sphi 0, %s138
      %s140 = sphi 0, %s138
      %s141 = sphi 0, %s140
      %s155 = sphi 0, %s141
      %s159 = sphi 0, %s159
      %s161 = sphi 0, %s159
      %s162 = sphi 0, %s161
      %s176 = sphi 0, %s162
      %s180 = sphi 0, %s180
      %s182 = sphi 0, %s180
      %s183 = sphi 0, %s182
      %s197 = sphi 0, %s183
      %s201 = sphi 0, %s201
      %s203 = sphi 0, %s201
      %s204 = sphi 0, %s203
      %s218 = sphi 0, %s204
      %s222 = sphi 0, %s222
      %s224 = sphi 0, %s222
      %s225 = sphi 0, %s224
      %s239 = sphi 0, %s225
      %s243 = sphi 0, %s243
      %s245 = sphi 0, %s243
      %s246 = sphi 0, %s245
      %s260 = sphi 0, %s246
      %s266 = sphi 0, %s268
      %s269 = sphi 0, %s266
      %s270 = sphi 0, %s269
      %s286 = sphi 0, %s270
    $region4: #{multiscale_temporal_module.2} parent=1 // loop_header_branch
      %30 = sbr.rel (%p28) target = $region8
    $region5: #{multiscale_temporal_module.2} parent=1 // loop_body
      %s32 = ssub.s32 %s27, 1
      %s33 = ssub.s32 %s27, 2
      %s40 = sadd.s32 1, %s35
      %p41 = scmp.ge.s32.totalorder %s40, 2
      %s42 = scalar_select %p41, 0, %s40
      %s43 = sadd.s32 1, %s34
      %s44 = scalar_select %p41, %s43, %s34
      %p45 = scmp.ge.s32.totalorder %s44, 2
      %s46 = scalar_select %p45, 0, %s44
      %s47 = ssub.s32 %s34, %s46
      %s48 = ssub.s32 %s35, %s42
      %s49 = sor.u32 %s47, %s48
      %p50 = scmp.eq.s32.totalorder %s49, 0
      %s52 = sadd.s32 %s51, 1
      %s53 = scalar_select %p50, %s51, %s52
      %p56 = pneg %p50
      %p57 = scmp.eq.s32.totalorder %s27, 3
      %p58 = por %p56, %p57
      %p59 = scmp.ne.s32.totalorder %s51, %s54
      %p60 = scmp.eq.s32.totalorder %s27, 0
      %p61 = por %p59, %p60
      %p62 = scmp.ne.s32.totalorder %s51, %s54
      %p63 = scmp.eq.s32.totalorder %s32, 3
      %p64 = por %p62, %p63
      %p65 = scmp.ne.s32.totalorder %s54, %s55
      %p66 = scmp.eq.s32.totalorder %s32, 0
      %p67 = por %p65, %p66
      %p68 = scmp.ne.s32.totalorder %s54, %s55
      %p69 = scmp.eq.s32.totalorder %s33, 3
      %p70 = por %p68, %p69
      %p72 = scmp.ne.s32.totalorder %s55, %s71
      %p73 = scmp.eq.s32.totalorder %s33, 0
      %p74 = por %p72, %p73
      %s76 = sadd.s32 %s75, 1
      %p79 = scmp.eq.s32.totalorder %s27, 3
      %p80 = scmp.ne.s32.totalorder %s75, %s77
      %p81 = scmp.eq.s32.totalorder %s27, 0
      %p82 = por %p80, %p81
      %p83 = scmp.ne.s32.totalorder %s75, %s77
      %p84 = scmp.eq.s32.totalorder %s32, 3
      %p85 = por %p83, %p84
      %p86 = scmp.ne.s32.totalorder %s77, %s78
      %p87 = scmp.eq.s32.totalorder %s32, 0
      %p88 = por %p86, %p87
      %p89 = scmp.ne.s32.totalorder %s77, %s78
      %p90 = scmp.eq.s32.totalorder %s33, 3
      %p91 = por %p89, %p90
      %p93 = scmp.ne.s32.totalorder %s78, %s92
      %p94 = scmp.eq.s32.totalorder %s33, 0
      %p95 = por %p93, %p94
      %s97 = sadd.s32 %s96, 1
      %p100 = scmp.eq.s32.totalorder %s27, 3
      %p101 = scmp.ne.s32.totalorder %s96, %s98
      %p102 = scmp.eq.s32.totalorder %s27, 0
      %p103 = por %p101, %p102
      %p104 = scmp.ne.s32.totalorder %s96, %s98
      %p105 = scmp.eq.s32.totalorder %s32, 3
      %p106 = por %p104, %p105
      %p107 = scmp.ne.s32.totalorder %s98, %s99
      %p108 = scmp.eq.s32.totalorder %s32, 0
      %p109 = por %p107, %p108
      %p110 = scmp.ne.s32.totalorder %s98, %s99
      %p111 = scmp.eq.s32.totalorder %s33, 3
      %p112 = por %p110, %p111
      %p114 = scmp.ne.s32.totalorder %s99, %s113
      %p115 = scmp.eq.s32.totalorder %s33, 0
      %p116 = por %p114, %p115
      %s118 = sadd.s32 %s117, 1
      %p121 = scmp.eq.s32.totalorder %s27, 3
      %p122 = scmp.ne.s32.totalorder %s117, %s119
      %p123 = scmp.eq.s32.totalorder %s27, 0
      %p124 = por %p122, %p123
      %p125 = scmp.ne.s32.totalorder %s117, %s119
      %p126 = scmp.eq.s32.totalorder %s32, 3
      %p127 = por %p125, %p126
      %p128 = scmp.ne.s32.totalorder %s119, %s120
      %p129 = scmp.eq.s32.totalorder %s32, 0
      %p130 = por %p128, %p129
      %p131 = scmp.ne.s32.totalorder %s119, %s120
      %p132 = scmp.eq.s32.totalorder %s33, 3
      %p133 = por %p131, %p132
      %p135 = scmp.ne.s32.totalorder %s120, %s134
      %p136 = scmp.eq.s32.totalorder %s33, 0
      %p137 = por %p135, %p136
      %s139 = sadd.s32 %s138, 1
      %p142 = scmp.eq.s32.totalorder %s27, 3
      %p143 = scmp.ne.s32.totalorder %s138, %s140
      %p144 = scmp.eq.s32.totalorder %s27, 0
      %p145 = por %p143, %p144
      %p146 = scmp.ne.s32.totalorder %s138, %s140
      %p147 = scmp.eq.s32.totalorder %s32, 3
      %p148 = por %p146, %p147
      %p149 = scmp.ne.s32.totalorder %s140, %s141
      %p150 = scmp.eq.s32.totalorder %s32, 0
      %p151 = por %p149, %p150
      %p152 = scmp.ne.s32.totalorder %s140, %s141
      %p153 = scmp.eq.s32.totalorder %s33, 3
      %p154 = por %p152, %p153
      %p156 = scmp.ne.s32.totalorder %s141, %s155
      %p157 = scmp.eq.s32.totalorder %s33, 0
      %p158 = por %p156, %p157
      %s160 = sadd.s32 %s159, 1
      %p163 = scmp.eq.s32.totalorder %s27, 3
      %p164 = scmp.ne.s32.totalorder %s159, %s161
      %p165 = scmp.eq.s32.totalorder %s27, 0
      %p166 = por %p164, %p165
      %p167 = scmp.ne.s32.totalorder %s159, %s161
      %p168 = scmp.eq.s32.totalorder %s32, 3
      %p169 = por %p167, %p168
      %p170 = scmp.ne.s32.totalorder %s161, %s162
      %p171 = scmp.eq.s32.totalorder %s32, 0
      %p172 = por %p170, %p171
      %p173 = scmp.ne.s32.totalorder %s161, %s162
      %p174 = scmp.eq.s32.totalorder %s33, 3
      %p175 = por %p173, %p174
      %p177 = scmp.ne.s32.totalorder %s162, %s176
      %p178 = scmp.eq.s32.totalorder %s33, 0
      %p179 = por %p177, %p178
      %s181 = sadd.s32 %s180, 1
      %p184 = scmp.eq.s32.totalorder %s27, 3
      %p185 = scmp.ne.s32.totalorder %s180, %s182
      %p186 = scmp.eq.s32.totalorder %s27, 0
      %p187 = por %p185, %p186
      %p188 = scmp.ne.s32.totalorder %s180, %s182
      %p189 = scmp.eq.s32.totalorder %s32, 3
      %p190 = por %p188, %p189
      %p191 = scmp.ne.s32.totalorder %s182, %s183
      %p192 = scmp.eq.s32.totalorder %s32, 0
      %p193 = por %p191, %p192
      %p194 = scmp.ne.s32.totalorder %s182, %s183
      %p195 = scmp.eq.s32.totalorder %s33, 3
      %p196 = por %p194, %p195
      %p198 = scmp.ne.s32.totalorder %s183, %s197
      %p199 = scmp.eq.s32.totalorder %s33, 0
      %p200 = por %p198, %p199
      %s202 = sadd.s32 %s201, 1
      %p205 = scmp.eq.s32.totalorder %s27, 3
      %p206 = scmp.ne.s32.totalorder %s201, %s203
      %p207 = scmp.eq.s32.totalorder %s27, 0
      %p208 = por %p206, %p207
      %p209 = scmp.ne.s32.totalorder %s201, %s203
      %p210 = scmp.eq.s32.totalorder %s32, 3
      %p211 = por %p209, %p210
      %p212 = scmp.ne.s32.totalorder %s203, %s204
      %p213 = scmp.eq.s32.totalorder %s32, 0
      %p214 = por %p212, %p213
      %p215 = scmp.ne.s32.totalorder %s203, %s204
      %p216 = scmp.eq.s32.totalorder %s33, 3
      %p217 = por %p215, %p216
      %p219 = scmp.ne.s32.totalorder %s204, %s218
      %p220 = scmp.eq.s32.totalorder %s33, 0
      %p221 = por %p219, %p220
      %s223 = sadd.s32 %s222, 1
      %p226 = scmp.eq.s32.totalorder %s27, 3
      %p227 = scmp.ne.s32.totalorder %s222, %s224
      %p228 = scmp.eq.s32.totalorder %s27, 0
      %p229 = por %p227, %p228
      %p230 = scmp.ne.s32.totalorder %s222, %s224
      %p231 = scmp.eq.s32.totalorder %s32, 3
      %p232 = por %p230, %p231
      %p233 = scmp.ne.s32.totalorder %s224, %s225
      %p234 = scmp.eq.s32.totalorder %s32, 0
      %p235 = por %p233, %p234
      %p236 = scmp.ne.s32.totalorder %s224, %s225
      %p237 = scmp.eq.s32.totalorder %s33, 3
      %p238 = por %p236, %p237
      %p240 = scmp.ne.s32.totalorder %s225, %s239
      %p241 = scmp.eq.s32.totalorder %s33, 0
      %p242 = por %p240, %p241
      %s244 = sadd.s32 %s243, 1
      %p247 = scmp.eq.s32.totalorder %s27, 3
      %p248 = scmp.ne.s32.totalorder %s243, %s245
      %p249 = scmp.eq.s32.totalorder %s27, 0
      %p250 = por %p248, %p249
      %p251 = scmp.ne.s32.totalorder %s243, %s245
      %p252 = scmp.eq.s32.totalorder %s32, 3
      %p253 = por %p251, %p252
      %p254 = scmp.ne.s32.totalorder %s245, %s246
      %p255 = scmp.eq.s32.totalorder %s32, 0
      %p256 = por %p254, %p255
      %p257 = scmp.ne.s32.totalorder %s245, %s246
      %p258 = scmp.eq.s32.totalorder %s33, 3
      %p259 = por %p257, %p258
      %p261 = scmp.ne.s32.totalorder %s246, %s260
      %p262 = scmp.eq.s32.totalorder %s33, 0
      %p263 = por %p261, %p262
      %s264 = ssub.s32 %s34, %s46
      %p265 = scmp.eq.s32.totalorder %s264, 0
      %s267 = sadd.s32 %s266, 1
      %s268 = scalar_select %p265, %s266, %s267
      %p271 = pneg %p265
      %p272 = scmp.eq.s32.totalorder %s27, 3
      %p273 = por %p271, %p272
      %p274 = scmp.ne.s32.totalorder %s266, %s269
      %p275 = scmp.eq.s32.totalorder %s27, 0
      %p276 = por %p274, %p275
      %p277 = scmp.ne.s32.totalorder %s266, %s269
      %p278 = scmp.eq.s32.totalorder %s32, 3
      %p279 = por %p277, %p278
      %p280 = scmp.ne.s32.totalorder %s269, %s270
      %p281 = scmp.eq.s32.totalorder %s32, 0
      %p282 = por %p280, %p281
      %p283 = scmp.ne.s32.totalorder %s269, %s270
      %p284 = scmp.eq.s32.totalorder %s33, 3
      %p285 = por %p283, %p284
      %p287 = scmp.ne.s32.totalorder %s270, %s286
      %p288 = scmp.eq.s32.totalorder %s33, 0
      %p289 = por %p287, %p288
      %p290 = scmp.le.s32.totalorder 1, %s27
      %p291 = scmp.lt.s32.totalorder %s27, 5
      %p292 = pnand %p290, %p291
      %p293 = pneg %p292
      // Predicated region
      $region9: #{multiscale_temporal_module.2} parent=5 // pred_check
        _
      $region10: #{multiscale_temporal_module.2} parent=5 // pred_check_branch
        %295 = sbr.rel (%p292) target = $region12
      $region11: #{multiscale_temporal_module.2} parent=5 // pred_region
        %s296 = ssub.s32 %s27, 1
        // Predicated region
        $region13: #{multiscale_temporal_module.2} parent=11 // pred_check
          %p297 = pneg %p88
        $region14: #{multiscale_temporal_module.2} parent=11 // pred_check_branch
          %299 = sbr.rel (%p297) target = $region16
        $region15: #{multiscale_temporal_module.2} parent=11 // pred_region
          %s301 = ssub.s32 192, 192
          %302 = vsyncadd [#allocation7], %s301
          %s303 = sshll.u32 [#allocation6], 4
          %s304 = int_to_ptr.vmem [resolvable:$true] %s303
          %309 = dma.hbm_to_vmem [thread:$0]  %s1, 192, %s304, [#allocation7], 64, 64, 4
        $region16: #{multiscale_temporal_module.2} parent=11 // pred_fallthru
          _
        // Predicated region
        $region17: #{multiscale_temporal_module.2} parent=11 // pred_check
          %p310 = pneg %p109
        $region18: #{multiscale_temporal_module.2} parent=11 // pred_check_branch
          %312 = sbr.rel (%p310) target = $region20
        $region19: #{multiscale_temporal_module.2} parent=11 // pred_region
          %s314 = ssub.s32 64, 64
          %315 = vsyncadd [#allocation7], %s314
          %s317 = sshll.u32 [#allocation8], 4
          %s318 = int_to_ptr.vmem [resolvable:$true] %s317
          %320 = dma.hbm_to_vmem [thread:$0]  %s2, 64, %s318, [#allocation7]
        $region20: #{multiscale_temporal_module.2} parent=11 // pred_fallthru
          _
        // Predicated region
        $region21: #{multiscale_temporal_module.2} parent=11 // pred_check
          %p321 = pneg %p130
        $region22: #{multiscale_temporal_module.2} parent=11 // pred_check_branch
          %323 = sbr.rel (%p321) target = $region24
        $region23: #{multiscale_temporal_module.2} parent=11 // pred_region
          %s325 = ssub.s32 64, 64
          %326 = vsyncadd [#allocation10], %s325
          %s328 = sshll.u32 [#allocation9], 4
          %s329 = int_to_ptr.vmem [resolvable:$true] %s328
          %331 = dma.hbm_to_vmem [thread:$0]  %s3, 64, %s329, [#allocation10]
        $region24: #{multiscale_temporal_module.2} parent=11 // pred_fallthru
          _
        // Predicated region
        $region25: #{multiscale_temporal_module.2} parent=11 // pred_check
          %p332 = pneg %p151
        $region26: #{multiscale_temporal_module.2} parent=11 // pred_check_branch
          %334 = sbr.rel (%p332) target = $region28
        $region27: #{multiscale_temporal_module.2} parent=11 // pred_region
          %s336 = ssub.s32 128, 128
          %337 = vsyncadd [#allocation10], %s336
          %s339 = sshll.u32 [#allocation11], 4
          %s340 = int_to_ptr.vmem [resolvable:$true] %s339
          %342 = dma.hbm_to_vmem [thread:$0]  %s4, 128, %s340, [#allocation10]
        $region28: #{multiscale_temporal_module.2} parent=11 // pred_fallthru
          _
        // Predicated region
        $region29: #{multiscale_temporal_module.2} parent=11 // pred_check
          %p343 = pneg %p172
        $region30: #{multiscale_temporal_module.2} parent=11 // pred_check_branch
          %345 = sbr.rel (%p343) target = $region32
        $region31: #{multiscale_temporal_module.2} parent=11 // pred_region
          %s347 = ssub.s32 16, 16
          %348 = vsyncadd [#allocation13], %s347
          %s350 = sshll.u32 [#allocation12], 4
          %s351 = int_to_ptr.vmem [resolvable:$true] %s350
          %353 = dma.hbm_to_vmem [thread:$0]  %s5, 16, %s351, [#allocation13]
        $region32: #{multiscale_temporal_module.2} parent=11 // pred_fallthru
          _
        // Predicated region
        $region33: #{multiscale_temporal_module.2} parent=11 // pred_check
          %p354 = pneg %p193
        $region34: #{multiscale_temporal_module.2} parent=11 // pred_check_branch
          %356 = sbr.rel (%p354) target = $region36
        $region35: #{multiscale_temporal_module.2} parent=11 // pred_region
          %s358 = ssub.s32 16, 16
          %359 = vsyncadd [#allocation13], %s358
          %s361 = sshll.u32 [#allocation14], 4
          %s362 = int_to_ptr.vmem [resolvable:$true] %s361
          %364 = dma.hbm_to_vmem [thread:$0]  %s6, 16, %s362, [#allocation13]
        $region36: #{multiscale_temporal_module.2} parent=11 // pred_fallthru
          _
        // Predicated region
        $region37: #{multiscale_temporal_module.2} parent=11 // pred_check
          %p365 = pneg %p214
        $region38: #{multiscale_temporal_module.2} parent=11 // pred_check_branch
          %367 = sbr.rel (%p365) target = $region40
        $region39: #{multiscale_temporal_module.2} parent=11 // pred_region
          %s369 = ssub.s32 16, 16
          %370 = vsyncadd [#allocation16], %s369
          %s372 = sshll.u32 [#allocation15], 4
          %s373 = int_to_ptr.vmem [resolvable:$true] %s372
          %375 = dma.hbm_to_vmem [thread:$0]  %s7, 16, %s373, [#allocation16]
        $region40: #{multiscale_temporal_module.2} parent=11 // pred_fallthru
          _
        // Predicated region
        $region41: #{multiscale_temporal_module.2} parent=11 // pred_check
          %p376 = pneg %p235
        $region42: #{multiscale_temporal_module.2} parent=11 // pred_check_branch
          %378 = sbr.rel (%p376) target = $region44
        $region43: #{multiscale_temporal_module.2} parent=11 // pred_region
          %s380 = ssub.s32 512, 512
          %381 = vsyncadd [#allocation16], %s380
          %s382 = sshll.u32 [#allocation17], 4
          %s383 = int_to_ptr.vmem [resolvable:$true] %s382
          %388 = dma.hbm_to_vmem [thread:$0]  %s8, 512, %s383, [#allocation16], 128, 128, 8
        $region44: #{multiscale_temporal_module.2} parent=11 // pred_fallthru
          _
        // Predicated region
        $region45: #{multiscale_temporal_module.2} parent=11 // pred_check
          %p389 = pneg %p256
        $region46: #{multiscale_temporal_module.2} parent=11 // pred_check_branch
          %391 = sbr.rel (%p389) target = $region48
        $region47: #{multiscale_temporal_module.2} parent=11 // pred_region
          %s393 = ssub.s32 16, 16
          %394 = vsyncadd [#allocation19], %s393
          %s396 = sshll.u32 [#allocation18], 4
          %s397 = int_to_ptr.vmem [resolvable:$true] %s396
          %399 = dma.hbm_to_vmem [thread:$0]  %s9, 16, %s397, [#allocation19]
        $region48: #{multiscale_temporal_module.2} parent=11 // pred_fallthru
          _
      $region12: #{multiscale_temporal_module.2} parent=5 // pred_fallthru
        _
      %p400 = scmp.lt.s32.totalorder %s27, 4
      // Predicated region
      $region49: #{multiscale_temporal_module.2} parent=5 // pred_check
        %p401 = pneg %p400
      $region50: #{multiscale_temporal_module.2} parent=5 // pred_check_branch
        %403 = sbr.rel (%p401) target = $region52
      $region51: #{multiscale_temporal_module.2} parent=5 // pred_region
        // Predicated region
        $region53: #{multiscale_temporal_module.2} parent=51 // pred_check
          %p404 = pneg %p61
        $region54: #{multiscale_temporal_module.2} parent=51 // pred_check_branch
          %406 = sbr.rel (%p404) target = $region56
        $region55: #{multiscale_temporal_module.2} parent=51 // pred_region
          #allocation22 [shape = 'u32[6]{0}', space=smem, size = 0x18, scoped, tag = 'DMA stride descriptor']
          %s407 = sand.u32 %s51, 1
          %s408 = scalar_lea.sflag [#allocation4], %s407
          %s409 = sand.u32 %s51, 1
          %s410 = smul.addr %s409, 128
          %s411 = scalar_lea.vmem [#allocation3], %s410
          %s412 = smul.u32 4, %s35
          %s414 = ssub.s32 2048, 2048
          %415 = vsyncadd %s408, %s414
          %s416 = smul.addr %s34, 64
          %s417 = sadd.s32 %s412, %s416
          %s418 = smul.addr %s417, 64
          %s419 = scalar_lea.hbm %s0, %s418
          %s421 = sshll.u32 1, 14
          %s422 = sxor.u32 4294967295, %s421
          %s424 = sld [smem:[#allocation0]]
          %s425 = sadd.s32 2, %s424
          %s427 = sshll.u32 7, 26
          %s428 = sxor.u32 4294967295, %s427
          %s429 = sand.u32 0, %s428
          %s430 = sshll.u32 %s425, 26
          %s431 = sor.u32 %s429, %s430
          %s432 = sshll.u32 %s411, 4
          %s433 = int_to_ptr.vmem [resolvable:$true] %s432
          %439 = sst [smem:[#allocation22]] 512
          %s440 = scalar_lea.smem [#allocation22], 1
          %441 = sst [smem:[%s440]] 256
          %s442 = scalar_lea.smem [#allocation22], 2
          %443 = sst [smem:[%s442]] 4
          %s444 = scalar_lea.smem [#allocation22], 3
          %445 = sst [smem:[%s444]] 64
          %s446 = scalar_lea.smem [#allocation22], 4
          %447 = sst [smem:[%s446]] 64
          %s448 = scalar_lea.smem [#allocation22], 5
          %449 = sst [smem:[%s448]] 4
          %451 = dma.general %s419, 2048, %s433, %s408, [#allocation21], [#allocation22], %s431, 0
        $region56: #{multiscale_temporal_module.2} parent=51 // pred_fallthru
          _
      $region52: #{multiscale_temporal_module.2} parent=5 // pred_fallthru
        _
      %p452 = scmp.le.s32.totalorder 1, %s27
      %p453 = scmp.lt.s32.totalorder %s27, 5
      %p454 = pnand %p452, %p453
      %p455 = pneg %p454
      // Predicated region
      $region57: #{multiscale_temporal_module.2} parent=5 // pred_check
        _
      $region58: #{multiscale_temporal_module.2} parent=5 // pred_check_branch
        %457 = sbr.rel (%p454) target = $region60
      $region59: #{multiscale_temporal_module.2} parent=5 // pred_region
        %s458 = ssub.s32 %s27, 1
        %s459 = sand.u32 %s54, 1
        %s460 = scalar_lea.sflag [#allocation4], %s459
        %s461 = sand.u32 %s54, 1
        %s462 = smul.addr %s461, 128
        %s463 = scalar_lea.vmem [#allocation3], %s462
        // Predicated region
        $region61: #{multiscale_temporal_module.2} parent=59 // pred_check
          %p464 = pneg %p67
        $region62: #{multiscale_temporal_module.2} parent=59 // pred_check_branch
          %466 = sbr.rel (%p464) target = $region64
        $region63: #{multiscale_temporal_module.2} parent=59 // pred_region
          %467 = dma.done %s460, 2048
        $region64: #{multiscale_temporal_module.2} parent=59 // pred_fallthru
          _
        // Predicated region
        $region65: #{multiscale_temporal_module.2} parent=59 // pred_check
          %p468 = pneg %p88
        $region66: #{multiscale_temporal_module.2} parent=59 // pred_check_branch
          %470 = sbr.rel (%p468) target = $region68
        $region67: #{multiscale_temporal_module.2} parent=59 // pred_region
          %471 = dma.done [#allocation7], 192
        $region68: #{multiscale_temporal_module.2} parent=59 // pred_fallthru
          _
        // Predicated region
        $region69: #{multiscale_temporal_module.2} parent=59 // pred_check
          %p472 = pneg %p109
        $region70: #{multiscale_temporal_module.2} parent=59 // pred_check_branch
          %474 = sbr.rel (%p472) target = $region72
        $region71: #{multiscale_temporal_module.2} parent=59 // pred_region
          %475 = dma.done [#allocation7], 64
        $region72: #{multiscale_temporal_module.2} parent=59 // pred_fallthru
          _
        // Predicated region
        $region73: #{multiscale_temporal_module.2} parent=59 // pred_check
          %p476 = pneg %p130
        $region74: #{multiscale_temporal_module.2} parent=59 // pred_check_branch
          %478 = sbr.rel (%p476) target = $region76
        $region75: #{multiscale_temporal_module.2} parent=59 // pred_region
          %479 = dma.done [#allocation10], 64
        $region76: #{multiscale_temporal_module.2} parent=59 // pred_fallthru
          _
        // Predicated region
        $region77: #{multiscale_temporal_module.2} parent=59 // pred_check
          %p480 = pneg %p151
        $region78: #{multiscale_temporal_module.2} parent=59 // pred_check_branch
          %482 = sbr.rel (%p480) target = $region80
        $region79: #{multiscale_temporal_module.2} parent=59 // pred_region
          %483 = dma.done [#allocation10], 128
        $region80: #{multiscale_temporal_module.2} parent=59 // pred_fallthru
          _
        // Predicated region
        $region81: #{multiscale_temporal_module.2} parent=59 // pred_check
          %p484 = pneg %p172
        $region82: #{multiscale_temporal_module.2} parent=59 // pred_check_branch
          %486 = sbr.rel (%p484) target = $region84
        $region83: #{multiscale_temporal_module.2} parent=59 // pred_region
          %487 = dma.done [#allocation13], 16
        $region84: #{multiscale_temporal_module.2} parent=59 // pred_fallthru
          _
        // Predicated region
        $region85: #{multiscale_temporal_module.2} parent=59 // pred_check
          %p488 = pneg %p193
        $region86: #{multiscale_temporal_module.2} parent=59 // pred_check_branch
          %490 = sbr.rel (%p488) target = $region88
        $region87: #{multiscale_temporal_module.2} parent=59 // pred_region
          %491 = dma.done [#allocation13], 16
        $region88: #{multiscale_temporal_module.2} parent=59 // pred_fallthru
          _
        // Predicated region
        $region89: #{multiscale_temporal_module.2} parent=59 // pred_check
          %p492 = pneg %p214
        $region90: #{multiscale_temporal_module.2} parent=59 // pred_check_branch
          %494 = sbr.rel (%p492) target = $region92
        $region91: #{multiscale_temporal_module.2} parent=59 // pred_region
          %495 = dma.done [#allocation16], 16
        $region92: #{multiscale_temporal_module.2} parent=59 // pred_fallthru
          _
        // Predicated region
        $region93: #{multiscale_temporal_module.2} parent=59 // pred_check
          %p496 = pneg %p235
        $region94: #{multiscale_temporal_module.2} parent=59 // pred_check_branch
          %498 = sbr.rel (%p496) target = $region96
        $region95: #{multiscale_temporal_module.2} parent=59 // pred_region
          %499 = dma.done [#allocation16], 512
        $region96: #{multiscale_temporal_module.2} parent=59 // pred_fallthru
          _
        // Predicated region
        $region97: #{multiscale_temporal_module.2} parent=59 // pred_check
          %p500 = pneg %p256
        $region98: #{multiscale_temporal_module.2} parent=59 // pred_check_branch
          %502 = sbr.rel (%p500) target = $region100
        $region99: #{multiscale_temporal_module.2} parent=59 // pred_region
          %503 = dma.done [#allocation19], 16
        $region100: #{multiscale_temporal_module.2} parent=59 // pred_fallthru
          _
        %s504 = sand.u32 %s54, 1
        %s505 = scalar_lea.sflag [#allocation4], %s504
        %s506 = sand.u32 %s54, 1
        %s507 = smul.addr %s506, 128
        %s508 = scalar_lea.vmem [#allocation3], %s507
        %p509 = pneg %p67
        %p510 = pneg %p64
        %p511 = pneg %p88
        %p512 = pneg %p85
        %p513 = pneg %p109
        %p514 = pneg %p106
        %p515 = pneg %p130
        %p516 = pneg %p127
        %p517 = pneg %p151
        %p518 = pneg %p148
        %p519 = pneg %p172
        %p520 = pneg %p169
        %p521 = pneg %p193
        %p522 = pneg %p190
        %p523 = pneg %p214
        %p524 = pneg %p211
        %p525 = pneg %p235
        %p526 = pneg %p232
        %p527 = pneg %p256
        %p528 = pneg %p253
        %p529 = pneg %p282
        %p530 = pneg %p279
        %s531 = sand.u32 %s269, 1
        %s532 = scalar_lea.sflag [#allocation5], %s531
        %s533 = sand.u32 %s269, 1
        %s534 = smul.addr %s533, 4
        %s535 = scalar_lea.vmem [#allocation20], %s534
        %s536 = smul.u32 4, %s37
        %p538 = scmp.eq.s32.totalorder %s37, 0
        // Predicated region
        $region101: #{multiscale_temporal_module.2} parent=59 // pred_check
          %p539 = pneg %p538
        $region102: #{multiscale_temporal_module.2} parent=59 // pred_check_branch
          %541 = sbr.rel (%p539) target = $region104
        $region103: #{multiscale_temporal_module.2} parent=59 // pred_region
          %vm542 = vcmask 57344
          %543 = vst.msk [vmem:[#allocation2] sm:$0x1] %vm542, 0.0
        $region104: #{multiscale_temporal_module.2} parent=59 // pred_fallthru
          _
        %v544 = vld [vmem:[%s463] sm:$0xf]
        %v545 = vld [vmem:[%s463 + $0x4] sm:$0xf]
        %v546 = vld [vmem:[%s463 + $0x8] sm:$0xf]
        %v547 = vld [vmem:[%s463 + $0xc] sm:$0xf]
        %v548 = vld [vmem:[%s463 + $0x10] sm:$0xf]
        %v549 = vld [vmem:[%s463 + $0x14] sm:$0xf]
        %v550 = vld [vmem:[%s463 + $0x18] sm:$0xf]
        %v551 = vld [vmem:[%s463 + $0x1c] sm:$0xf]
        %v552 = vld [vmem:[%s463 + $0x20] sm:$0xf]
        %v553 = vld [vmem:[%s463 + $0x24] sm:$0xf]
        %v554 = vld [vmem:[%s463 + $0x28] sm:$0xf]
        %v555 = vld [vmem:[%s463 + $0x2c] sm:$0xf]
        %v556 = vld [vmem:[%s463 + $0x30] sm:$0xf]
        %v557 = vld [vmem:[%s463 + $0x34] sm:$0xf]
        %v558 = vld [vmem:[%s463 + $0x38] sm:$0xf]
        %v559 = vld [vmem:[%s463 + $0x3c] sm:$0xf]
        %v560 = vld [vmem:[%s463 + $0x40] sm:$0xf]
        %v561 = vld [vmem:[%s463 + $0x44] sm:$0xf]
        %v562 = vld [vmem:[%s463 + $0x48] sm:$0xf]
        %v563 = vld [vmem:[%s463 + $0x4c] sm:$0xf]
        %v564 = vld [vmem:[%s463 + $0x50] sm:$0xf]
        %v565 = vld [vmem:[%s463 + $0x54] sm:$0xf]
        %v566 = vld [vmem:[%s463 + $0x58] sm:$0xf]
        %v567 = vld [vmem:[%s463 + $0x5c] sm:$0xf]
        %v568 = vld [vmem:[%s463 + $0x60] sm:$0xf]
        %v569 = vld [vmem:[%s463 + $0x64] sm:$0xf]
        %v570 = vld [vmem:[%s463 + $0x68] sm:$0xf]
        %v571 = vld [vmem:[%s463 + $0x6c] sm:$0xf]
        %v572 = vld [vmem:[%s463 + $0x70] sm:$0xf]
        %v573 = vld [vmem:[%s463 + $0x74] sm:$0xf]
        %v574 = vld [vmem:[%s463 + $0x78] sm:$0xf]
        %v575 = vld [vmem:[%s463 + $0x7c] sm:$0xf]
        %v576 = vld [vmem:[#allocation6] sm:$0xf]
        %v577 = vld [vmem:[#allocation8] sm:$0x1]
        %v578 = vld [vmem:[#allocation9] sm:$0x1]
        %v611 = vunpack.c.l.b16 %v544
        %v612 = vunpack.c.l.b16 %v545
        %v613 = vunpack.c.l.b16 %v546
        %v614 = vunpack.c.l.b16 %v547
        %v615 = vunpack.c.l.b16 %v548
        %v616 = vunpack.c.l.b16 %v549
        %v617 = vunpack.c.l.b16 %v550
        %v618 = vunpack.c.l.b16 %v551
        %v619 = vunpack.c.l.b16 %v552
        %v620 = vunpack.c.l.b16 %v553
        %v621 = vunpack.c.l.b16 %v554
        %v622 = vunpack.c.l.b16 %v555
        %v623 = vunpack.c.l.b16 %v556
        %v624 = vunpack.c.l.b16 %v557
        %v625 = vunpack.c.l.b16 %v558
        %v626 = vunpack.c.l.b16 %v559
        %v627 = vunpack.c.l.b16 %v560
        %v628 = vunpack.c.l.b16 %v561
        %v629 = vunpack.c.l.b16 %v562
        %v630 = vunpack.c.l.b16 %v563
        %v631 = vunpack.c.l.b16 %v564
        %v632 = vunpack.c.l.b16 %v565
        %v633 = vunpack.c.l.b16 %v566
        %v634 = vunpack.c.l.b16 %v567
        %v635 = vunpack.c.l.b16 %v568
        %v636 = vunpack.c.l.b16 %v569
        %v637 = vunpack.c.l.b16 %v570
        %v638 = vunpack.c.l.b16 %v571
        %v639 = vunpack.c.l.b16 %v572
        %v640 = vunpack.c.l.b16 %v573
        %v641 = vunpack.c.l.b16 %v574
        %v642 = vunpack.c.l.b16 %v575
        %v643 = vpack.c.b16 %v612, %v611
        %v644 = vpack.c.b16 %v614, %v613
        %v645 = vpack.c.b16 %v616, %v615
        %v646 = vpack.c.b16 %v618, %v617
        %v647 = vpack.c.b16 %v620, %v619
        %v648 = vpack.c.b16 %v622, %v621
        %v649 = vpack.c.b16 %v624, %v623
        %v650 = vpack.c.b16 %v626, %v625
        %v651 = vpack.c.b16 %v628, %v627
        %v652 = vpack.c.b16 %v630, %v629
        %v653 = vpack.c.b16 %v632, %v631
        %v654 = vpack.c.b16 %v634, %v633
        %v655 = vpack.c.b16 %v636, %v635
        %v656 = vpack.c.b16 %v638, %v637
        %v657 = vpack.c.b16 %v640, %v639
        %v658 = vpack.c.b16 %v642, %v641
        %vm659 = vcmask 64512
        %v661 = vsel %vm659, %v643, 0
        %v664 = vsel %vm659, %v644, 0
        %v667 = vsel %vm659, %v645, 0
        %v670 = vsel %vm659, %v646, 0
        %v673 = vsel %vm659, %v647, 0
        %v676 = vsel %vm659, %v648, 0
        %v679 = vsel %vm659, %v649, 0
        %v682 = vsel %vm659, %v650, 0
        %v685 = vsel %vm659, %v651, 0
        %v688 = vsel %vm659, %v652, 0
        %v691 = vsel %vm659, %v653, 0
        %v694 = vsel %vm659, %v654, 0
        %v697 = vsel %vm659, %v655, 0
        %v700 = vsel %vm659, %v656, 0
        %v703 = vsel %vm659, %v657, 0
        %v706 = vsel %vm659, %v658, 0
        %vm708 = vcmask 1043456
        %v710 = vsel %vm708, %v576, 0
        %712 = vmatprep.subr.bf16.mxu0 0
        %713 = vmatpush1.bf16.msra.mxu0 %v710
        %714 = vmatprep.subr.bf16.mxu0 0
        %715 = vmatpush1.bf16.msra.mxu0 0
        %716 = vmatprep.subr.bf16.mxu0 0
        %717 = vmatpush1.bf16.msra.mxu0 0
        %718 = vmatprep.subr.bf16.mxu0 0
        %719 = vmatpush1.bf16.msra.mxu0 0
        %720 = vmatprep.subr.bf16.mxu0 0
        %721 = vmatpush1.bf16.msra.mxu0 0
        %722 = vmatprep.subr.bf16.mxu0 0
        %723 = vmatpush1.bf16.msra.mxu0 0
        %724 = vmatprep.subr.bf16.mxu0 0
        %725 = vmatpush1.bf16.msra.mxu0 0
        %726 = vmatprep.subr.bf16.mxu0 0
        %727 = vmatpush1.bf16.msra.mxu0 0
        %728 = vmatprep.subr.bf16.mxu0 0
        %729 = vmatpush1.bf16.msra.mxu0 0
        %730 = vmatprep.subr.bf16.mxu0 0
        %731 = vmatpush1.bf16.msra.mxu0 0
        %732 = vmatprep.subr.bf16.mxu0 0
        %733 = vmatpush1.bf16.msra.mxu0 0
        %734 = vmatprep.subr.bf16.mxu0 0
        %735 = vmatpush1.bf16.msra.mxu0 0
        %736 = vmatprep.subr.bf16.mxu0 0
        %737 = vmatpush1.bf16.msra.mxu0 0
        %738 = vmatprep.subr.bf16.mxu0 0
        %739 = vmatpush1.bf16.msra.mxu0 0
        %740 = vmatprep.subr.bf16.mxu0 0
        %741 = vmatpush1.bf16.msra.mxu0 0
        %742 = vmatprep.subr.bf16.mxu0 0
        %743 = vmatpush1.bf16.msra.mxu0 0
        %744 = vmatprep.mubr.bf16.mxu0 0
        %745 = vmatmul.mubr.bf16.gmra.mrb[0].mxu0 %v661
        %v746 = vpop.f32.mrb[0].mxu0
        %v747 = vadd.f32 0.0, %v746
        %v748 = vpop.f32.mrb[0].mxu0
        %v749 = vpop.f32.mrb[0].mxu0
        %v750 = vadd.f32 0.0, %v749
        %v751 = vpop.f32.mrb[0].mxu0
        %752 = vmatprep.mubr.bf16.mxu0 0
        %753 = vmatmul.mubr.bf16.gmra.mrb[0].mxu0 %v664
        %v754 = vpop.f32.mrb[0].mxu0
        %v755 = vadd.f32 0.0, %v754
        %v756 = vpop.f32.mrb[0].mxu0
        %v757 = vpop.f32.mrb[0].mxu0
        %v758 = vadd.f32 0.0, %v757
        %v759 = vpop.f32.mrb[0].mxu0
        %760 = vmatprep.mubr.bf16.mxu0 0
        %761 = vmatmul.mubr.bf16.gmra.mrb[0].mxu0 %v667
        %v762 = vpop.f32.mrb[0].mxu0
        %v763 = vadd.f32 0.0, %v762
        %v764 = vpop.f32.mrb[0].mxu0
        %v765 = vpop.f32.mrb[0].mxu0
        %v766 = vadd.f32 0.0, %v765
        %v767 = vpop.f32.mrb[0].mxu0
        %768 = vmatprep.mubr.bf16.mxu0 0
        %769 = vmatmul.mubr.bf16.gmra.mrb[0].mxu0 %v670
        %v770 = vpop.f32.mrb[0].mxu0
        %v771 = vadd.f32 0.0, %v770
        %v772 = vpop.f32.mrb[0].mxu0
        %v773 = vpop.f32.mrb[0].mxu0
        %v774 = vadd.f32 0.0, %v773
        %v775 = vpop.f32.mrb[0].mxu0
        %776 = vmatprep.mubr.bf16.mxu0 0
        %777 = vmatmul.mubr.bf16.gmra.mrb[0].mxu0 %v673
        %v778 = vpop.f32.mrb[0].mxu0
        %v779 = vadd.f32 0.0, %v778
        %v780 = vpop.f32.mrb[0].mxu0
        %v781 = vpop.f32.mrb[0].mxu0
        %v782 = vadd.f32 0.0, %v781
        %v783 = vpop.f32.mrb[0].mxu0
        %784 = vmatprep.mubr.bf16.mxu0 0
        %785 = vmatmul.mubr.bf16.gmra.mrb[0].mxu0 %v676
        %v786 = vpop.f32.mrb[0].mxu0
        %v787 = vadd.f32 0.0, %v786
        %v788 = vpop.f32.mrb[0].mxu0
        %v789 = vpop.f32.mrb[0].mxu0
        %v790 = vadd.f32 0.0, %v789
        %v791 = vpop.f32.mrb[0].mxu0
        %792 = vmatprep.mubr.bf16.mxu0 0
        %793 = vmatmul.mubr.bf16.gmra.mrb[0].mxu0 %v679
        %v794 = vpop.f32.mrb[0].mxu0
        %v795 = vadd.f32 0.0, %v794
        %v796 = vpop.f32.mrb[0].mxu0
        %v797 = vpop.f32.mrb[0].mxu0
        %v798 = vadd.f32 0.0, %v797
        %v799 = vpop.f32.mrb[0].mxu0
        %800 = vmatprep.mubr.bf16.mxu0 0
        %801 = vmatmul.mubr.bf16.gmra.mrb[0].mxu0 %v682
        %v802 = vpop.f32.mrb[0].mxu0
        %v803 = vadd.f32 0.0, %v802
        %v804 = vpop.f32.mrb[0].mxu0
        %v805 = vpop.f32.mrb[0].mxu0
        %v806 = vadd.f32 0.0, %v805
        %v807 = vpop.f32.mrb[0].mxu0
        %808 = vmatprep.mubr.bf16.mxu0 0
        %809 = vmatmul.mubr.bf16.gmra.mrb[0].mxu0 %v685
        %v810 = vpop.f32.mrb[0].mxu0
        %v811 = vadd.f32 0.0, %v810
        %v812 = vpop.f32.mrb[0].mxu0
        %v813 = vpop.f32.mrb[0].mxu0
        %v814 = vadd.f32 0.0, %v813
        %v815 = vpop.f32.mrb[0].mxu0
        %816 = vmatprep.mubr.bf16.mxu0 0
        %817 = vmatmul.mubr.bf16.gmra.mrb[0].mxu0 %v688
        %v818 = vpop.f32.mrb[0].mxu0
        %v819 = vadd.f32 0.0, %v818
        %v820 = vpop.f32.mrb[0].mxu0
        %v821 = vpop.f32.mrb[0].mxu0
        %v822 = vadd.f32 0.0, %v821
        %v823 = vpop.f32.mrb[0].mxu0
        %824 = vmatprep.mubr.bf16.mxu0 0
        %825 = vmatmul.mubr.bf16.gmra.mrb[0].mxu0 %v691
        %v826 = vpop.f32.mrb[0].mxu0
        %v827 = vadd.f32 0.0, %v826
        %v828 = vpop.f32.mrb[0].mxu0
        %v829 = vpop.f32.mrb[0].mxu0
        %v830 = vadd.f32 0.0, %v829
        %v831 = vpop.f32.mrb[0].mxu0
        %832 = vmatprep.mubr.bf16.mxu0 0
        %833 = vmatmul.mubr.bf16.gmra.mrb[0].mxu0 %v694
        %v834 = vpop.f32.mrb[0].mxu0
        %v835 = vadd.f32 0.0, %v834
        %v836 = vpop.f32.mrb[0].mxu0
        %v837 = vpop.f32.mrb[0].mxu0
        %v838 = vadd.f32 0.0, %v837
        %v839 = vpop.f32.mrb[0].mxu0
        %840 = vmatprep.mubr.bf16.mxu0 0
        %841 = vmatmul.mubr.bf16.gmra.mrb[0].mxu0 %v697
        %v842 = vpop.f32.mrb[0].mxu0
        %v843 = vadd.f32 0.0, %v842
        %v844 = vpop.f32.mrb[0].mxu0
        %v845 = vpop.f32.mrb[0].mxu0
        %v846 = vadd.f32 0.0, %v845
        %v847 = vpop.f32.mrb[0].mxu0
        %848 = vmatprep.mubr.bf16.mxu0 0
        %849 = vmatmul.mubr.bf16.gmra.mrb[0].mxu0 %v700
        %v850 = vpop.f32.mrb[0].mxu0
        %v851 = vadd.f32 0.0, %v850
        %v852 = vpop.f32.mrb[0].mxu0
        %v853 = vpop.f32.mrb[0].mxu0
        %v854 = vadd.f32 0.0, %v853
        %v855 = vpop.f32.mrb[0].mxu0
        %856 = vmatprep.mubr.bf16.mxu0 0
        %857 = vmatmul.mubr.bf16.gmra.mrb[0].mxu0 %v703
        %v858 = vpop.f32.mrb[0].mxu0
        %v859 = vadd.f32 0.0, %v858
        %v860 = vpop.f32.mrb[0].mxu0
        %v861 = vpop.f32.mrb[0].mxu0
        %v862 = vadd.f32 0.0, %v861
        %v863 = vpop.f32.mrb[0].mxu0
        %864 = vmatprep.mubr.bf16.mxu0 0
        %865 = vmatmul.mubr.bf16.gmra.mrb[0].mxu0 %v706
        %v866 = vpop.f32.mrb[0].mxu0
        %v867 = vadd.f32 0.0, %v866
        %v868 = vpop.f32.mrb[0].mxu0
        %v869 = vpop.f32.mrb[0].mxu0
        %v870 = vadd.f32 0.0, %v869
        %v871 = vpop.f32.mrb[0].mxu0
        %872 = vdwg.mxu0
        %902 = vrot.lane.b32.xlu0 0.0, 8
        %v903 = vpop.permute.xlu0 %902
        %904 = vrot.lane.b32.xlu0 %v747, 8
        %v905 = vpop.permute.xlu0 %904
        %906 = vrot.lane.b32.xlu0 %v750, 8
        %v907 = vpop.permute.xlu0 %906
        %908 = vrot.lane.b32.xlu0 %v755, 8
        %v909 = vpop.permute.xlu0 %908
        %910 = vrot.lane.b32.xlu0 %v758, 8
        %v911 = vpop.permute.xlu0 %910
        %912 = vrot.lane.b32.xlu0 %v763, 8
        %v913 = vpop.permute.xlu0 %912
        %914 = vrot.lane.b32.xlu0 %v766, 8
        %v915 = vpop.permute.xlu0 %914
        %916 = vrot.lane.b32.xlu0 %v771, 8
        %v917 = vpop.permute.xlu0 %916
        %918 = vrot.lane.b32.xlu0 %v774, 8
        %v919 = vpop.permute.xlu0 %918
        %920 = vrot.lane.b32.xlu0 %v779, 8
        %v921 = vpop.permute.xlu0 %920
        %922 = vrot.lane.b32.xlu0 %v782, 8
        %v923 = vpop.permute.xlu0 %922
        %924 = vrot.lane.b32.xlu0 %v787, 8
        %v925 = vpop.permute.xlu0 %924
        %926 = vrot.lane.b32.xlu0 %v790, 8
        %v927 = vpop.permute.xlu0 %926
        %928 = vrot.lane.b32.xlu0 %v795, 8
        %v929 = vpop.permute.xlu0 %928
        %930 = vrot.lane.b32.xlu0 %v798, 8
        %v931 = vpop.permute.xlu0 %930
        %932 = vrot.lane.b32.xlu0 %v803, 8
        %v933 = vpop.permute.xlu0 %932
        %934 = vrot.lane.b32.xlu0 %v806, 8
        %v935 = vpop.permute.xlu0 %934
        %936 = vrot.lane.b32.xlu0 %v811, 8
        %v937 = vpop.permute.xlu0 %936
        %938 = vrot.lane.b32.xlu0 %v814, 8
        %v939 = vpop.permute.xlu0 %938
        %940 = vrot.lane.b32.xlu0 %v819, 8
        %v941 = vpop.permute.xlu0 %940
        %942 = vrot.lane.b32.xlu0 %v822, 8
        %v943 = vpop.permute.xlu0 %942
        %944 = vrot.lane.b32.xlu0 %v827, 8
        %v945 = vpop.permute.xlu0 %944
        %946 = vrot.lane.b32.xlu0 %v830, 8
        %v947 = vpop.permute.xlu0 %946
        %948 = vrot.lane.b32.xlu0 %v835, 8
        %v949 = vpop.permute.xlu0 %948
        %950 = vrot.lane.b32.xlu0 %v838, 8
        %v951 = vpop.permute.xlu0 %950
        %952 = vrot.lane.b32.xlu0 %v843, 8
        %v953 = vpop.permute.xlu0 %952
        %954 = vrot.lane.b32.xlu0 %v846, 8
        %v955 = vpop.permute.xlu0 %954
        %956 = vrot.lane.b32.xlu0 %v851, 8
        %v957 = vpop.permute.xlu0 %956
        %958 = vrot.lane.b32.xlu0 %v854, 8
        %v959 = vpop.permute.xlu0 %958
        %v989 = vadd.f32 %v747, %v903
        %v990 = vadd.f32 %v750, %v903
        %v991 = vadd.f32 %v755, %v903
        %v992 = vadd.f32 %v758, %v903
        %v993 = vadd.f32 %v763, %v905
        %v994 = vadd.f32 %v766, %v907
        %v995 = vadd.f32 %v771, %v909
        %v996 = vadd.f32 %v774, %v911
        %v997 = vadd.f32 %v779, %v913
        %v998 = vadd.f32 %v782, %v915
        %v999 = vadd.f32 %v787, %v917
        %v1000 = vadd.f32 %v790, %v919
        %v1001 = vadd.f32 %v795, %v921
        %v1002 = vadd.f32 %v798, %v923
        %v1003 = vadd.f32 %v803, %v925
        %v1004 = vadd.f32 %v806, %v927
        %v1005 = vadd.f32 %v811, %v929
        %v1006 = vadd.f32 %v814, %v931
        %v1007 = vadd.f32 %v819, %v933
        %v1008 = vadd.f32 %v822, %v935
        %v1009 = vadd.f32 %v827, %v937
        %v1010 = vadd.f32 %v830, %v939
        %v1011 = vadd.f32 %v835, %v941
        %v1012 = vadd.f32 %v838, %v943
        %v1013 = vadd.f32 %v843, %v945
        %v1014 = vadd.f32 %v846, %v947
        %v1015 = vadd.f32 %v851, %v949
        %v1016 = vadd.f32 %v854, %v951
        %v1017 = vadd.f32 %v859, %v953
        %v1018 = vadd.f32 %v862, %v955
        %v1019 = vadd.f32 %v867, %v957
        %v1020 = vadd.f32 %v870, %v959
        %1025 = vrot.lane.b32.xlu0 %v763, 120
        %v1026 = vpop.permute.xlu0 %1025
        %1027 = vrot.lane.b32.xlu0 %v766, 120
        %v1028 = vpop.permute.xlu0 %1027
        %1029 = vrot.lane.b32.xlu0 %v771, 120
        %v1030 = vpop.permute.xlu0 %1029
        %1031 = vrot.lane.b32.xlu0 %v774, 120
        %v1032 = vpop.permute.xlu0 %1031
        %1033 = vrot.lane.b32.xlu0 %v779, 120
        %v1034 = vpop.permute.xlu0 %1033
        %1035 = vrot.lane.b32.xlu0 %v782, 120
        %v1036 = vpop.permute.xlu0 %1035
        %1037 = vrot.lane.b32.xlu0 %v787, 120
        %v1038 = vpop.permute.xlu0 %1037
        %1039 = vrot.lane.b32.xlu0 %v790, 120
        %v1040 = vpop.permute.xlu0 %1039
        %1041 = vrot.lane.b32.xlu0 %v795, 120
        %v1042 = vpop.permute.xlu0 %1041
        %1043 = vrot.lane.b32.xlu0 %v798, 120
        %v1044 = vpop.permute.xlu0 %1043
        %1045 = vrot.lane.b32.xlu0 %v803, 120
        %v1046 = vpop.permute.xlu0 %1045
        %1047 = vrot.lane.b32.xlu0 %v806, 120
        %v1048 = vpop.permute.xlu0 %1047
        %1049 = vrot.lane.b32.xlu0 %v811, 120
        %v1050 = vpop.permute.xlu0 %1049
        %1051 = vrot.lane.b32.xlu0 %v814, 120
        %v1052 = vpop.permute.xlu0 %1051
        %1053 = vrot.lane.b32.xlu0 %v819, 120
        %v1054 = vpop.permute.xlu0 %1053
        %1055 = vrot.lane.b32.xlu0 %v822, 120
        %v1056 = vpop.permute.xlu0 %1055
        %1057 = vrot.lane.b32.xlu0 %v827, 120
        %v1058 = vpop.permute.xlu0 %1057
        %1059 = vrot.lane.b32.xlu0 %v830, 120
        %v1060 = vpop.permute.xlu0 %1059
        %1061 = vrot.lane.b32.xlu0 %v835, 120
        %v1062 = vpop.permute.xlu0 %1061
        %1063 = vrot.lane.b32.xlu0 %v838, 120
        %v1064 = vpop.permute.xlu0 %1063
        %1065 = vrot.lane.b32.xlu0 %v843, 120
        %v1066 = vpop.permute.xlu0 %1065
        %1067 = vrot.lane.b32.xlu0 %v846, 120
        %v1068 = vpop.permute.xlu0 %1067
        %1069 = vrot.lane.b32.xlu0 %v851, 120
        %v1070 = vpop.permute.xlu0 %1069
        %1071 = vrot.lane.b32.xlu0 %v854, 120
        %v1072 = vpop.permute.xlu0 %1071
        %1073 = vrot.lane.b32.xlu0 %v859, 120
        %v1074 = vpop.permute.xlu0 %1073
        %1075 = vrot.lane.b32.xlu0 %v862, 120
        %v1076 = vpop.permute.xlu0 %1075
        %1077 = vrot.lane.b32.xlu0 %v867, 120
        %v1078 = vpop.permute.xlu0 %1077
        %1079 = vrot.lane.b32.xlu0 %v870, 120
        %v1080 = vpop.permute.xlu0 %1079
        %1081 = vrot.lane.b32.xlu0 0.0, 120
        %v1082 = vpop.permute.xlu0 %1081
        %v1112 = vadd.f32 %v989, %v1026
        %v1113 = vadd.f32 %v990, %v1028
        %v1114 = vadd.f32 %v991, %v1030
        %v1115 = vadd.f32 %v992, %v1032
        %v1116 = vadd.f32 %v993, %v1034
        %v1117 = vadd.f32 %v994, %v1036
        %v1118 = vadd.f32 %v995, %v1038
        %v1119 = vadd.f32 %v996, %v1040
        %v1120 = vadd.f32 %v997, %v1042
        %v1121 = vadd.f32 %v998, %v1044
        %v1122 = vadd.f32 %v999, %v1046
        %v1123 = vadd.f32 %v1000, %v1048
        %v1124 = vadd.f32 %v1001, %v1050
        %v1125 = vadd.f32 %v1002, %v1052
        %v1126 = vadd.f32 %v1003, %v1054
        %v1127 = vadd.f32 %v1004, %v1056
        %v1128 = vadd.f32 %v1005, %v1058
        %v1129 = vadd.f32 %v1006, %v1060
        %v1130 = vadd.f32 %v1007, %v1062
        %v1131 = vadd.f32 %v1008, %v1064
        %v1132 = vadd.f32 %v1009, %v1066
        %v1133 = vadd.f32 %v1010, %v1068
        %v1134 = vadd.f32 %v1011, %v1070
        %v1135 = vadd.f32 %v1012, %v1072
        %v1136 = vadd.f32 %v1013, %v1074
        %v1137 = vadd.f32 %v1014, %v1076
        %v1138 = vadd.f32 %v1015, %v1078
        %v1139 = vadd.f32 %v1016, %v1080
        %v1140 = vadd.f32 %v1017, %v1082
        %v1141 = vadd.f32 %v1018, %v1082
        %v1142 = vadd.f32 %v1019, %v1082
        %v1143 = vadd.f32 %v1020, %v1082
        %v1144 = vlaneseq
        %v1145 = vshrl.u32 %v1144, 7
        %v1146 = vsub.s32 0, %v1145
        %v1147 = vrot.slane %v577, %v1146
        %1149 = vrot.lane.b32.xlu0 %v1147, 8
        %v1150 = vpop.permute.xlu0 %1149
        %v1152 = vmul.f32 %v1112, %v1150
        %v1153 = vmul.f32 %v1113, %v1150
        %v1154 = vmul.f32 %v1114, %v1150
        %v1155 = vmul.f32 %v1115, %v1150
        %v1156 = vmul.f32 %v1116, %v1150
        %v1157 = vmul.f32 %v1117, %v1150
        %v1158 = vmul.f32 %v1118, %v1150
        %v1159 = vmul.f32 %v1119, %v1150
        %v1160 = vmul.f32 %v1120, %v1150
        %v1161 = vmul.f32 %v1121, %v1150
        %v1162 = vmul.f32 %v1122, %v1150
        %v1163 = vmul.f32 %v1123, %v1150
        %v1164 = vmul.f32 %v1124, %v1150
        %v1165 = vmul.f32 %v1125, %v1150
        %v1166 = vmul.f32 %v1126, %v1150
        %v1167 = vmul.f32 %v1127, %v1150
        %v1168 = vmul.f32 %v1128, %v1150
        %v1169 = vmul.f32 %v1129, %v1150
        %v1170 = vmul.f32 %v1130, %v1150
        %v1171 = vmul.f32 %v1131, %v1150
        %v1172 = vmul.f32 %v1132, %v1150
        %v1173 = vmul.f32 %v1133, %v1150
        %v1174 = vmul.f32 %v1134, %v1150
        %v1175 = vmul.f32 %v1135, %v1150
        %v1176 = vmul.f32 %v1136, %v1150
        %v1177 = vmul.f32 %v1137, %v1150
        %v1178 = vmul.f32 %v1138, %v1150
        %v1179 = vmul.f32 %v1139, %v1150
        %v1180 = vmul.f32 %v1140, %v1150
        %v1181 = vmul.f32 %v1141, %v1150
        %v1182 = vmul.f32 %v1142, %v1150
        %v1183 = vmul.f32 %v1143, %v1150
        %v1184 = vlaneseq
        %v1185 = vshrl.u32 %v1184, 7
        %v1186 = vsub.s32 0, %v1185
        %v1187 = vrot.slane %v578, %v1186
        %1189 = vrot.lane.b32.xlu0 %v1187, 8
        %v1190 = vpop.permute.xlu0 %1189
        %v1192 = vadd.f32 %v1152, %v1190
        %v1193 = vadd.f32 %v1153, %v1190
        %v1194 = vadd.f32 %v1154, %v1190
        %v1195 = vadd.f32 %v1155, %v1190
        %v1196 = vadd.f32 %v1156, %v1190
        %v1197 = vadd.f32 %v1157, %v1190
        %v1198 = vadd.f32 %v1158, %v1190
        %v1199 = vadd.f32 %v1159, %v1190
        %v1200 = vadd.f32 %v1160, %v1190
        %v1201 = vadd.f32 %v1161, %v1190
        %v1202 = vadd.f32 %v1162, %v1190
        %v1203 = vadd.f32 %v1163, %v1190
        %v1204 = vadd.f32 %v1164, %v1190
        %v1205 = vadd.f32 %v1165, %v1190
        %v1206 = vadd.f32 %v1166, %v1190
        %v1207 = vadd.f32 %v1167, %v1190
        %v1208 = vadd.f32 %v1168, %v1190
        %v1209 = vadd.f32 %v1169, %v1190
        %v1210 = vadd.f32 %v1170, %v1190
        %v1211 = vadd.f32 %v1171, %v1190
        %v1212 = vadd.f32 %v1172, %v1190
        %v1213 = vadd.f32 %v1173, %v1190
        %v1214 = vadd.f32 %v1174, %v1190
        %v1215 = vadd.f32 %v1175, %v1190
        %v1216 = vadd.f32 %v1176, %v1190
        %v1217 = vadd.f32 %v1177, %v1190
        %v1218 = vadd.f32 %v1178, %v1190
        %v1219 = vadd.f32 %v1179, %v1190
        %v1220 = vadd.f32 %v1180, %v1190
        %v1221 = vadd.f32 %v1181, %v1190
        %v1222 = vadd.f32 %v1182, %v1190
        %v1223 = vadd.f32 %v1183, %v1190
        %v1224 = vmax.f32 %v1192, 0.0
        %v1225 = vmax.f32 %v1193, 0.0
        %v1226 = vmax.f32 %v1194, 0.0
        %v1227 = vmax.f32 %v1195, 0.0
        %v1228 = vmax.f32 %v1196, 0.0
        %v1229 = vmax.f32 %v1197, 0.0
        %v1230 = vmax.f32 %v1198, 0.0
        %v1231 = vmax.f32 %v1199, 0.0
        %v1232 = vmax.f32 %v1200, 0.0
        %v1233 = vmax.f32 %v1201, 0.0
        %v1234 = vmax.f32 %v1202, 0.0
        %v1235 = vmax.f32 %v1203, 0.0
        %v1236 = vmax.f32 %v1204, 0.0
        %v1237 = vmax.f32 %v1205, 0.0
        %v1238 = vmax.f32 %v1206, 0.0
        %v1239 = vmax.f32 %v1207, 0.0
        %v1240 = vmax.f32 %v1208, 0.0
        %v1241 = vmax.f32 %v1209, 0.0
        %v1242 = vmax.f32 %v1210, 0.0
        %v1243 = vmax.f32 %v1211, 0.0
        %v1244 = vmax.f32 %v1212, 0.0
        %v1245 = vmax.f32 %v1213, 0.0
        %v1246 = vmax.f32 %v1214, 0.0
        %v1247 = vmax.f32 %v1215, 0.0
        %v1248 = vmax.f32 %v1216, 0.0
        %v1249 = vmax.f32 %v1217, 0.0
        %v1250 = vmax.f32 %v1218, 0.0
        %v1251 = vmax.f32 %v1219, 0.0
        %v1252 = vmax.f32 %v1220, 0.0
        %v1253 = vmax.f32 %v1221, 0.0
        %v1254 = vmax.f32 %v1222, 0.0
        %v1255 = vmax.f32 %v1223, 0.0
        %v1256 = vpack.c.bf16 %v1225, %v1224
        %v1257 = vpack.c.bf16 %v1227, %v1226
        %v1258 = vpack.c.bf16 %v1229, %v1228
        %v1259 = vpack.c.bf16 %v1231, %v1230
        %v1260 = vpack.c.bf16 %v1233, %v1232
        %v1261 = vpack.c.bf16 %v1235, %v1234
        %v1262 = vpack.c.bf16 %v1237, %v1236
        %v1263 = vpack.c.bf16 %v1239, %v1238
        %v1264 = vpack.c.bf16 %v1241, %v1240
        %v1265 = vpack.c.bf16 %v1243, %v1242
        %v1266 = vpack.c.bf16 %v1245, %v1244
        %v1267 = vpack.c.bf16 %v1247, %v1246
        %v1268 = vpack.c.bf16 %v1249, %v1248
        %v1269 = vpack.c.bf16 %v1251, %v1250
        %v1270 = vpack.c.bf16 %v1253, %v1252
        %v1271 = vpack.c.bf16 %v1255, %v1254
        %s1272 = scalar_lea.vmem [#allocation6], 4
        %v1273 = vld [vmem:[%s1272] sm:$0xf]
        %v1274 = vld [vmem:[#allocation8 + $0x1] sm:$0x1]
        %v1275 = vld [vmem:[#allocation9 + $0x1] sm:$0x1]
        %1292 = vrot.lane.b32.xlu0 %v1256, 120
        %v1293 = vpop.permute.xlu0 %1292
        %1294 = vrot.lane.b32.xlu0 %v1257, 120
        %v1295 = vpop.permute.xlu0 %1294
        %1296 = vrot.lane.b32.xlu0 %v1258, 120
        %v1297 = vpop.permute.xlu0 %1296
        %1298 = vrot.lane.b32.xlu0 %v1259, 120
        %v1299 = vpop.permute.xlu0 %1298
        %1300 = vrot.lane.b32.xlu0 %v1260, 120
        %v1301 = vpop.permute.xlu0 %1300
        %1302 = vrot.lane.b32.xlu0 %v1261, 120
        %v1303 = vpop.permute.xlu0 %1302
        %1304 = vrot.lane.b32.xlu0 %v1262, 120
        %v1305 = vpop.permute.xlu0 %1304
        %1306 = vrot.lane.b32.xlu0 %v1263, 120
        %v1307 = vpop.permute.xlu0 %1306
        %1308 = vrot.lane.b32.xlu0 %v1264, 120
        %v1309 = vpop.permute.xlu0 %1308
        %1310 = vrot.lane.b32.xlu0 %v1265, 120
        %v1311 = vpop.permute.xlu0 %1310
        %1312 = vrot.lane.b32.xlu0 %v1266, 120
        %v1313 = vpop.permute.xlu0 %1312
        %1314 = vrot.lane.b32.xlu0 %v1267, 120
        %v1315 = vpop.permute.xlu0 %1314
        %1316 = vrot.lane.b32.xlu0 %v1268, 120
        %v1317 = vpop.permute.xlu0 %1316
        %1318 = vrot.lane.b32.xlu0 %v1269, 120
        %v1319 = vpop.permute.xlu0 %1318
        %1320 = vrot.lane.b32.xlu0 %v1270, 120
        %v1321 = vpop.permute.xlu0 %1320
        %1322 = vrot.lane.b32.xlu0 %v1271, 120
        %v1323 = vpop.permute.xlu0 %1322
        %v1325 = vsel %vm659, %v1293, 0
        %v1328 = vsel %vm659, %v1295, 0
        %v1331 = vsel %vm659, %v1297, 0
        %v1334 = vsel %vm659, %v1299, 0
        %v1337 = vsel %vm659, %v1301, 0
        %v1340 = vsel %vm659, %v1303, 0
        %v1343 = vsel %vm659, %v1305, 0
        %v1346 = vsel %vm659, %v1307, 0
        %v1349 = vsel %vm659, %v1309, 0
        %v1352 = vsel %vm659, %v1311, 0
        %v1355 = vsel %vm659, %v1313, 0
        %v1358 = vsel %vm659, %v1315, 0
        %v1361 = vsel %vm659, %v1317, 0
        %v1364 = vsel %vm659, %v1319, 0
        %v1367 = vsel %vm659, %v1321, 0
        %v1370 = vsel %vm659, %v1323, 0
        %v1373 = vsel %vm708, %v1273, 0
        %1375 = vmatprep.subr.bf16.mxu0 0
        %1376 = vmatpush1.bf16.msra.mxu0 %v1373
        %1377 = vmatprep.subr.bf16.mxu0 0
        %1378 = vmatpush1.bf16.msra.mxu0 0
        %1379 = vmatprep.subr.bf16.mxu0 0
        %1380 = vmatpush1.bf16.msra.mxu0 0
        %1381 = vmatprep.subr.bf16.mxu0 0
        %1382 = vmatpush1.bf16.msra.mxu0 0
        %1383 = vmatprep.subr.bf16.mxu0 0
        %1384 = vmatpush1.bf16.msra.mxu0 0
        %1385 = vmatprep.subr.bf16.mxu0 0
        %1386 = vmatpush1.bf16.msra.mxu0 0
        %1387 = vmatprep.subr.bf16.mxu0 0
        %1388 = vmatpush1.bf16.msra.mxu0 0
        %1389 = vmatprep.subr.bf16.mxu0 0
        %1390 = vmatpush1.bf16.msra.mxu0 0
        %1391 = vmatprep.subr.bf16.mxu0 0
        %1392 = vmatpush1.bf16.msra.mxu0 0
        %1393 = vmatprep.subr.bf16.mxu0 0
        %1394 = vmatpush1.bf16.msra.mxu0 0
        %1395 = vmatprep.subr.bf16.mxu0 0
        %1396 = vmatpush1.bf16.msra.mxu0 0
        %1397 = vmatprep.subr.bf16.mxu0 0
        %1398 = vmatpush1.bf16.msra.mxu0 0
        %1399 = vmatprep.subr.bf16.mxu0 0
        %1400 = vmatpush1.bf16.msra.mxu0 0
        %1401 = vmatprep.subr.bf16.mxu0 0
        %1402 = vmatpush1.bf16.msra.mxu0 0
        %1403 = vmatprep.subr.bf16.mxu0 0
        %1404 = vmatpush1.bf16.msra.mxu0 0
        %1405 = vmatprep.subr.bf16.mxu0 0
        %1406 = vmatpush1.bf16.msra.mxu0 0
        %1407 = vmatprep.mubr.bf16.mxu0 0
        %1408 = vmatmul.mubr.bf16.gmra.mrb[0].mxu0 %v1325
        %v1409 = vpop.f32.mrb[0].mxu0
        %v1410 = vadd.f32 0.0, %v1409
        %v1411 = vpop.f32.mrb[0].mxu0
        %v1412 = vpop.f32.mrb[0].mxu0
        %v1413 = vadd.f32 0.0, %v1412
        %v1414 = vpop.f32.mrb[0].mxu0
        %1415 = vmatprep.mubr.bf16.mxu0 0
        %1416 = vmatmul.mubr.bf16.gmra.mrb[0].mxu0 %v1328
        %v1417 = vpop.f32.mrb[0].mxu0
        %v1418 = vadd.f32 0.0, %v1417
        %v1419 = vpop.f32.mrb[0].mxu0
        %v1420 = vpop.f32.mrb[0].mxu0
        %v1421 = vadd.f32 0.0, %v1420
        %v1422 = vpop.f32.mrb[0].mxu0
        %1423 = vmatprep.mubr.bf16.mxu0 0
        %1424 = vmatmul.mubr.bf16.gmra.mrb[0].mxu0 %v1331
        %v1425 = vpop.f32.mrb[0].mxu0
        %v1426 = vadd.f32 0.0, %v1425
        %v1427 = vpop.f32.mrb[0].mxu0
        %v1428 = vpop.f32.mrb[0].mxu0
        %v1429 = vadd.f32 0.0, %v1428
        %v1430 = vpop.f32.mrb[0].mxu0
        %1431 = vmatprep.mubr.bf16.mxu0 0
        %1432 = vmatmul.mubr.bf16.gmra.mrb[0].mxu0 %v1334
        %v1433 = vpop.f32.mrb[0].mxu0
        %v1434 = vadd.f32 0.0, %v1433
        %v1435 = vpop.f32.mrb[0].mxu0
        %v1436 = vpop.f32.mrb[0].mxu0
        %v1437 = vadd.f32 0.0, %v1436
        %v1438 = vpop.f32.mrb[0].mxu0
        %1439 = vmatprep.mubr.bf16.mxu0 0
        %1440 = vmatmul.mubr.bf16.gmra.mrb[0].mxu0 %v1337
        %v1441 = vpop.f32.mrb[0].mxu0
        %v1442 = vadd.f32 0.0, %v1441
        %v1443 = vpop.f32.mrb[0].mxu0
        %v1444 = vpop.f32.mrb[0].mxu0
        %v1445 = vadd.f32 0.0, %v1444
        %v1446 = vpop.f32.mrb[0].mxu0
        %1447 = vmatprep.mubr.bf16.mxu0 0
        %1448 = vmatmul.mubr.bf16.gmra.mrb[0].mxu0 %v1340
        %v1449 = vpop.f32.mrb[0].mxu0
        %v1450 = vadd.f32 0.0, %v1449
        %v1451 = vpop.f32.mrb[0].mxu0
        %v1452 = vpop.f32.mrb[0].mxu0
        %v1453 = vadd.f32 0.0, %v1452
        %v1454 = vpop.f32.mrb[0].mxu0
        %1455 = vmatprep.mubr.bf16.mxu0 0
        %1456 = vmatmul.mubr.bf16.gmra.mrb[0].mxu0 %v1343
        %v1457 = vpop.f32.mrb[0].mxu0
        %v1458 = vadd.f32 0.0, %v1457
        %v1459 = vpop.f32.mrb[0].mxu0
        %v1460 = vpop.f32.mrb[0].mxu0
        %v1461 = vadd.f32 0.0, %v1460
        %v1462 = vpop.f32.mrb[0].mxu0
        %1463 = vmatprep.mubr.bf16.mxu0 0
        %1464 = vmatmul.mubr.bf16.gmra.mrb[0].mxu0 %v1346
        %v1465 = vpop.f32.mrb[0].mxu0
        %v1466 = vadd.f32 0.0, %v1465
        %v1467 = vpop.f32.mrb[0].mxu0
        %v1468 = vpop.f32.mrb[0].mxu0
        %v1469 = vadd.f32 0.0, %v1468
        %v1470 = vpop.f32.mrb[0].mxu0
        %1471 = vmatprep.mubr.bf16.mxu0 0
        %1472 = vmatmul.mubr.bf16.gmra.mrb[0].mxu0 %v1349
        %v1473 = vpop.f32.mrb[0].mxu0
        %v1474 = vadd.f32 0.0, %v1473
        %v1475 = vpop.f32.mrb[0].mxu0
        %v1476 = vpop.f32.mrb[0].mxu0
        %v1477 = vadd.f32 0.0, %v1476
        %v1478 = vpop.f32.mrb[0].mxu0
        %1479 = vmatprep.mubr.bf16.mxu0 0
        %1480 = vmatmul.mubr.bf16.gmra.mrb[0].mxu0 %v1352
        %v1481 = vpop.f32.mrb[0].mxu0
        %v1482 = vadd.f32 0.0, %v1481
        %v1483 = vpop.f32.mrb[0].mxu0
        %v1484 = vpop.f32.mrb[0].mxu0
        %v1485 = vadd.f32 0.0, %v1484
        %v1486 = vpop.f32.mrb[0].mxu0
        %1487 = vmatprep.mubr.bf16.mxu0 0
        %1488 = vmatmul.mubr.bf16.gmra.mrb[0].mxu0 %v1355
        %v1489 = vpop.f32.mrb[0].mxu0
        %v1490 = vadd.f32 0.0, %v1489
        %v1491 = vpop.f32.mrb[0].mxu0
        %v1492 = vpop.f32.mrb[0].mxu0
        %v1493 = vadd.f32 0.0, %v1492
        %v1494 = vpop.f32.mrb[0].mxu0
        %1495 = vmatprep.mubr.bf16.mxu0 0
        %1496 = vmatmul.mubr.bf16.gmra.mrb[0].mxu0 %v1358
        %v1497 = vpop.f32.mrb[0].mxu0
        %v1498 = vadd.f32 0.0, %v1497
        %v1499 = vpop.f32.mrb[0].mxu0
        %v1500 = vpop.f32.mrb[0].mxu0
        %v1501 = vadd.f32 0.0, %v1500
        %v1502 = vpop.f32.mrb[0].mxu0
        %1503 = vmatprep.mubr.bf16.mxu0 0
        %1504 = vmatmul.mubr.bf16.gmra.mrb[0].mxu0 %v1361
        %v1505 = vpop.f32.mrb[0].mxu0
        %v1506 = vadd.f32 0.0, %v1505
        %v1507 = vpop.f32.mrb[0].mxu0
        %v1508 = vpop.f32.mrb[0].mxu0
        %v1509 = vadd.f32 0.0, %v1508
        %v1510 = vpop.f32.mrb[0].mxu0
        %1511 = vmatprep.mubr.bf16.mxu0 0
        %1512 = vmatmul.mubr.bf16.gmra.mrb[0].mxu0 %v1364
        %v1513 = vpop.f32.mrb[0].mxu0
        %v1514 = vadd.f32 0.0, %v1513
        %v1515 = vpop.f32.mrb[0].mxu0
        %v1516 = vpop.f32.mrb[0].mxu0
        %v1517 = vadd.f32 0.0, %v1516
        %v1518 = vpop.f32.mrb[0].mxu0
        %1519 = vmatprep.mubr.bf16.mxu0 0
        %1520 = vmatmul.mubr.bf16.gmra.mrb[0].mxu0 %v1367
        %v1521 = vpop.f32.mrb[0].mxu0
        %v1522 = vadd.f32 0.0, %v1521
        %v1523 = vpop.f32.mrb[0].mxu0
        %v1524 = vpop.f32.mrb[0].mxu0
        %v1525 = vadd.f32 0.0, %v1524
        %v1526 = vpop.f32.mrb[0].mxu0
        %1527 = vmatprep.mubr.bf16.mxu0 0
        %1528 = vmatmul.mubr.bf16.gmra.mrb[0].mxu0 %v1370
        %v1529 = vpop.f32.mrb[0].mxu0
        %v1530 = vadd.f32 0.0, %v1529
        %v1531 = vpop.f32.mrb[0].mxu0
        %v1532 = vpop.f32.mrb[0].mxu0
        %v1533 = vadd.f32 0.0, %v1532
        %v1534 = vpop.f32.mrb[0].mxu0
        %1535 = vdwg.mxu0
        %1564 = vrot.lane.b32.xlu0 %v1410, 8
        %v1565 = vpop.permute.xlu0 %1564
        %1566 = vrot.lane.b32.xlu0 %v1413, 8
        %v1567 = vpop.permute.xlu0 %1566
        %1568 = vrot.lane.b32.xlu0 %v1418, 8
        %v1569 = vpop.permute.xlu0 %1568
        %1570 = vrot.lane.b32.xlu0 %v1421, 8
        %v1571 = vpop.permute.xlu0 %1570
        %1572 = vrot.lane.b32.xlu0 %v1426, 8
        %v1573 = vpop.permute.xlu0 %1572
        %1574 = vrot.lane.b32.xlu0 %v1429, 8
        %v1575 = vpop.permute.xlu0 %1574
        %1576 = vrot.lane.b32.xlu0 %v1434, 8
        %v1577 = vpop.permute.xlu0 %1576
        %1578 = vrot.lane.b32.xlu0 %v1437, 8
        %v1579 = vpop.permute.xlu0 %1578
        %1580 = vrot.lane.b32.xlu0 %v1442, 8
        %v1581 = vpop.permute.xlu0 %1580
        %1582 = vrot.lane.b32.xlu0 %v1445, 8
        %v1583 = vpop.permute.xlu0 %1582
        %1584 = vrot.lane.b32.xlu0 %v1450, 8
        %v1585 = vpop.permute.xlu0 %1584
        %1586 = vrot.lane.b32.xlu0 %v1453, 8
        %v1587 = vpop.permute.xlu0 %1586
        %1588 = vrot.lane.b32.xlu0 %v1458, 8
        %v1589 = vpop.permute.xlu0 %1588
        %1590 = vrot.lane.b32.xlu0 %v1461, 8
        %v1591 = vpop.permute.xlu0 %1590
        %1592 = vrot.lane.b32.xlu0 %v1466, 8
        %v1593 = vpop.permute.xlu0 %1592
        %1594 = vrot.lane.b32.xlu0 %v1469, 8
        %v1595 = vpop.permute.xlu0 %1594
        %1596 = vrot.lane.b32.xlu0 %v1474, 8
        %v1597 = vpop.permute.xlu0 %1596
        %1598 = vrot.lane.b32.xlu0 %v1477, 8
        %v1599 = vpop.permute.xlu0 %1598
        %1600 = vrot.lane.b32.xlu0 %v1482, 8
        %v1601 = vpop.permute.xlu0 %1600
        %1602 = vrot.lane.b32.xlu0 %v1485, 8
        %v1603 = vpop.permute.xlu0 %1602
        %1604 = vrot.lane.b32.xlu0 %v1490, 8
        %v1605 = vpop.permute.xlu0 %1604
        %1606 = vrot.lane.b32.xlu0 %v1493, 8
        %v1607 = vpop.permute.xlu0 %1606
        %1608 = vrot.lane.b32.xlu0 %v1498, 8
        %v1609 = vpop.permute.xlu0 %1608
        %1610 = vrot.lane.b32.xlu0 %v1501, 8
        %v1611 = vpop.permute.xlu0 %1610
        %1612 = vrot.lane.b32.xlu0 %v1506, 8
        %v1613 = vpop.permute.xlu0 %1612
        %1614 = vrot.lane.b32.xlu0 %v1509, 8
        %v1615 = vpop.permute.xlu0 %1614
        %1616 = vrot.lane.b32.xlu0 %v1514, 8
        %v1617 = vpop.permute.xlu0 %1616
        %1618 = vrot.lane.b32.xlu0 %v1517, 8
        %v1619 = vpop.permute.xlu0 %1618
        %v1648 = vadd.f32 %v1410, %v903
        %v1649 = vadd.f32 %v1413, %v903
        %v1650 = vadd.f32 %v1418, %v903
        %v1651 = vadd.f32 %v1421, %v903
        %v1652 = vadd.f32 %v1426, %v1565
        %v1653 = vadd.f32 %v1429, %v1567
        %v1654 = vadd.f32 %v1434, %v1569
        %v1655 = vadd.f32 %v1437, %v1571
        %v1656 = vadd.f32 %v1442, %v1573
        %v1657 = vadd.f32 %v1445, %v1575
        %v1658 = vadd.f32 %v1450, %v1577
        %v1659 = vadd.f32 %v1453, %v1579
        %v1660 = vadd.f32 %v1458, %v1581
        %v1661 = vadd.f32 %v1461, %v1583
        %v1662 = vadd.f32 %v1466, %v1585
        %v1663 = vadd.f32 %v1469, %v1587
        %v1664 = vadd.f32 %v1474, %v1589
        %v1665 = vadd.f32 %v1477, %v1591
        %v1666 = vadd.f32 %v1482, %v1593
        %v1667 = vadd.f32 %v1485, %v1595
        %v1668 = vadd.f32 %v1490, %v1597
        %v1669 = vadd.f32 %v1493, %v1599
        %v1670 = vadd.f32 %v1498, %v1601
        %v1671 = vadd.f32 %v1501, %v1603
        %v1672 = vadd.f32 %v1506, %v1605
        %v1673 = vadd.f32 %v1509, %v1607
        %v1674 = vadd.f32 %v1514, %v1609
        %v1675 = vadd.f32 %v1517, %v1611
        %v1676 = vadd.f32 %v1522, %v1613
        %v1677 = vadd.f32 %v1525, %v1615
        %v1678 = vadd.f32 %v1530, %v1617
        %v1679 = vadd.f32 %v1533, %v1619
        %1684 = vrot.lane.b32.xlu0 %v1426, 120
        %v1685 = vpop.permute.xlu0 %1684
        %1686 = vrot.lane.b32.xlu0 %v1429, 120
        %v1687 = vpop.permute.xlu0 %1686
        %1688 = vrot.lane.b32.xlu0 %v1434, 120
        %v1689 = vpop.permute.xlu0 %1688
        %1690 = vrot.lane.b32.xlu0 %v1437, 120
        %v1691 = vpop.permute.xlu0 %1690
        %1692 = vrot.lane.b32.xlu0 %v1442, 120
        %v1693 = vpop.permute.xlu0 %1692
        %1694 = vrot.lane.b32.xlu0 %v1445, 120
        %v1695 = vpop.permute.xlu0 %1694
        %1696 = vrot.lane.b32.xlu0 %v1450, 120
        %v1697 = vpop.permute.xlu0 %1696
        %1698 = vrot.lane.b32.xlu0 %v1453, 120
        %v1699 = vpop.permute.xlu0 %1698
        %1700 = vrot.lane.b32.xlu0 %v1458, 120
        %v1701 = vpop.permute.xlu0 %1700
        %1702 = vrot.lane.b32.xlu0 %v1461, 120
        %v1703 = vpop.permute.xlu0 %1702
        %1704 = vrot.lane.b32.xlu0 %v1466, 120
        %v1705 = vpop.permute.xlu0 %1704
        %1706 = vrot.lane.b32.xlu0 %v1469, 120
        %v1707 = vpop.permute.xlu0 %1706
        %1708 = vrot.lane.b32.xlu0 %v1474, 120
        %v1709 = vpop.permute.xlu0 %1708
        %1710 = vrot.lane.b32.xlu0 %v1477, 120
        %v1711 = vpop.permute.xlu0 %1710
        %1712 = vrot.lane.b32.xlu0 %v1482, 120
        %v1713 = vpop.permute.xlu0 %1712
        %1714 = vrot.lane.b32.xlu0 %v1485, 120
        %v1715 = vpop.permute.xlu0 %1714
        %1716 = vrot.lane.b32.xlu0 %v1490, 120
        %v1717 = vpop.permute.xlu0 %1716
        %1718 = vrot.lane.b32.xlu0 %v1493, 120
        %v1719 = vpop.permute.xlu0 %1718
        %1720 = vrot.lane.b32.xlu0 %v1498, 120
        %v1721 = vpop.permute.xlu0 %1720
        %1722 = vrot.lane.b32.xlu0 %v1501, 120
        %v1723 = vpop.permute.xlu0 %1722
        %1724 = vrot.lane.b32.xlu0 %v1506, 120
        %v1725 = vpop.permute.xlu0 %1724
        %1726 = vrot.lane.b32.xlu0 %v1509, 120
        %v1727 = vpop.permute.xlu0 %1726
        %1728 = vrot.lane.b32.xlu0 %v1514, 120
        %v1729 = vpop.permute.xlu0 %1728
        %1730 = vrot.lane.b32.xlu0 %v1517, 120
        %v1731 = vpop.permute.xlu0 %1730
        %1732 = vrot.lane.b32.xlu0 %v1522, 120
        %v1733 = vpop.permute.xlu0 %1732
        %1734 = vrot.lane.b32.xlu0 %v1525, 120
        %v1735 = vpop.permute.xlu0 %1734
        %1736 = vrot.lane.b32.xlu0 %v1530, 120
        %v1737 = vpop.permute.xlu0 %1736
        %1738 = vrot.lane.b32.xlu0 %v1533, 120
        %v1739 = vpop.permute.xlu0 %1738
        %v1768 = vadd.f32 %v1648, %v1685
        %v1769 = vadd.f32 %v1649, %v1687
        %v1770 = vadd.f32 %v1650, %v1689
        %v1771 = vadd.f32 %v1651, %v1691
        %v1772 = vadd.f32 %v1652, %v1693
        %v1773 = vadd.f32 %v1653, %v1695
        %v1774 = vadd.f32 %v1654, %v1697
        %v1775 = vadd.f32 %v1655, %v1699
        %v1776 = vadd.f32 %v1656, %v1701
        %v1777 = vadd.f32 %v1657, %v1703
        %v1778 = vadd.f32 %v1658, %v1705
        %v1779 = vadd.f32 %v1659, %v1707
        %v1780 = vadd.f32 %v1660, %v1709
        %v1781 = vadd.f32 %v1661, %v1711
        %v1782 = vadd.f32 %v1662, %v1713
        %v1783 = vadd.f32 %v1663, %v1715
        %v1784 = vadd.f32 %v1664, %v1717
        %v1785 = vadd.f32 %v1665, %v1719
        %v1786 = vadd.f32 %v1666, %v1721
        %v1787 = vadd.f32 %v1667, %v1723
        %v1788 = vadd.f32 %v1668, %v1725
        %v1789 = vadd.f32 %v1669, %v1727
        %v1790 = vadd.f32 %v1670, %v1729
        %v1791 = vadd.f32 %v1671, %v1731
        %v1792 = vadd.f32 %v1672, %v1733
        %v1793 = vadd.f32 %v1673, %v1735
        %v1794 = vadd.f32 %v1674, %v1737
        %v1795 = vadd.f32 %v1675, %v1739
        %v1796 = vadd.f32 %v1676, %v1082
        %v1797 = vadd.f32 %v1677, %v1082
        %v1798 = vadd.f32 %v1678, %v1082
        %v1799 = vadd.f32 %v1679, %v1082
        %v1800 = vlaneseq
        %v1801 = vshrl.u32 %v1800, 7
        %v1802 = vsub.s32 0, %v1801
        %v1803 = vrot.slane %v1274, %v1802
        %1805 = vrot.lane.b32.xlu0 %v1803, 8
        %v1806 = vpop.permute.xlu0 %1805
        %v1808 = vmul.f32 %v1768, %v1806
        %v1809 = vmul.f32 %v1769, %v1806
        %v1810 = vmul.f32 %v1770, %v1806
        %v1811 = vmul.f32 %v1771, %v1806
        %v1812 = vmul.f32 %v1772, %v1806
        %v1813 = vmul.f32 %v1773, %v1806
        %v1814 = vmul.f32 %v1774, %v1806
        %v1815 = vmul.f32 %v1775, %v1806
        %v1816 = vmul.f32 %v1776, %v1806
        %v1817 = vmul.f32 %v1777, %v1806
        %v1818 = vmul.f32 %v1778, %v1806
        %v1819 = vmul.f32 %v1779, %v1806
        %v1820 = vmul.f32 %v1780, %v1806
        %v1821 = vmul.f32 %v1781, %v1806
        %v1822 = vmul.f32 %v1782, %v1806
        %v1823 = vmul.f32 %v1783, %v1806
        %v1824 = vmul.f32 %v1784, %v1806
        %v1825 = vmul.f32 %v1785, %v1806
        %v1826 = vmul.f32 %v1786, %v1806
        %v1827 = vmul.f32 %v1787, %v1806
        %v1828 = vmul.f32 %v1788, %v1806
        %v1829 = vmul.f32 %v1789, %v1806
        %v1830 = vmul.f32 %v1790, %v1806
        %v1831 = vmul.f32 %v1791, %v1806
        %v1832 = vmul.f32 %v1792, %v1806
        %v1833 = vmul.f32 %v1793, %v1806
        %v1834 = vmul.f32 %v1794, %v1806
        %v1835 = vmul.f32 %v1795, %v1806
        %v1836 = vmul.f32 %v1796, %v1806
        %v1837 = vmul.f32 %v1797, %v1806
        %v1838 = vmul.f32 %v1798, %v1806
        %v1839 = vmul.f32 %v1799, %v1806
        %v1840 = vlaneseq
        %v1841 = vshrl.u32 %v1840, 7
        %v1842 = vsub.s32 0, %v1841
        %v1843 = vrot.slane %v1275, %v1842
        %1845 = vrot.lane.b32.xlu0 %v1843, 8
        %v1846 = vpop.permute.xlu0 %1845
        %v1848 = vadd.f32 %v1808, %v1846
        %v1849 = vadd.f32 %v1809, %v1846
        %v1850 = vadd.f32 %v1810, %v1846
        %v1851 = vadd.f32 %v1811, %v1846
        %v1852 = vadd.f32 %v1812, %v1846
        %v1853 = vadd.f32 %v1813, %v1846
        %v1854 = vadd.f32 %v1814, %v1846
        %v1855 = vadd.f32 %v1815, %v1846
        %v1856 = vadd.f32 %v1816, %v1846
        %v1857 = vadd.f32 %v1817, %v1846
        %v1858 = vadd.f32 %v1818, %v1846
        %v1859 = vadd.f32 %v1819, %v1846
        %v1860 = vadd.f32 %v1820, %v1846
        %v1861 = vadd.f32 %v1821, %v1846
        %v1862 = vadd.f32 %v1822, %v1846
        %v1863 = vadd.f32 %v1823, %v1846
        %v1864 = vadd.f32 %v1824, %v1846
        %v1865 = vadd.f32 %v1825, %v1846
        %v1866 = vadd.f32 %v1826, %v1846
        %v1867 = vadd.f32 %v1827, %v1846
        %v1868 = vadd.f32 %v1828, %v1846
        %v1869 = vadd.f32 %v1829, %v1846
        %v1870 = vadd.f32 %v1830, %v1846
        %v1871 = vadd.f32 %v1831, %v1846
        %v1872 = vadd.f32 %v1832, %v1846
        %v1873 = vadd.f32 %v1833, %v1846
        %v1874 = vadd.f32 %v1834, %v1846
        %v1875 = vadd.f32 %v1835, %v1846
        %v1876 = vadd.f32 %v1836, %v1846
        %v1877 = vadd.f32 %v1837, %v1846
        %v1878 = vadd.f32 %v1838, %v1846
        %v1879 = vadd.f32 %v1839, %v1846
        %v1880 = vmax.f32 %v1848, 0.0
        %v1881 = vmax.f32 %v1849, 0.0
        %v1882 = vmax.f32 %v1850, 0.0
        %v1883 = vmax.f32 %v1851, 0.0
        %v1884 = vmax.f32 %v1852, 0.0
        %v1885 = vmax.f32 %v1853, 0.0
        %v1886 = vmax.f32 %v1854, 0.0
        %v1887 = vmax.f32 %v1855, 0.0
        %v1888 = vmax.f32 %v1856, 0.0
        %v1889 = vmax.f32 %v1857, 0.0
        %v1890 = vmax.f32 %v1858, 0.0
        %v1891 = vmax.f32 %v1859, 0.0
        %v1892 = vmax.f32 %v1860, 0.0
        %v1893 = vmax.f32 %v1861, 0.0
        %v1894 = vmax.f32 %v1862, 0.0
        %v1895 = vmax.f32 %v1863, 0.0
        %v1896 = vmax.f32 %v1864, 0.0
        %v1897 = vmax.f32 %v1865, 0.0
        %v1898 = vmax.f32 %v1866, 0.0
        %v1899 = vmax.f32 %v1867, 0.0
        %v1900 = vmax.f32 %v1868, 0.0
        %v1901 = vmax.f32 %v1869, 0.0
        %v1902 = vmax.f32 %v1870, 0.0
        %v1903 = vmax.f32 %v1871, 0.0
        %v1904 = vmax.f32 %v1872, 0.0
        %v1905 = vmax.f32 %v1873, 0.0
        %v1906 = vmax.f32 %v1874, 0.0
        %v1907 = vmax.f32 %v1875, 0.0
        %v1908 = vmax.f32 %v1876, 0.0
        %v1909 = vmax.f32 %v1877, 0.0
        %v1910 = vmax.f32 %v1878, 0.0
        %v1911 = vmax.f32 %v1879, 0.0
        %v1912 = vpack.c.bf16 %v1881, %v1880
        %v1913 = vpack.c.bf16 %v1883, %v1882
        %v1914 = vpack.c.bf16 %v1885, %v1884
        %v1915 = vpack.c.bf16 %v1887, %v1886
        %v1916 = vpack.c.bf16 %v1889, %v1888
        %v1917 = vpack.c.bf16 %v1891, %v1890
        %v1918 = vpack.c.bf16 %v1893, %v1892
        %v1919 = vpack.c.bf16 %v1895, %v1894
        %v1920 = vpack.c.bf16 %v1897, %v1896
        %v1921 = vpack.c.bf16 %v1899, %v1898
        %v1922 = vpack.c.bf16 %v1901, %v1900
        %v1923 = vpack.c.bf16 %v1903, %v1902
        %v1924 = vpack.c.bf16 %v1905, %v1904
        %v1925 = vpack.c.bf16 %v1907, %v1906
        %v1926 = vpack.c.bf16 %v1909, %v1908
        %v1927 = vpack.c.bf16 %v1911, %v1910
        %s1928 = scalar_lea.vmem [#allocation6], 8
        %v1929 = vld [vmem:[%s1928] sm:$0xf]
        %v1930 = vld [vmem:[#allocation8 + $0x2] sm:$0x1]
        %v1931 = vld [vmem:[#allocation9 + $0x2] sm:$0x1]
        %1948 = vrot.lane.b32.xlu0 %v1912, 120
        %v1949 = vpop.permute.xlu0 %1948
        %1950 = vrot.lane.b32.xlu0 %v1913, 120
        %v1951 = vpop.permute.xlu0 %1950
        %1952 = vrot.lane.b32.xlu0 %v1914, 120
        %v1953 = vpop.permute.xlu0 %1952
        %1954 = vrot.lane.b32.xlu0 %v1915, 120
        %v1955 = vpop.permute.xlu0 %1954
        %1956 = vrot.lane.b32.xlu0 %v1916, 120
        %v1957 = vpop.permute.xlu0 %1956
        %1958 = vrot.lane.b32.xlu0 %v1917, 120
        %v1959 = vpop.permute.xlu0 %1958
        %1960 = vrot.lane.b32.xlu0 %v1918, 120
        %v1961 = vpop.permute.xlu0 %1960
        %1962 = vrot.lane.b32.xlu0 %v1919, 120
        %v1963 = vpop.permute.xlu0 %1962
        %1964 = vrot.lane.b32.xlu0 %v1920, 120
        %v1965 = vpop.permute.xlu0 %1964
        %1966 = vrot.lane.b32.xlu0 %v1921, 120
        %v1967 = vpop.permute.xlu0 %1966
        %1968 = vrot.lane.b32.xlu0 %v1922, 120
        %v1969 = vpop.permute.xlu0 %1968
        %1970 = vrot.lane.b32.xlu0 %v1923, 120
        %v1971 = vpop.permute.xlu0 %1970
        %1972 = vrot.lane.b32.xlu0 %v1924, 120
        %v1973 = vpop.permute.xlu0 %1972
        %1974 = vrot.lane.b32.xlu0 %v1925, 120
        %v1975 = vpop.permute.xlu0 %1974
        %1976 = vrot.lane.b32.xlu0 %v1926, 120
        %v1977 = vpop.permute.xlu0 %1976
        %1978 = vrot.lane.b32.xlu0 %v1927, 120
        %v1979 = vpop.permute.xlu0 %1978
        %v1981 = vsel %vm659, %v1949, 0
        %v1984 = vsel %vm659, %v1951, 0
        %v1987 = vsel %vm659, %v1953, 0
        %v1990 = vsel %vm659, %v1955, 0
        %v1993 = vsel %vm659, %v1957, 0
        %v1996 = vsel %vm659, %v1959, 0
        %v1999 = vsel %vm659, %v1961, 0
        %v2002 = vsel %vm659, %v1963, 0
        %v2005 = vsel %vm659, %v1965, 0
        %v2008 = vsel %vm659, %v1967, 0
        %v2011 = vsel %vm659, %v1969, 0
        %v2014 = vsel %vm659, %v1971, 0
        %v2017 = vsel %vm659, %v1973, 0
        %v2020 = vsel %vm659, %v1975, 0
        %v2023 = vsel %vm659, %v1977, 0
        %v2026 = vsel %vm659, %v1979, 0
        %v2029 = vsel %vm708, %v1929, 0
        %2031 = vmatprep.subr.bf16.mxu0 0
        %2032 = vmatpush1.bf16.msra.mxu0 %v2029
        %2033 = vmatprep.subr.bf16.mxu0 0
        %2034 = vmatpush1.bf16.msra.mxu0 0
        %2035 = vmatprep.subr.bf16.mxu0 0
        %2036 = vmatpush1.bf16.msra.mxu0 0
        %2037 = vmatprep.subr.bf16.mxu0 0
        %2038 = vmatpush1.bf16.msra.mxu0 0
        %2039 = vmatprep.subr.bf16.mxu0 0
        %2040 = vmatpush1.bf16.msra.mxu0 0
        %2041 = vmatprep.subr.bf16.mxu0 0
        %2042 = vmatpush1.bf16.msra.mxu0 0
        %2043 = vmatprep.subr.bf16.mxu0 0
        %2044 = vmatpush1.bf16.msra.mxu0 0
        %2045 = vmatprep.subr.bf16.mxu0 0
        %2046 = vmatpush1.bf16.msra.mxu0 0
        %2047 = vmatprep.subr.bf16.mxu0 0
        %2048 = vmatpush1.bf16.msra.mxu0 0
        %2049 = vmatprep.subr.bf16.mxu0 0
        %2050 = vmatpush1.bf16.msra.mxu0 0
        %2051 = vmatprep.subr.bf16.mxu0 0
        %2052 = vmatpush1.bf16.msra.mxu0 0
        %2053 = vmatprep.subr.bf16.mxu0 0
        %2054 = vmatpush1.bf16.msra.mxu0 0
        %2055 = vmatprep.subr.bf16.mxu0 0
        %2056 = vmatpush1.bf16.msra.mxu0 0
        %2057 = vmatprep.subr.bf16.mxu0 0
        %2058 = vmatpush1.bf16.msra.mxu0 0
        %2059 = vmatprep.subr.bf16.mxu0 0
        %2060 = vmatpush1.bf16.msra.mxu0 0
        %2061 = vmatprep.subr.bf16.mxu0 0
        %2062 = vmatpush1.bf16.msra.mxu0 0
        %2063 = vmatprep.mubr.bf16.mxu0 0
        %2064 = vmatmul.mubr.bf16.gmra.mrb[0].mxu0 %v1981
        %v2065 = vpop.f32.mrb[0].mxu0
        %v2066 = vadd.f32 0.0, %v2065
        %v2067 = vpop.f32.mrb[0].mxu0
        %v2068 = vpop.f32.mrb[0].mxu0
        %v2069 = vadd.f32 0.0, %v2068
        %v2070 = vpop.f32.mrb[0].mxu0
        %2071 = vmatprep.mubr.bf16.mxu0 0
        %2072 = vmatmul.mubr.bf16.gmra.mrb[0].mxu0 %v1984
        %v2073 = vpop.f32.mrb[0].mxu0
        %v2074 = vadd.f32 0.0, %v2073
        %v2075 = vpop.f32.mrb[0].mxu0
        %v2076 = vpop.f32.mrb[0].mxu0
        %v2077 = vadd.f32 0.0, %v2076
        %v2078 = vpop.f32.mrb[0].mxu0
        %2079 = vmatprep.mubr.bf16.mxu0 0
        %2080 = vmatmul.mubr.bf16.gmra.mrb[0].mxu0 %v1987
        %v2081 = vpop.f32.mrb[0].mxu0
        %v2082 = vadd.f32 0.0, %v2081
        %v2083 = vpop.f32.mrb[0].mxu0
        %v2084 = vpop.f32.mrb[0].mxu0
        %v2085 = vadd.f32 0.0, %v2084
        %v2086 = vpop.f32.mrb[0].mxu0
        %2087 = vmatprep.mubr.bf16.mxu0 0
        %2088 = vmatmul.mubr.bf16.gmra.mrb[0].mxu0 %v1990
        %v2089 = vpop.f32.mrb[0].mxu0
        %v2090 = vadd.f32 0.0, %v2089
        %v2091 = vpop.f32.mrb[0].mxu0
        %v2092 = vpop.f32.mrb[0].mxu0
        %v2093 = vadd.f32 0.0, %v2092
        %v2094 = vpop.f32.mrb[0].mxu0
        %2095 = vmatprep.mubr.bf16.mxu0 0
        %2096 = vmatmul.mubr.bf16.gmra.mrb[0].mxu0 %v1993
        %v2097 = vpop.f32.mrb[0].mxu0
        %v2098 = vadd.f32 0.0, %v2097
        %v2099 = vpop.f32.mrb[0].mxu0
        %v2100 = vpop.f32.mrb[0].mxu0
        %v2101 = vadd.f32 0.0, %v2100
        %v2102 = vpop.f32.mrb[0].mxu0
        %2103 = vmatprep.mubr.bf16.mxu0 0
        %2104 = vmatmul.mubr.bf16.gmra.mrb[0].mxu0 %v1996
        %v2105 = vpop.f32.mrb[0].mxu0
        %v2106 = vadd.f32 0.0, %v2105
        %v2107 = vpop.f32.mrb[0].mxu0
        %v2108 = vpop.f32.mrb[0].mxu0
        %v2109 = vadd.f32 0.0, %v2108
        %v2110 = vpop.f32.mrb[0].mxu0
        %2111 = vmatprep.mubr.bf16.mxu0 0
        %2112 = vmatmul.mubr.bf16.gmra.mrb[0].mxu0 %v1999
        %v2113 = vpop.f32.mrb[0].mxu0
        %v2114 = vadd.f32 0.0, %v2113
        %v2115 = vpop.f32.mrb[0].mxu0
        %v2116 = vpop.f32.mrb[0].mxu0
        %v2117 = vadd.f32 0.0, %v2116
        %v2118 = vpop.f32.mrb[0].mxu0
        %2119 = vmatprep.mubr.bf16.mxu0 0
        %2120 = vmatmul.mubr.bf16.gmra.mrb[0].mxu0 %v2002
        %v2121 = vpop.f32.mrb[0].mxu0
        %v2122 = vadd.f32 0.0, %v2121
        %v2123 = vpop.f32.mrb[0].mxu0
        %v2124 = vpop.f32.mrb[0].mxu0
        %v2125 = vadd.f32 0.0, %v2124
        %v2126 = vpop.f32.mrb[0].mxu0
        %2127 = vmatprep.mubr.bf16.mxu0 0
        %2128 = vmatmul.mubr.bf16.gmra.mrb[0].mxu0 %v2005
        %v2129 = vpop.f32.mrb[0].mxu0
        %v2130 = vadd.f32 0.0, %v2129
        %v2131 = vpop.f32.mrb[0].mxu0
        %v2132 = vpop.f32.mrb[0].mxu0
        %v2133 = vadd.f32 0.0, %v2132
        %v2134 = vpop.f32.mrb[0].mxu0
        %2135 = vmatprep.mubr.bf16.mxu0 0
        %2136 = vmatmul.mubr.bf16.gmra.mrb[0].mxu0 %v2008
        %v2137 = vpop.f32.mrb[0].mxu0
        %v2138 = vadd.f32 0.0, %v2137
        %v2139 = vpop.f32.mrb[0].mxu0
        %v2140 = vpop.f32.mrb[0].mxu0
        %v2141 = vadd.f32 0.0, %v2140
        %v2142 = vpop.f32.mrb[0].mxu0
        %2143 = vmatprep.mubr.bf16.mxu0 0
        %2144 = vmatmul.mubr.bf16.gmra.mrb[0].mxu0 %v2011
        %v2145 = vpop.f32.mrb[0].mxu0
        %v2146 = vadd.f32 0.0, %v2145
        %v2147 = vpop.f32.mrb[0].mxu0
        %v2148 = vpop.f32.mrb[0].mxu0
        %v2149 = vadd.f32 0.0, %v2148
        %v2150 = vpop.f32.mrb[0].mxu0
        %2151 = vmatprep.mubr.bf16.mxu0 0
        %2152 = vmatmul.mubr.bf16.gmra.mrb[0].mxu0 %v2014
        %v2153 = vpop.f32.mrb[0].mxu0
        %v2154 = vadd.f32 0.0, %v2153
        %v2155 = vpop.f32.mrb[0].mxu0
        %v2156 = vpop.f32.mrb[0].mxu0
        %v2157 = vadd.f32 0.0, %v2156
        %v2158 = vpop.f32.mrb[0].mxu0
        %2159 = vmatprep.mubr.bf16.mxu0 0
        %2160 = vmatmul.mubr.bf16.gmra.mrb[0].mxu0 %v2017
        %v2161 = vpop.f32.mrb[0].mxu0
        %v2162 = vadd.f32 0.0, %v2161
        %v2163 = vpop.f32.mrb[0].mxu0
        %v2164 = vpop.f32.mrb[0].mxu0
        %v2165 = vadd.f32 0.0, %v2164
        %v2166 = vpop.f32.mrb[0].mxu0
        %2167 = vmatprep.mubr.bf16.mxu0 0
        %2168 = vmatmul.mubr.bf16.gmra.mrb[0].mxu0 %v2020
        %v2169 = vpop.f32.mrb[0].mxu0
        %v2170 = vadd.f32 0.0, %v2169
        %v2171 = vpop.f32.mrb[0].mxu0
        %v2172 = vpop.f32.mrb[0].mxu0
        %v2173 = vadd.f32 0.0, %v2172
        %v2174 = vpop.f32.mrb[0].mxu0
        %2175 = vmatprep.mubr.bf16.mxu0 0
        %2176 = vmatmul.mubr.bf16.gmra.mrb[0].mxu0 %v2023
        %v2177 = vpop.f32.mrb[0].mxu0
        %v2178 = vadd.f32 0.0, %v2177
        %v2179 = vpop.f32.mrb[0].mxu0
        %v2180 = vpop.f32.mrb[0].mxu0
        %v2181 = vadd.f32 0.0, %v2180
        %v2182 = vpop.f32.mrb[0].mxu0
        %2183 = vmatprep.mubr.bf16.mxu0 0
        %2184 = vmatmul.mubr.bf16.gmra.mrb[0].mxu0 %v2026
        %v2185 = vpop.f32.mrb[0].mxu0
        %v2186 = vadd.f32 0.0, %v2185
        %v2187 = vpop.f32.mrb[0].mxu0
        %v2188 = vpop.f32.mrb[0].mxu0
        %v2189 = vadd.f32 0.0, %v2188
        %v2190 = vpop.f32.mrb[0].mxu0
        %2191 = vdwg.mxu0
        %2220 = vrot.lane.b32.xlu0 %v2066, 8
        %v2221 = vpop.permute.xlu0 %2220
        %2222 = vrot.lane.b32.xlu0 %v2069, 8
        %v2223 = vpop.permute.xlu0 %2222
        %2224 = vrot.lane.b32.xlu0 %v2074, 8
        %v2225 = vpop.permute.xlu0 %2224
        %2226 = vrot.lane.b32.xlu0 %v2077, 8
        %v2227 = vpop.permute.xlu0 %2226
        %2228 = vrot.lane.b32.xlu0 %v2082, 8
        %v2229 = vpop.permute.xlu0 %2228
        %2230 = vrot.lane.b32.xlu0 %v2085, 8
        %v2231 = vpop.permute.xlu0 %2230
        %2232 = vrot.lane.b32.xlu0 %v2090, 8
        %v2233 = vpop.permute.xlu0 %2232
        %2234 = vrot.lane.b32.xlu0 %v2093, 8
        %v2235 = vpop.permute.xlu0 %2234
        %2236 = vrot.lane.b32.xlu0 %v2098, 8
        %v2237 = vpop.permute.xlu0 %2236
        %2238 = vrot.lane.b32.xlu0 %v2101, 8
        %v2239 = vpop.permute.xlu0 %2238
        %2240 = vrot.lane.b32.xlu0 %v2106, 8
        %v2241 = vpop.permute.xlu0 %2240
        %2242 = vrot.lane.b32.xlu0 %v2109, 8
        %v2243 = vpop.permute.xlu0 %2242
        %2244 = vrot.lane.b32.xlu0 %v2114, 8
        %v2245 = vpop.permute.xlu0 %2244
        %2246 = vrot.lane.b32.xlu0 %v2117, 8
        %v2247 = vpop.permute.xlu0 %2246
        %2248 = vrot.lane.b32.xlu0 %v2122, 8
        %v2249 = vpop.permute.xlu0 %2248
        %2250 = vrot.lane.b32.xlu0 %v2125, 8
        %v2251 = vpop.permute.xlu0 %2250
        %2252 = vrot.lane.b32.xlu0 %v2130, 8
        %v2253 = vpop.permute.xlu0 %2252
        %2254 = vrot.lane.b32.xlu0 %v2133, 8
        %v2255 = vpop.permute.xlu0 %2254
        %2256 = vrot.lane.b32.xlu0 %v2138, 8
        %v2257 = vpop.permute.xlu0 %2256
        %2258 = vrot.lane.b32.xlu0 %v2141, 8
        %v2259 = vpop.permute.xlu0 %2258
        %2260 = vrot.lane.b32.xlu0 %v2146, 8
        %v2261 = vpop.permute.xlu0 %2260
        %2262 = vrot.lane.b32.xlu0 %v2149, 8
        %v2263 = vpop.permute.xlu0 %2262
        %2264 = vrot.lane.b32.xlu0 %v2154, 8
        %v2265 = vpop.permute.xlu0 %2264
        %2266 = vrot.lane.b32.xlu0 %v2157, 8
        %v2267 = vpop.permute.xlu0 %2266
        %2268 = vrot.lane.b32.xlu0 %v2162, 8
        %v2269 = vpop.permute.xlu0 %2268
        %2270 = vrot.lane.b32.xlu0 %v2165, 8
        %v2271 = vpop.permute.xlu0 %2270
        %2272 = vrot.lane.b32.xlu0 %v2170, 8
        %v2273 = vpop.permute.xlu0 %2272
        %2274 = vrot.lane.b32.xlu0 %v2173, 8
        %v2275 = vpop.permute.xlu0 %2274
        %v2304 = vadd.f32 %v2066, %v903
        %v2305 = vadd.f32 %v2069, %v903
        %v2306 = vadd.f32 %v2074, %v903
        %v2307 = vadd.f32 %v2077, %v903
        %v2308 = vadd.f32 %v2082, %v2221
        %v2309 = vadd.f32 %v2085, %v2223
        %v2310 = vadd.f32 %v2090, %v2225
        %v2311 = vadd.f32 %v2093, %v2227
        %v2312 = vadd.f32 %v2098, %v2229
        %v2313 = vadd.f32 %v2101, %v2231
        %v2314 = vadd.f32 %v2106, %v2233
        %v2315 = vadd.f32 %v2109, %v2235
        %v2316 = vadd.f32 %v2114, %v2237
        %v2317 = vadd.f32 %v2117, %v2239
        %v2318 = vadd.f32 %v2122, %v2241
        %v2319 = vadd.f32 %v2125, %v2243
        %v2320 = vadd.f32 %v2130, %v2245
        %v2321 = vadd.f32 %v2133, %v2247
        %v2322 = vadd.f32 %v2138, %v2249
        %v2323 = vadd.f32 %v2141, %v2251
        %v2324 = vadd.f32 %v2146, %v2253
        %v2325 = vadd.f32 %v2149, %v2255
        %v2326 = vadd.f32 %v2154, %v2257
        %v2327 = vadd.f32 %v2157, %v2259
        %v2328 = vadd.f32 %v2162, %v2261
        %v2329 = vadd.f32 %v2165, %v2263
        %v2330 = vadd.f32 %v2170, %v2265
        %v2331 = vadd.f32 %v2173, %v2267
        %v2332 = vadd.f32 %v2178, %v2269
        %v2333 = vadd.f32 %v2181, %v2271
        %v2334 = vadd.f32 %v2186, %v2273
        %v2335 = vadd.f32 %v2189, %v2275
        %2340 = vrot.lane.b32.xlu0 %v2082, 120
        %v2341 = vpop.permute.xlu0 %2340
        %2342 = vrot.lane.b32.xlu0 %v2085, 120
        %v2343 = vpop.permute.xlu0 %2342
        %2344 = vrot.lane.b32.xlu0 %v2090, 120
        %v2345 = vpop.permute.xlu0 %2344
        %2346 = vrot.lane.b32.xlu0 %v2093, 120
        %v2347 = vpop.permute.xlu0 %2346
        %2348 = vrot.lane.b32.xlu0 %v2098, 120
        %v2349 = vpop.permute.xlu0 %2348
        %2350 = vrot.lane.b32.xlu0 %v2101, 120
        %v2351 = vpop.permute.xlu0 %2350
        %2352 = vrot.lane.b32.xlu0 %v2106, 120
        %v2353 = vpop.permute.xlu0 %2352
        %2354 = vrot.lane.b32.xlu0 %v2109, 120
        %v2355 = vpop.permute.xlu0 %2354
        %2356 = vrot.lane.b32.xlu0 %v2114, 120
        %v2357 = vpop.permute.xlu0 %2356
        %2358 = vrot.lane.b32.xlu0 %v2117, 120
        %v2359 = vpop.permute.xlu0 %2358
        %2360 = vrot.lane.b32.xlu0 %v2122, 120
        %v2361 = vpop.permute.xlu0 %2360
        %2362 = vrot.lane.b32.xlu0 %v2125, 120
        %v2363 = vpop.permute.xlu0 %2362
        %2364 = vrot.lane.b32.xlu0 %v2130, 120
        %v2365 = vpop.permute.xlu0 %2364
        %2366 = vrot.lane.b32.xlu0 %v2133, 120
        %v2367 = vpop.permute.xlu0 %2366
        %2368 = vrot.lane.b32.xlu0 %v2138, 120
        %v2369 = vpop.permute.xlu0 %2368
        %2370 = vrot.lane.b32.xlu0 %v2141, 120
        %v2371 = vpop.permute.xlu0 %2370
        %2372 = vrot.lane.b32.xlu0 %v2146, 120
        %v2373 = vpop.permute.xlu0 %2372
        %2374 = vrot.lane.b32.xlu0 %v2149, 120
        %v2375 = vpop.permute.xlu0 %2374
        %2376 = vrot.lane.b32.xlu0 %v2154, 120
        %v2377 = vpop.permute.xlu0 %2376
        %2378 = vrot.lane.b32.xlu0 %v2157, 120
        %v2379 = vpop.permute.xlu0 %2378
        %2380 = vrot.lane.b32.xlu0 %v2162, 120
        %v2381 = vpop.permute.xlu0 %2380
        %2382 = vrot.lane.b32.xlu0 %v2165, 120
        %v2383 = vpop.permute.xlu0 %2382
        %2384 = vrot.lane.b32.xlu0 %v2170, 120
        %v2385 = vpop.permute.xlu0 %2384
        %2386 = vrot.lane.b32.xlu0 %v2173, 120
        %v2387 = vpop.permute.xlu0 %2386
        %2388 = vrot.lane.b32.xlu0 %v2178, 120
        %v2389 = vpop.permute.xlu0 %2388
        %2390 = vrot.lane.b32.xlu0 %v2181, 120
        %v2391 = vpop.permute.xlu0 %2390
        %2392 = vrot.lane.b32.xlu0 %v2186, 120
        %v2393 = vpop.permute.xlu0 %2392
        %2394 = vrot.lane.b32.xlu0 %v2189, 120
        %v2395 = vpop.permute.xlu0 %2394
        %v2424 = vadd.f32 %v2304, %v2341
        %v2425 = vadd.f32 %v2305, %v2343
        %v2426 = vadd.f32 %v2306, %v2345
        %v2427 = vadd.f32 %v2307, %v2347
        %v2428 = vadd.f32 %v2308, %v2349
        %v2429 = vadd.f32 %v2309, %v2351
        %v2430 = vadd.f32 %v2310, %v2353
        %v2431 = vadd.f32 %v2311, %v2355
        %v2432 = vadd.f32 %v2312, %v2357
        %v2433 = vadd.f32 %v2313, %v2359
        %v2434 = vadd.f32 %v2314, %v2361
        %v2435 = vadd.f32 %v2315, %v2363
        %v2436 = vadd.f32 %v2316, %v2365
        %v2437 = vadd.f32 %v2317, %v2367
        %v2438 = vadd.f32 %v2318, %v2369
        %v2439 = vadd.f32 %v2319, %v2371
        %v2440 = vadd.f32 %v2320, %v2373
        %v2441 = vadd.f32 %v2321, %v2375
        %v2442 = vadd.f32 %v2322, %v2377
        %v2443 = vadd.f32 %v2323, %v2379
        %v2444 = vadd.f32 %v2324, %v2381
        %v2445 = vadd.f32 %v2325, %v2383
        %v2446 = vadd.f32 %v2326, %v2385
        %v2447 = vadd.f32 %v2327, %v2387
        %v2448 = vadd.f32 %v2328, %v2389
        %v2449 = vadd.f32 %v2329, %v2391
        %v2450 = vadd.f32 %v2330, %v2393
        %v2451 = vadd.f32 %v2331, %v2395
        %v2452 = vadd.f32 %v2332, %v1082
        %v2453 = vadd.f32 %v2333, %v1082
        %v2454 = vadd.f32 %v2334, %v1082
        %v2455 = vadd.f32 %v2335, %v1082
        %v2456 = vlaneseq
        %v2457 = vshrl.u32 %v2456, 7
        %v2458 = vsub.s32 0, %v2457
        %v2459 = vrot.slane %v1930, %v2458
        %2461 = vrot.lane.b32.xlu0 %v2459, 8
        %v2462 = vpop.permute.xlu0 %2461
        %v2464 = vmul.f32 %v2424, %v2462
        %v2465 = vmul.f32 %v2425, %v2462
        %v2466 = vmul.f32 %v2426, %v2462
        %v2467 = vmul.f32 %v2427, %v2462
        %v2468 = vmul.f32 %v2428, %v2462
        %v2469 = vmul.f32 %v2429, %v2462
        %v2470 = vmul.f32 %v2430, %v2462
        %v2471 = vmul.f32 %v2431, %v2462
        %v2472 = vmul.f32 %v2432, %v2462
        %v2473 = vmul.f32 %v2433, %v2462
        %v2474 = vmul.f32 %v2434, %v2462
        %v2475 = vmul.f32 %v2435, %v2462
        %v2476 = vmul.f32 %v2436, %v2462
        %v2477 = vmul.f32 %v2437, %v2462
        %v2478 = vmul.f32 %v2438, %v2462
        %v2479 = vmul.f32 %v2439, %v2462
        %v2480 = vmul.f32 %v2440, %v2462
        %v2481 = vmul.f32 %v2441, %v2462
        %v2482 = vmul.f32 %v2442, %v2462
        %v2483 = vmul.f32 %v2443, %v2462
        %v2484 = vmul.f32 %v2444, %v2462
        %v2485 = vmul.f32 %v2445, %v2462
        %v2486 = vmul.f32 %v2446, %v2462
        %v2487 = vmul.f32 %v2447, %v2462
        %v2488 = vmul.f32 %v2448, %v2462
        %v2489 = vmul.f32 %v2449, %v2462
        %v2490 = vmul.f32 %v2450, %v2462
        %v2491 = vmul.f32 %v2451, %v2462
        %v2492 = vmul.f32 %v2452, %v2462
        %v2493 = vmul.f32 %v2453, %v2462
        %v2494 = vmul.f32 %v2454, %v2462
        %v2495 = vmul.f32 %v2455, %v2462
        %v2496 = vlaneseq
        %v2497 = vshrl.u32 %v2496, 7
        %v2498 = vsub.s32 0, %v2497
        %v2499 = vrot.slane %v1931, %v2498
        %2501 = vrot.lane.b32.xlu0 %v2499, 8
        %v2502 = vpop.permute.xlu0 %2501
        %v2504 = vadd.f32 %v2464, %v2502
        %v2505 = vadd.f32 %v2465, %v2502
        %v2506 = vadd.f32 %v2466, %v2502
        %v2507 = vadd.f32 %v2467, %v2502
        %v2508 = vadd.f32 %v2468, %v2502
        %v2509 = vadd.f32 %v2469, %v2502
        %v2510 = vadd.f32 %v2470, %v2502
        %v2511 = vadd.f32 %v2471, %v2502
        %v2512 = vadd.f32 %v2472, %v2502
        %v2513 = vadd.f32 %v2473, %v2502
        %v2514 = vadd.f32 %v2474, %v2502
        %v2515 = vadd.f32 %v2475, %v2502
        %v2516 = vadd.f32 %v2476, %v2502
        %v2517 = vadd.f32 %v2477, %v2502
        %v2518 = vadd.f32 %v2478, %v2502
        %v2519 = vadd.f32 %v2479, %v2502
        %v2520 = vadd.f32 %v2480, %v2502
        %v2521 = vadd.f32 %v2481, %v2502
        %v2522 = vadd.f32 %v2482, %v2502
        %v2523 = vadd.f32 %v2483, %v2502
        %v2524 = vadd.f32 %v2484, %v2502
        %v2525 = vadd.f32 %v2485, %v2502
        %v2526 = vadd.f32 %v2486, %v2502
        %v2527 = vadd.f32 %v2487, %v2502
        %v2528 = vadd.f32 %v2488, %v2502
        %v2529 = vadd.f32 %v2489, %v2502
        %v2530 = vadd.f32 %v2490, %v2502
        %v2531 = vadd.f32 %v2491, %v2502
        %v2532 = vadd.f32 %v2492, %v2502
        %v2533 = vadd.f32 %v2493, %v2502
        %v2534 = vadd.f32 %v2494, %v2502
        %v2535 = vadd.f32 %v2495, %v2502
        %v2536 = vmax.f32 %v2504, 0.0
        %v2537 = vmax.f32 %v2505, 0.0
        %v2538 = vmax.f32 %v2506, 0.0
        %v2539 = vmax.f32 %v2507, 0.0
        %v2540 = vmax.f32 %v2508, 0.0
        %v2541 = vmax.f32 %v2509, 0.0
        %v2542 = vmax.f32 %v2510, 0.0
        %v2543 = vmax.f32 %v2511, 0.0
        %v2544 = vmax.f32 %v2512, 0.0
        %v2545 = vmax.f32 %v2513, 0.0
        %v2546 = vmax.f32 %v2514, 0.0
        %v2547 = vmax.f32 %v2515, 0.0
        %v2548 = vmax.f32 %v2516, 0.0
        %v2549 = vmax.f32 %v2517, 0.0
        %v2550 = vmax.f32 %v2518, 0.0
        %v2551 = vmax.f32 %v2519, 0.0
        %v2552 = vmax.f32 %v2520, 0.0
        %v2553 = vmax.f32 %v2521, 0.0
        %v2554 = vmax.f32 %v2522, 0.0
        %v2555 = vmax.f32 %v2523, 0.0
        %v2556 = vmax.f32 %v2524, 0.0
        %v2557 = vmax.f32 %v2525, 0.0
        %v2558 = vmax.f32 %v2526, 0.0
        %v2559 = vmax.f32 %v2527, 0.0
        %v2560 = vmax.f32 %v2528, 0.0
        %v2561 = vmax.f32 %v2529, 0.0
        %v2562 = vmax.f32 %v2530, 0.0
        %v2563 = vmax.f32 %v2531, 0.0
        %v2564 = vmax.f32 %v2532, 0.0
        %v2565 = vmax.f32 %v2533, 0.0
        %v2566 = vmax.f32 %v2534, 0.0
        %v2567 = vmax.f32 %v2535, 0.0
        %v2568 = vld [vmem:[#allocation2] sm:$0x1]
        %v2569 = vadd.f32 %v1224, %v1880
        %v2570 = vadd.f32 %v1225, %v1881
        %v2571 = vadd.f32 %v1226, %v1882
        %v2572 = vadd.f32 %v1227, %v1883
        %v2573 = vadd.f32 %v1228, %v1884
        %v2574 = vadd.f32 %v1229, %v1885
        %v2575 = vadd.f32 %v1230, %v1886
        %v2576 = vadd.f32 %v1231, %v1887
        %v2577 = vadd.f32 %v1232, %v1888
        %v2578 = vadd.f32 %v1233, %v1889
        %v2579 = vadd.f32 %v1234, %v1890
        %v2580 = vadd.f32 %v1235, %v1891
        %v2581 = vadd.f32 %v1236, %v1892
        %v2582 = vadd.f32 %v1237, %v1893
        %v2583 = vadd.f32 %v1238, %v1894
        %v2584 = vadd.f32 %v1239, %v1895
        %v2585 = vadd.f32 %v1240, %v1896
        %v2586 = vadd.f32 %v1241, %v1897
        %v2587 = vadd.f32 %v1242, %v1898
        %v2588 = vadd.f32 %v1243, %v1899
        %v2589 = vadd.f32 %v1244, %v1900
        %v2590 = vadd.f32 %v1245, %v1901
        %v2591 = vadd.f32 %v1246, %v1902
        %v2592 = vadd.f32 %v1247, %v1903
        %v2593 = vadd.f32 %v1248, %v1904
        %v2594 = vadd.f32 %v1249, %v1905
        %v2595 = vadd.f32 %v1250, %v1906
        %v2596 = vadd.f32 %v1251, %v1907
        %v2597 = vadd.f32 %v1252, %v1908
        %v2598 = vadd.f32 %v1253, %v1909
        %v2599 = vadd.f32 %v1254, %v1910
        %v2600 = vadd.f32 %v1255, %v1911
        %v2601 = vadd.f32 %v2569, %v2536
        %v2602 = vadd.f32 %v2570, %v2537
        %v2603 = vadd.f32 %v2571, %v2538
        %v2604 = vadd.f32 %v2572, %v2539
        %v2605 = vadd.f32 %v2573, %v2540
        %v2606 = vadd.f32 %v2574, %v2541
        %v2607 = vadd.f32 %v2575, %v2542
        %v2608 = vadd.f32 %v2576, %v2543
        %v2609 = vadd.f32 %v2577, %v2544
        %v2610 = vadd.f32 %v2578, %v2545
        %v2611 = vadd.f32 %v2579, %v2546
        %v2612 = vadd.f32 %v2580, %v2547
        %v2613 = vadd.f32 %v2581, %v2548
        %v2614 = vadd.f32 %v2582, %v2549
        %v2615 = vadd.f32 %v2583, %v2550
        %v2616 = vadd.f32 %v2584, %v2551
        %v2617 = vadd.f32 %v2585, %v2552
        %v2618 = vadd.f32 %v2586, %v2553
        %v2619 = vadd.f32 %v2587, %v2554
        %v2620 = vadd.f32 %v2588, %v2555
        %v2621 = vadd.f32 %v2589, %v2556
        %v2622 = vadd.f32 %v2590, %v2557
        %v2623 = vadd.f32 %v2591, %v2558
        %v2624 = vadd.f32 %v2592, %v2559
        %v2625 = vadd.f32 %v2593, %v2560
        %v2626 = vadd.f32 %v2594, %v2561
        %v2627 = vadd.f32 %v2595, %v2562
        %v2628 = vadd.f32 %v2596, %v2563
        %v2629 = vadd.f32 %v2597, %v2564
        %v2630 = vadd.f32 %v2598, %v2565
        %v2631 = vadd.f32 %v2599, %v2566
        %v2632 = vadd.f32 %v2600, %v2567
        %vm2633 = vcmask 130112
        %v2634 = vsel %vm2633, %v2601, 0.0
        %v2635 = vsel %vm2633, %v2602, 0.0
        %v2636 = vadd.f32 %v2634, %v2635
        %v2637 = vsel %vm2633, %v2603, 0.0
        %v2638 = vadd.f32 %v2636, %v2637
        %v2639 = vsel %vm2633, %v2604, 0.0
        %v2640 = vadd.f32 %v2638, %v2639
        %v2641 = vsel %vm2633, %v2605, 0.0
        %v2642 = vadd.f32 %v2640, %v2641
        %v2643 = vsel %vm2633, %v2606, 0.0
        %v2644 = vadd.f32 %v2642, %v2643
        %v2645 = vsel %vm2633, %v2607, 0.0
        %v2646 = vadd.f32 %v2644, %v2645
        %v2647 = vsel %vm2633, %v2608, 0.0
        %v2648 = vadd.f32 %v2646, %v2647
        %v2649 = vsel %vm2633, %v2609, 0.0
        %v2650 = vadd.f32 %v2648, %v2649
        %v2651 = vsel %vm2633, %v2610, 0.0
        %v2652 = vadd.f32 %v2650, %v2651
        %v2653 = vsel %vm2633, %v2611, 0.0
        %v2654 = vadd.f32 %v2652, %v2653
        %v2655 = vsel %vm2633, %v2612, 0.0
        %v2656 = vadd.f32 %v2654, %v2655
        %v2657 = vsel %vm2633, %v2613, 0.0
        %v2658 = vadd.f32 %v2656, %v2657
        %v2659 = vsel %vm2633, %v2614, 0.0
        %v2660 = vadd.f32 %v2658, %v2659
        %v2661 = vsel %vm2633, %v2615, 0.0
        %v2662 = vadd.f32 %v2660, %v2661
        %v2663 = vsel %vm2633, %v2616, 0.0
        %v2664 = vadd.f32 %v2662, %v2663
        %v2665 = vsel %vm2633, %v2617, 0.0
        %v2666 = vadd.f32 %v2664, %v2665
        %v2667 = vsel %vm2633, %v2618, 0.0
        %v2668 = vadd.f32 %v2666, %v2667
        %v2669 = vsel %vm2633, %v2619, 0.0
        %v2670 = vadd.f32 %v2668, %v2669
        %v2671 = vsel %vm2633, %v2620, 0.0
        %v2672 = vadd.f32 %v2670, %v2671
        %v2673 = vsel %vm2633, %v2621, 0.0
        %v2674 = vadd.f32 %v2672, %v2673
        %v2675 = vsel %vm2633, %v2622, 0.0
        %v2676 = vadd.f32 %v2674, %v2675
        %v2677 = vsel %vm2633, %v2623, 0.0
        %v2678 = vadd.f32 %v2676, %v2677
        %v2679 = vsel %vm2633, %v2624, 0.0
        %v2680 = vadd.f32 %v2678, %v2679
        %v2681 = vsel %vm2633, %v2625, 0.0
        %v2682 = vadd.f32 %v2680, %v2681
        %v2683 = vsel %vm2633, %v2626, 0.0
        %v2684 = vadd.f32 %v2682, %v2683
        %v2685 = vsel %vm2633, %v2627, 0.0
        %v2686 = vadd.f32 %v2684, %v2685
        %v2687 = vsel %vm2633, %v2628, 0.0
        %v2688 = vadd.f32 %v2686, %v2687
        %v2689 = vsel %vm2633, %v2629, 0.0
        %v2690 = vadd.f32 %v2688, %v2689
        %v2691 = vsel %vm2633, %v2630, 0.0
        %v2692 = vadd.f32 %v2690, %v2691
        %v2693 = vsel %vm2633, %v2631, 0.0
        %v2694 = vadd.f32 %v2692, %v2693
        %v2695 = vsel %vm2633, %v2632, 0.0
        %v2696 = vadd.f32 %v2694, %v2695
        %v2697 = vrot.slane %v2696, 4
        %v2698 = vadd.f32 %v2696, %v2697
        %v2699 = vrot.slane %v2698, 2
        %v2700 = vadd.f32 %v2698, %v2699
        %v2701 = vrot.slane %v2700, 1
        %v2702 = vadd.f32 %v2700, %v2701
        %v2705 = vunpack.c.l.s4 1966171168
        %v2706 = vunpack.c.0.s8 %v2705
        %v2707 = vlaneseq
        %v2708 = vshrl.u32 %v2707, 7
        %v2709 = vsub.s32 %v2706, %v2708
        %v2710 = vrot.slane %v2702, %v2709
        %v2712 = vunpack.c.l.s4 1966171168
        %v2713 = vunpack.c.0.s8 %v2712
        %v2714 = vlaneseq
        %v2715 = vshrl.u32 %v2714, 7
        %v2716 = vsub.s32 %v2713, %v2715
        %v2717 = vrot.slane %v2710, %v2716
        %2718 = vrot.lane.b32.xlu0 %v2717, 120
        %v2719 = vpop.permute.xlu0 %2718
        %v2721 = vadd.f32 %v2568, %v2719
        %vm2722 = vcmask 57344
        %2723 = vst.msk [vmem:[#allocation2] sm:$0x1] %vm2722, %v2721
        %p2724 = scmp.eq.s32.totalorder %s37, 1
        // Predicated region
        $region105: #{multiscale_temporal_module.2} parent=59 // pred_check
          %p2725 = pneg %p2724
        $region106: #{multiscale_temporal_module.2} parent=59 // pred_check_branch
          %2727 = sbr.rel (%p2725) target = $region108
        $region107: #{multiscale_temporal_module.2} parent=59 // pred_region
          %v2728 = vld [vmem:[#allocation2] sm:$0x1]
          %v2729 = vmul.f32 %v2728, 0.0006510417
          %v2730 = vld [vmem:[#allocation11] sm:$0xff]
          %v2731 = vld [vmem:[#allocation12] sm:$0x1]
          %v2733 = vsel %vm659, %v2729, 0
          %2735 = vmatprep.subr.mxu0 0.0
          %2736 = vmatpush1.msra.mxu0 %v2730
          %2737 = vmatprep.subr.mxu0 0.0
          %2738 = vmatpush1.msra.mxu0 0.0
          %2739 = vmatprep.subr.mxu0 0.0
          %2740 = vmatpush1.msra.mxu0 0.0
          %2741 = vmatprep.subr.mxu0 0.0
          %2742 = vmatpush1.msra.mxu0 0.0
          %2743 = vmatprep.subr.mxu0 0.0
          %2744 = vmatpush1.msra.mxu0 0.0
          %2745 = vmatprep.subr.mxu0 0.0
          %2746 = vmatpush1.msra.mxu0 0.0
          %2747 = vmatprep.subr.mxu0 0.0
          %2748 = vmatpush1.msra.mxu0 0.0
          %2749 = vmatprep.subr.mxu0 0.0
          %2750 = vmatpush1.msra.mxu0 0.0
          %2751 = vmatprep.subr.mxu0 0.0
          %2752 = vmatpush1.msra.mxu0 0.0
          %2753 = vmatprep.subr.mxu0 0.0
          %2754 = vmatpush1.msra.mxu0 0.0
          %2755 = vmatprep.subr.mxu0 0.0
          %2756 = vmatpush1.msra.mxu0 0.0
          %2757 = vmatprep.subr.mxu0 0.0
          %2758 = vmatpush1.msra.mxu0 0.0
          %2759 = vmatprep.subr.mxu0 0.0
          %2760 = vmatpush1.msra.mxu0 0.0
          %2761 = vmatprep.subr.mxu0 0.0
          %2762 = vmatpush1.msra.mxu0 0.0
          %2763 = vmatprep.subr.mxu0 0.0
          %2764 = vmatpush1.msra.mxu0 0.0
          %2765 = vmatprep.subr.mxu0 0.0
          %2766 = vmatpush1.msra.mxu0 0.0
          %2767 = vmatprep.subr.mxu0 0.0
          %2768 = vmatpush1.msra.mxu0 0.0
          %2769 = vmatprep.subr.mxu0 0.0
          %2770 = vmatpush1.msra.mxu0 0.0
          %2771 = vmatprep.subr.mxu0 0.0
          %2772 = vmatpush1.msra.mxu0 0.0
          %2773 = vmatprep.subr.mxu0 0.0
          %2774 = vmatpush1.msra.mxu0 0.0
          %2775 = vmatprep.subr.mxu0 0.0
          %2776 = vmatpush1.msra.mxu0 0.0
          %2777 = vmatprep.subr.mxu0 0.0
          %2778 = vmatpush1.msra.mxu0 0.0
          %2779 = vmatprep.subr.mxu0 0.0
          %2780 = vmatpush1.msra.mxu0 0.0
          %2781 = vmatprep.subr.mxu0 0.0
          %2782 = vmatpush1.msra.mxu0 0.0
          %2783 = vmatprep.subr.mxu0 0.0
          %2784 = vmatpush1.msra.mxu0 0.0
          %2785 = vmatprep.subr.mxu0 0.0
          %2786 = vmatpush1.msra.mxu0 0.0
          %2787 = vmatprep.subr.mxu0 0.0
          %2788 = vmatpush1.msra.mxu0 0.0
          %2789 = vmatprep.subr.mxu0 0.0
          %2790 = vmatpush1.msra.mxu0 0.0
          %2791 = vmatprep.subr.mxu0 0.0
          %2792 = vmatpush1.msra.mxu0 0.0
          %2793 = vmatprep.subr.mxu0 0.0
          %2794 = vmatpush1.msra.mxu0 0.0
          %2795 = vmatprep.subr.mxu0 0.0
          %2796 = vmatpush1.msra.mxu0 0.0
          %2797 = vmatprep.subr.mxu0 0.0
          %2798 = vmatpush1.msra.mxu0 0.0
          %2799 = vmatprep.mubr.f32.mxu0 0.0
          %2800 = vmatmul.mubr.f32.gmra.mrb[0].mxu0 %v2733
          %v2801 = vpop.f32.mrb[0].mxu0
          %v2802 = vadd.f32 %v2731, %v2801
          %v2803 = vpop.f32.mrb[0].mxu0
          %2804 = vdwg.mxu0
          %v2805 = vld [vmem:[#allocation14] sm:$0x1]
          %v2806 = vmul.f32 %v2802, %v2805
          %v2807 = vld [vmem:[#allocation15] sm:$0x1]
          %v2808 = vadd.f32 %v2806, %v2807
          %v2809 = vmax.f32 %v2808, 0.0
          %v2810 = vld [vmem:[#allocation17] sm:$0xff]
          %v2811 = vld [vmem:[#allocation17 + $0x8] sm:$0xff]
          %v2812 = vld [vmem:[#allocation17 + $0x10] sm:$0xff]
          %v2813 = vld [vmem:[#allocation17 + $0x18] sm:$0xff]
          %v2814 = vld [vmem:[#allocation18] sm:$0x1]
          %vm2815 = vcmask 261120
          %v2817 = vsel %vm2815, %v2809, 0
          %2819 = vmatprep.subr.mxu0 0.0
          %2820 = vmatpush1.msra.mxu0 %v2810
          %2821 = vmatprep.subr.mxu0 0.0
          %2822 = vmatpush1.msra.mxu0 %v2811
          %2823 = vmatprep.subr.mxu0 0.0
          %2824 = vmatpush1.msra.mxu0 %v2812
          %2825 = vmatprep.subr.mxu0 0.0
          %2826 = vmatpush1.msra.mxu0 %v2813
          %2827 = vmatprep.subr.mxu0 0.0
          %2828 = vmatpush1.msra.mxu0 0.0
          %2829 = vmatprep.subr.mxu0 0.0
          %2830 = vmatpush1.msra.mxu0 0.0
          %2831 = vmatprep.subr.mxu0 0.0
          %2832 = vmatpush1.msra.mxu0 0.0
          %2833 = vmatprep.subr.mxu0 0.0
          %2834 = vmatpush1.msra.mxu0 0.0
          %2835 = vmatprep.subr.mxu0 0.0
          %2836 = vmatpush1.msra.mxu0 0.0
          %2837 = vmatprep.subr.mxu0 0.0
          %2838 = vmatpush1.msra.mxu0 0.0
          %2839 = vmatprep.subr.mxu0 0.0
          %2840 = vmatpush1.msra.mxu0 0.0
          %2841 = vmatprep.subr.mxu0 0.0
          %2842 = vmatpush1.msra.mxu0 0.0
          %2843 = vmatprep.subr.mxu0 0.0
          %2844 = vmatpush1.msra.mxu0 0.0
          %2845 = vmatprep.subr.mxu0 0.0
          %2846 = vmatpush1.msra.mxu0 0.0
          %2847 = vmatprep.subr.mxu0 0.0
          %2848 = vmatpush1.msra.mxu0 0.0
          %2849 = vmatprep.subr.mxu0 0.0
          %2850 = vmatpush1.msra.mxu0 0.0
          %2851 = vmatprep.subr.mxu0 0.0
          %2852 = vmatpush1.msra.mxu0 0.0
          %2853 = vmatprep.subr.mxu0 0.0
          %2854 = vmatpush1.msra.mxu0 0.0
          %2855 = vmatprep.subr.mxu0 0.0
          %2856 = vmatpush1.msra.mxu0 0.0
          %2857 = vmatprep.subr.mxu0 0.0
          %2858 = vmatpush1.msra.mxu0 0.0
          %2859 = vmatprep.subr.mxu0 0.0
          %2860 = vmatpush1.msra.mxu0 0.0
          %2861 = vmatprep.subr.mxu0 0.0
          %2862 = vmatpush1.msra.mxu0 0.0
          %2863 = vmatprep.subr.mxu0 0.0
          %2864 = vmatpush1.msra.mxu0 0.0
          %2865 = vmatprep.subr.mxu0 0.0
          %2866 = vmatpush1.msra.mxu0 0.0
          %2867 = vmatprep.subr.mxu0 0.0
          %2868 = vmatpush1.msra.mxu0 0.0
          %2869 = vmatprep.subr.mxu0 0.0
          %2870 = vmatpush1.msra.mxu0 0.0
          %2871 = vmatprep.subr.mxu0 0.0
          %2872 = vmatpush1.msra.mxu0 0.0
          %2873 = vmatprep.subr.mxu0 0.0
          %2874 = vmatpush1.msra.mxu0 0.0
          %2875 = vmatprep.subr.mxu0 0.0
          %2876 = vmatpush1.msra.mxu0 0.0
          %2877 = vmatprep.subr.mxu0 0.0
          %2878 = vmatpush1.msra.mxu0 0.0
          %2879 = vmatprep.subr.mxu0 0.0
          %2880 = vmatpush1.msra.mxu0 0.0
          %2881 = vmatprep.subr.mxu0 0.0
          %2882 = vmatpush1.msra.mxu0 0.0
          %2883 = vmatprep.mubr.f32.mxu0 0.0
          %2884 = vmatmul.mubr.f32.gmra.mrb[0].mxu0 %v2817
          %v2885 = vpop.f32.mrb[0].mxu0
          %v2886 = vadd.f32 %v2814, %v2885
          %v2887 = vpop.f32.mrb[0].mxu0
          %2888 = vdwg.mxu0
          %2890 = vrot.lane.b32.xlu0 %v2886, 120
          %v2891 = vpop.permute.xlu0 %2890
          %v2893 = vmax.f32 %v2886, %v2891
          %2894 = vrot.lane.b32.xlu0 %v2886, 112
          %v2895 = vpop.permute.xlu0 %2894
          %v2897 = vmax.f32 %v2893, %v2895
          %v2898 = vsub.f32 %v2886, %v2897
          %v2899 = vmul.f32 %v2898, 1.442695
          %v2900 = vpow.pop %v2899
          %2902 = vrot.lane.b32.xlu0 %v2897, 8
          %v2903 = vpop.permute.xlu0 %2902
          %v2905 = vsub.f32 %v2886, %v2903
          %v2906 = vmul.f32 %v2905, 1.442695
          %v2907 = vpow.pop %v2906
          %2908 = vrot.lane.b32.xlu0 %v2897, 16
          %v2909 = vpop.permute.xlu0 %2908
          %v2911 = vsub.f32 %v2886, %v2909
          %v2912 = vmul.f32 %v2911, 1.442695
          %v2913 = vpow.pop %v2912
          %2915 = vrot.lane.b32.xlu0 %v2907, 120
          %v2916 = vpop.permute.xlu0 %2915
          %v2918 = vadd.f32 %v2900, %v2916
          %2920 = vrot.lane.b32.xlu0 %v2913, 112
          %v2921 = vpop.permute.xlu0 %2920
          %v2923 = vadd.f32 %v2918, %v2921
          %v2924 = vrcp.pop %v2923
          %v2925 = vmul.f32 1.0, %v2924
          %v2926 = vmul.f32 %v2900, %v2925
          %2928 = vrot.lane.b32.xlu0 %v2925, 8
          %v2929 = vpop.permute.xlu0 %2928
          %v2931 = vmul.f32 %v2907, %v2929
          %2932 = vrot.lane.b32.xlu0 %v2925, 16
          %v2933 = vpop.permute.xlu0 %2932
          %v2935 = vmul.f32 %v2913, %v2933
          %v2937 = vrot.slane %v2931, 7
          %2938 = vrot.lane.b32.xlu0 %v2937, 120
          %v2939 = vpop.permute.xlu0 %2938
          %v2942 = vrot.slane %v2935, 6
          %2943 = vrot.lane.b32.xlu0 %v2942, 112
          %v2944 = vpop.permute.xlu0 %2943
          %vm2946 = vcmask 1040384
          %v2947 = vsel %vm2946, %v2926, %v2939
          %vm2948 = vcmask 1041408
          %v2949 = vsel %vm2948, %v2947, %v2944
          %vm2950 = vcmask 59392
          %2951 = vst.msk [vmem:[%s535] sm:$0x7] %vm2950, %v2949
        $region108: #{multiscale_temporal_module.2} parent=59 // pred_fallthru
          _
        %s2952 = sand.u32 %s269, 1
        %s2953 = scalar_lea.sflag [#allocation5], %s2952
        %s2954 = sand.u32 %s269, 1
        %s2955 = smul.addr %s2954, 4
        %s2956 = scalar_lea.vmem [#allocation20], %s2955
        // Predicated region
        $region109: #{multiscale_temporal_module.2} parent=59 // pred_check
          %p2957 = pneg %p279
        $region110: #{multiscale_temporal_module.2} parent=59 // pred_check_branch
          %2959 = sbr.rel (%p2957) target = $region112
        $region111: #{multiscale_temporal_module.2} parent=59 // pred_region
          %s2961 = ssub.s32 64, 64
          %2962 = vsyncadd %s2953, %s2961
          %s2963 = smul.addr %s36, 64
          %s2964 = scalar_lea.hbm %s10, %s2963
          %s2966 = sshll.u32 %s2956, 4
          %s2967 = int_to_ptr.vmem [resolvable:$true] %s2966
          %2969 = dma.vmem_to_hbm [thread:$0]  %s2967, 64, %s2964, %s2953
        $region112: #{multiscale_temporal_module.2} parent=59 // pred_fallthru
          _
      $region60: #{multiscale_temporal_module.2} parent=5 // pred_fallthru
        _
      %p2970 = scmp.le.s32.totalorder 2, %s27
      // Predicated region
      $region113: #{multiscale_temporal_module.2} parent=5 // pred_check
        %p2971 = pneg %p2970
      $region114: #{multiscale_temporal_module.2} parent=5 // pred_check_branch
        %2973 = sbr.rel (%p2971) target = $region116
      $region115: #{multiscale_temporal_module.2} parent=5 // pred_region
        %s2974 = ssub.s32 %s27, 2
        // Predicated region
        $region117: #{multiscale_temporal_module.2} parent=115 // pred_check
          %p2975 = pneg %p285
        $region118: #{multiscale_temporal_module.2} parent=115 // pred_check_branch
          %2977 = sbr.rel (%p2975) target = $region120
        $region119: #{multiscale_temporal_module.2} parent=115 // pred_region
          %s2978 = sand.u32 %s270, 1
          %s2979 = scalar_lea.sflag [#allocation5], %s2978
          %s2980 = sand.u32 %s270, 1
          %s2981 = smul.addr %s2980, 4
          %s2982 = scalar_lea.vmem [#allocation20], %s2981
          %2983 = dma.done %s2979, 64
        $region120: #{multiscale_temporal_module.2} parent=115 // pred_fallthru
          _
      $region116: #{multiscale_temporal_module.2} parent=5 // pred_fallthru
        _
    $region6: #{multiscale_temporal_module.2} parent=1 // loop_footer
      %s31 = sadd.s32 1, %s27
    $region7: #{multiscale_temporal_module.2} parent=1 // loop_footer_branch
      %26 = sbr.rel target = $region3
    $region8: #{multiscale_temporal_module.2} parent=1 // loop_exit
      _
    %2984 = vsyncpa [#allocation4], 1
    %s2985 = scalar_lea.sflag [#allocation4], 1
    %2986 = vsyncpa %s2985, 1
    %2987 = vsyncpa [#allocation7], 1
    %2988 = vsyncpa [#allocation10], 1
    %2989 = vsyncpa [#allocation13], 1
    %2990 = vsyncpa [#allocation16], 1
    %2991 = vsyncpa [#allocation19], 1
    %2992 = vsyncpa [#allocation5], 1
    %s2993 = scalar_lea.sflag [#allocation5], 1
    %2994 = vsyncpa %s2993, 1

</llo_original>
